<compile_context>
chip_gen: v7x
topology: tpu7x:2x2x1
jax: 0.10.0
libtpu: 0.0.40
codegen_flags: <defaults>
</compile_context>

<pallas_src>
import functools

import jax
import jax.numpy as jnp
from jax.experimental import pallas as pl
from jax.experimental.pallas import tpu as pltpu


def _round_up(x, m):
    return (x + m - 1) // m * m


# Padded head dims (lane multiples of 128).
_D0P = 1024   # 1000 -> 1024
_D1P = 512
_D2P = 128
_D3P = 128    # 19 -> 128 (lane-dense output => unmasked vst, no partial stores)

# Max batch rows per block (each batch tile re-streams wb, so bigger is better).
_TB_MAX = 512


@functools.lru_cache(maxsize=None)
def _hw_config():
    """Per-generation (tk_target, vmem_limit_bytes)."""
    tk_target = 2048
    vmem_limit = 48 * 1024 * 1024          # conservative fallback (proven safe)
    try:
        info = pltpu.get_tpu_info()
        vmem_bytes = getattr(info, "vmem_capacity_bytes", None)
        if vmem_bytes is not None:
            if vmem_bytes >= 96 * 1024 * 1024:
                # v5e / v6e: 128 MiB physical VMEM -> big K tiles, 96 MiB scoped.
                tk_target = 8192
                vmem_limit = 96 * 1024 * 1024
            else:
                # v7x: 64 MiB per-TC VMEM -> bf16-sized 4K tiles, <= 56 MiB scoped.
                tk_target = 4096
                vmem_limit = 56 * 1024 * 1024
    except Exception:
        pass
    return tk_target, vmem_limit


def _k_tiling(in_feat, tk_target):
    """(fp, tk): fp % tk == 0, fp % 128 == 0, minimal padding-vs-step-overhead.

    Cost model: streamed wb bytes (bf16, _D0P output cols) at ~1 TB/s plus
    ~0.35 us fixed overhead per grid step.  Avoids the old round-up-to-TK
    behavior that could nearly double streamed HBM bytes.
    """
    f128 = _round_up(in_feat, 128)
    best = None
    for tk in range(128, min(tk_target, f128) + 1, 128):
        fp = _round_up(f128, tk)
        steps = fp // tk
        cost = fp * _D0P * 2 / 1.0e6 + steps * 0.35
        if best is None or cost < best[0]:
            best = (cost, tk, fp)
    _, tk, fp = best
    return fp, tk


def _pad2d(a, rows, cols):
    return jnp.pad(a, ((0, rows - a.shape[0]), (0, cols - a.shape[1])))


def _mlp_head_kernel(x_ref, wb_ref, bb_ref,
                     w1_ref, b1_ref,
                     w2_ref, b2_ref,
                     w3_ref, b3_ref,
                     o_ref, acc_ref):
    """Stream baseline weight over K; run the small MLP head on the last step."""
    k = pl.program_id(1)

    @pl.when(k == 0)
    def _():
        acc_ref[...] = jnp.zeros_like(acc_ref)

    # Partial baseline matmul for this K tile (bf16 x bf16 -> f32 accumulate).
    acc_ref[...] += jnp.dot(x_ref[...], wb_ref[...],
                            preferred_element_type=jnp.float32)

    @pl.when(k == pl.num_programs(1) - 1)
    def _():
        # baseline bias (no activation, matches `self.baseline(X)`)
        feat = acc_ref[...] + bb_ref[...]
        # extra_fc1 + ReLU : 1000 -> 512
        h1 = jnp.maximum(
            jnp.dot(feat.astype(jnp.bfloat16), w1_ref[...],
                    preferred_element_type=jnp.float32) + b1_ref[...], 0.0)
        # extra_fc2 + ReLU : 512 -> 128
        h2 = jnp.maximum(
            jnp.dot(h1.astype(jnp.bfloat16), w2_ref[...],
                    preferred_element_type=jnp.float32) + b2_ref[...], 0.0)
        # extra_fc3 : 128 -> 19 (no activation)
        o_ref[...] = (jnp.dot(h2.astype(jnp.bfloat16), w3_ref[...],
                              preferred_element_type=jnp.float32)
                      + b3_ref[...])


def prepare_params(params, in_feat):
    """One-time padding + bf16 cast of weights to TPU-friendly shapes.

    Done once outside the per-call jitted path so the (potentially huge)
    baseline weight is never re-read/re-written in HBM on every forward.
    Zero padding is mathematically inert through the dots/ReLUs.  Weights are
    stored in bf16 (the streamed wb is the HBM-bound term); biases stay f32.
    """
    tk_target, _ = _hw_config()
    fp, _ = _k_tiling(in_feat, tk_target)
    bf16 = jnp.bfloat16
    f32 = jnp.float32
    padded = {
        "wb": _pad2d(params["wb"].astype(bf16), fp, _D0P),
        "bb": _pad2d(params["bb"][None, :].astype(f32), 1, _D0P),
        "w1": _pad2d(params["w1"].astype(bf16), _D0P, _D1P),
        "b1": _pad2d(params["b1"][None, :].astype(f32), 1, _D1P),
        "w2": _pad2d(params["w2"].astype(bf16), _D1P, _D2P),
        "b2": _pad2d(params["b2"][None, :].astype(f32), 1, _D2P),
        "w3": _pad2d(params["w3"].astype(bf16), _D2P, _D3P),
        "b3": _pad2d(params["b3"][None, :].astype(f32), 1, _D3P),
    }
    return jax.tree_util.tree_map(jax.device_put, padded)


@jax.jit
def model1_forward(x_nchw, padded):
    """Full model1 forward pass via a single K/batch-gridded Pallas kernel."""
    B = x_nchw.shape[0]
    in_feat = x_nchw.shape[1] * x_nchw.shape[2] * x_nchw.shape[3]

    tk_target, vmem_limit = _hw_config()
    fp, tk = _k_tiling(in_feat, tk_target)
    assert padded["wb"].shape[0] == fp, "prepare_params / forward K-tiling mismatch"

    # Batch tiling: as few tiles as possible, minimal padding, sublane-aligned.
    n_bt = pl.cdiv(B, _TB_MAX)
    tb = _round_up(pl.cdiv(B, n_bt), 8)
    bp = _round_up(B, tb)

    # Cast once to bf16 (halves the x stream); pad only if shapes require it
    # (XLA fuses the convert+pad, no separate full-f32 padded copy).
    x_flat = x_nchw.reshape(B, in_feat).astype(jnp.bfloat16)
    if bp != B or fp != in_feat:
        x_p = jnp.pad(x_flat, ((0, bp - B), (0, fp - in_feat)))
    else:
        x_p = x_flat

    grid = (bp // tb, fp // tk)

    out_padded = pl.pallas_call(
        _mlp_head_kernel,
        out_shape=jax.ShapeDtypeStruct((bp, _D3P), jnp.float32),
        grid_spec=pltpu.PrefetchScalarGridSpec(
            num_scalar_prefetch=0,
            grid=grid,
            in_specs=[
                # activation: tiled over (batch, K), bf16
                pl.BlockSpec((tb, tk), lambda b, k: (b, k)),
                # baseline weight: streamed over K, reused across batch tiles
                pl.BlockSpec((tk, _D0P), lambda b, k: (k, 0)),
                # baseline bias + head weights/biases: resident (constant maps)
                pl.BlockSpec((1, _D0P), lambda b, k: (0, 0)),
                pl.BlockSpec((_D0P, _D1P), lambda b, k: (0, 0)),
                pl.BlockSpec((1, _D1P), lambda b, k: (0, 0)),
                pl.BlockSpec((_D1P, _D2P), lambda b, k: (0, 0)),
                pl.BlockSpec((1, _D2P), lambda b, k: (0, 0)),
                pl.BlockSpec((_D2P, _D3P), lambda b, k: (0, 0)),
                pl.BlockSpec((1, _D3P), lambda b, k: (0, 0)),
            ],
            out_specs=pl.BlockSpec((tb, _D3P), lambda b, k: (b, 0)),
            scratch_shapes=[pltpu.VMEM((tb, _D0P), jnp.float32)],
        ),
        compiler_params=pltpu.CompilerParams(
            # Both axes "arbitrary": sharding batch tiles across v7x's 2 TCs
            # would duplicate the wb stream (mem-bound => net loss); on
            # v5e/v6e parallel-vs-arbitrary is a measured no-op.
            dimension_semantics=("arbitrary", "arbitrary"),
            vmem_limit_bytes=vmem_limit,
        ),
    )(x_p, padded["wb"], padded["bb"],
      padded["w1"], padded["b1"],
      padded["w2"], padded["b2"],
      padded["w3"], padded["b3"])

    return out_padded[:B, :19]


def init_params(key, in_feat):
    """Deterministic parameter init mimicking nn.Linear (uniform +/- 1/sqrt(fan_in))."""
    def linear(k, fan_in, fan_out):
        kw, kb = jax.random.split(k)
        bound = 1.0 / jnp.sqrt(fan_in)
        w = jax.random.uniform(kw, (fan_in, fan_out), jnp.float32, -bound, bound)
        b = jax.random.uniform(kb, (fan_out,), jnp.float32, -bound, bound)
        return w, b

    k0, k1, k2, k3 = jax.random.split(key, 4)
    wb, bb = linear(k0, in_feat, 1000)   # stand-in baseline
    w1, b1 = linear(k1, 1000, 512)       # extra_fc1
    w2, b2 = linear(k2, 512, 128)        # extra_fc2
    w3, b3 = linear(k3, 128, 19)         # extra_fc3
    return {"wb": wb, "bb": bb, "w1": w1, "b1": b1,
            "w2": w2, "b2": b2, "w3": w3, "b3": b3}


def _reference_forward(x_nchw, params):
    """Pure-JAX reference mirroring the kernel's bf16 weight/activation storage
    (f32 accumulation), so the comparison stays tight despite bf16."""
    B = x_nchw.shape[0]
    q = lambda a: a.astype(jnp.bfloat16).astype(jnp.float32)
    x = q(x_nchw.reshape(B, -1))
    feat = x @ q(params["wb"]) + params["bb"]
    h1 = jax.nn.relu(q(feat) @ q(params["w1"]) + params["b1"])
    h2 = jax.nn.relu(q(h1) @ q(params["w2"]) + params["b2"])
    return q(h2) @ q(params["w3"]) + params["b3"]


if __name__ == "__main__":
    key = jax.random.PRNGKey(0)
    kx, kp = jax.random.split(key)

    # Small NCHW input consistent with an image-classification forward pass.
    B, C, H, W = 2, 4, 16, 16
    x = jax.random.normal(kx, (B, C, H, W), dtype=jnp.float32)

    params = init_params(kp, in_feat=C * H * W)
    padded = prepare_params(params, in_feat=C * H * W)   # one-time pad + bf16 cast

    out = model1_forward(x, padded)
    out = jax.block_until_ready(out)

    ref = _reference_forward(x, params)
    assert out.shape == (B, 19), out.shape
    assert jnp.allclose(out, ref, atol=2e-2, rtol=2e-2), "mismatch vs reference"

    print("KERNEL_OK")
</pallas_src>

<mosaic_0001>
module attributes {stable_mosaic.version = 11 : i64} {
  func.func @_mlp_head_kernel(%arg0: i32, %arg1: i32, %arg2: memref<8x1024xbf16, #tpu.memory_space<vmem>>, %arg3: memref<1024x1024xbf16, #tpu.memory_space<vmem>>, %arg4: memref<1x1024xf32, #tpu.memory_space<vmem>>, %arg5: memref<1024x512xbf16, #tpu.memory_space<vmem>>, %arg6: memref<1x512xf32, #tpu.memory_space<vmem>>, %arg7: memref<512x128xbf16, #tpu.memory_space<vmem>>, %arg8: memref<1x128xf32, #tpu.memory_space<vmem>>, %arg9: memref<128x128xbf16, #tpu.memory_space<vmem>>, %arg10: memref<1x128xf32, #tpu.memory_space<vmem>>, %arg11: memref<8x128xf32, #tpu.memory_space<vmem>>, %arg12: memref<8x1024xf32, #tpu.memory_space<vmem>>) attributes {dimension_semantics = [#tpu.dimension_semantics<arbitrary>, #tpu.dimension_semantics<arbitrary>], iteration_bounds = array<i64: 1, 1>, scalar_prefetch = 0 : i64, scratch_operands = 1 : i64, tpu.core_type = #tpu.core_type<tc>, window_params = [{transform_indices = @transform_0, window_bounds = array<i64: 8, 1024>}, {transform_indices = @transform_1, window_bounds = array<i64: 1024, 1024>}, {pipeline_mode = #tpu.pipeline_mode<synchronous>, transform_indices = @transform_2, window_bounds = array<i64: 1, 1024>}, {pipeline_mode = #tpu.pipeline_mode<synchronous>, transform_indices = @transform_3, window_bounds = array<i64: 1024, 512>}, {pipeline_mode = #tpu.pipeline_mode<synchronous>, transform_indices = @transform_4, window_bounds = array<i64: 1, 512>}, {pipeline_mode = #tpu.pipeline_mode<synchronous>, transform_indices = @transform_5, window_bounds = array<i64: 512, 128>}, {pipeline_mode = #tpu.pipeline_mode<synchronous>, transform_indices = @transform_6, window_bounds = array<i64: 1, 128>}, {pipeline_mode = #tpu.pipeline_mode<synchronous>, transform_indices = @transform_7, window_bounds = array<i64: 128, 128>}, {pipeline_mode = #tpu.pipeline_mode<synchronous>, transform_indices = @transform_8, window_bounds = array<i64: 1, 128>}, {transform_indices = @transform_9, window_bounds = array<i64: 8, 128>}]} {
    %c0_i32 = arith.constant 0 : i32
    %0 = arith.cmpi eq, %arg1, %c0_i32 : i32
    %1 = arith.extui %0 : i1 to i32
    %c0_i32_0 = arith.constant 0 : i32
    %2 = arith.cmpi ne, %1, %c0_i32_0 : i32
    scf.if %2 {
      %cst_10 = arith.constant 0.000000e+00 : f32
      %12 = vector.broadcast %cst_10 : f32 to vector<8x1024xf32>
      %c0_11 = arith.constant 0 : index
      %c0_12 = arith.constant 0 : index
      %13 = vector.load %arg12[%c0_11, %c0_12] : memref<8x1024xf32, #tpu.memory_space<vmem>>, vector<8x1024xf32>
      tpu.vector_store %arg12[%c0_11, %c0_12], %12 {strides = array<i32>} : memref<8x1024xf32, #tpu.memory_space<vmem>>, vector<8x1024xf32>,
    } else {
    }
    %c0 = arith.constant 0 : index
    %c0_1 = arith.constant 0 : index
    %3 = vector.load %arg12[%c0, %c0_1] : memref<8x1024xf32, #tpu.memory_space<vmem>>, vector<8x1024xf32>
    %c0_2 = arith.constant 0 : index
    %c0_3 = arith.constant 0 : index
    %4 = vector.load %arg2[%c0_2, %c0_3] : memref<8x1024xbf16, #tpu.memory_space<vmem>>, vector<8x1024xbf16>
    %c0_4 = arith.constant 0 : index
    %c0_5 = arith.constant 0 : index
    %5 = vector.load %arg3[%c0_4, %c0_5] : memref<1024x1024xbf16, #tpu.memory_space<vmem>>, vector<1024x1024xbf16>
    %cst = arith.constant dense<0.000000e+00> : vector<8x1024xf32>
    %6 = tpu.matmul %4, %5, %cst {dimension_numbers = #tpu.dot_dimension_numbers<[1], [0], [0], [1], [0, 0, 1, 1], [], []>} : vector<8x1024xbf16>, vector<1024x1024xbf16>, vector<8x1024xf32> -> vector<8x1024xf32>
    %7 = arith.addf %3, %6 : vector<8x1024xf32>
    %c0_6 = arith.constant 0 : index
    %c0_7 = arith.constant 0 : index
    %8 = vector.load %arg12[%c0_6, %c0_7] : memref<8x1024xf32, #tpu.memory_space<vmem>>, vector<8x1024xf32>
    tpu.vector_store %arg12[%c0_6, %c0_7], %7 {strides = array<i32>} : memref<8x1024xf32, #tpu.memory_space<vmem>>, vector<8x1024xf32>,
    %c0_i32_8 = arith.constant 0 : i32
    %9 = arith.cmpi eq, %arg1, %c0_i32_8 : i32
    %10 = arith.extui %9 : i1 to i32
    %c0_i32_9 = arith.constant 0 : i32
    %11 = arith.cmpi ne, %10, %c0_i32_9 : i32
    scf.if %11 {
      %c0_10 = arith.constant 0 : index
      %c0_11 = arith.constant 0 : index
      %12 = vector.load %arg12[%c0_10, %c0_11] : memref<8x1024xf32, #tpu.memory_space<vmem>>, vector<8x1024xf32>
      %c0_12 = arith.constant 0 : index
      %c0_13 = arith.constant 0 : index
      %13 = vector.load %arg4[%c0_12, %c0_13] : memref<1x1024xf32, #tpu.memory_space<vmem>>, vector<1x1024xf32>
      %14 = vector.broadcast %13 : vector<1x1024xf32> to vector<8x1024xf32>
      %15 = arith.addf %12, %14 : vector<8x1024xf32>
      %16 = arith.truncf %15 : vector<8x1024xf32> to vector<8x1024xbf16>
      %c0_14 = arith.constant 0 : index
      %c0_15 = arith.constant 0 : index
      %17 = vector.load %arg5[%c0_14, %c0_15] : memref<1024x512xbf16, #tpu.memory_space<vmem>>, vector<1024x512xbf16>
      %cst_16 = arith.constant dense<0.000000e+00> : vector<8x512xf32>
      %18 = tpu.matmul %16, %17, %cst_16 {dimension_numbers = #tpu.dot_dimension_numbers<[1], [0], [0], [1], [0, 0, 1, 1], [], []>} : vector<8x1024xbf16>, vector<1024x512xbf16>, vector<8x512xf32> -> vector<8x512xf32>
      %c0_17 = arith.constant 0 : index
      %c0_18 = arith.constant 0 : index
      %19 = vector.load %arg6[%c0_17, %c0_18] : memref<1x512xf32, #tpu.memory_space<vmem>>, vector<1x512xf32>
      %20 = vector.broadcast %19 : vector<1x512xf32> to vector<8x512xf32>
      %21 = arith.addf %18, %20 : vector<8x512xf32>
      %cst_19 = arith.constant 0.000000e+00 : f32
      %22 = vector.broadcast %cst_19 : f32 to vector<8x512xf32>
      %23 = arith.maximumf %21, %22 : vector<8x512xf32>
      %24 = arith.truncf %23 : vector<8x512xf32> to vector<8x512xbf16>
      %c0_20 = arith.constant 0 : index
      %c0_21 = arith.constant 0 : index
      %25 = vector.load %arg7[%c0_20, %c0_21] : memref<512x128xbf16, #tpu.memory_space<vmem>>, vector<512x128xbf16>
      %cst_22 = arith.constant dense<0.000000e+00> : vector<8x128xf32>
      %26 = tpu.matmul %24, %25, %cst_22 {dimension_numbers = #tpu.dot_dimension_numbers<[1], [0], [0], [1], [0, 0, 1, 1], [], []>} : vector<8x512xbf16>, vector<512x128xbf16>, vector<8x128xf32> -> vector<8x128xf32>
      %c0_23 = arith.constant 0 : index
      %c0_24 = arith.constant 0 : index
      %27 = vector.load %arg8[%c0_23, %c0_24] : memref<1x128xf32, #tpu.memory_space<vmem>>, vector<1x128xf32>
      %28 = vector.broadcast %27 : vector<1x128xf32> to vector<8x128xf32>
      %29 = arith.addf %26, %28 : vector<8x128xf32>
      %cst_25 = arith.constant 0.000000e+00 : f32
      %30 = vector.broadcast %cst_25 : f32 to vector<8x128xf32>
      %31 = arith.maximumf %29, %30 : vector<8x128xf32>
      %32 = arith.truncf %31 : vector<8x128xf32> to vector<8x128xbf16>
      %c0_26 = arith.constant 0 : index
      %c0_27 = arith.constant 0 : index
      %33 = vector.load %arg9[%c0_26, %c0_27] : memref<128x128xbf16, #tpu.memory_space<vmem>>, vector<128x128xbf16>
      %cst_28 = arith.constant dense<0.000000e+00> : vector<8x128xf32>
      %34 = tpu.matmul %32, %33, %cst_28 {dimension_numbers = #tpu.dot_dimension_numbers<[1], [0], [0], [1], [0, 0, 1, 1], [], []>} : vector<8x128xbf16>, vector<128x128xbf16>, vector<8x128xf32> -> vector<8x128xf32>
      %c0_29 = arith.constant 0 : index
      %c0_30 = arith.constant 0 : index
      %35 = vector.load %arg10[%c0_29, %c0_30] : memref<1x128xf32, #tpu.memory_space<vmem>>, vector<1x128xf32>
      %36 = vector.broadcast %35 : vector<1x128xf32> to vector<8x128xf32>
      %37 = arith.addf %34, %36 : vector<8x128xf32>
      %c0_31 = arith.constant 0 : index
      %c0_32 = arith.constant 0 : index
      %38 = vector.load %arg11[%c0_31, %c0_32] : memref<8x128xf32, #tpu.memory_space<vmem>>, vector<8x128xf32>
      tpu.vector_store %arg11[%c0_31, %c0_32], %37 {strides = array<i32>} : memref<8x128xf32, #tpu.memory_space<vmem>>, vector<8x128xf32>,
    } else {
    }
    return
  }
  func.func @transform_0(%arg0: i32, %arg1: i32) -> (i32, i32) {
    %c0_i32 = arith.constant 0 : i32
    return %arg0, %arg1 : i32, i32
  }
  func.func @transform_1(%arg0: i32, %arg1: i32) -> (i32, i32) {
    %c0_i32 = arith.constant 0 : i32
    %c0_i32_0 = arith.constant 0 : i32
    return %arg1, %c0_i32 : i32, i32
  }
  func.func @transform_2(%arg0: i32, %arg1: i32) -> (i32, i32) {
    %c0_i32 = arith.constant 0 : i32
    %c0_i32_0 = arith.constant 0 : i32
    %c0_i32_1 = arith.constant 0 : i32
    return %c0_i32, %c0_i32_0 : i32, i32
  }
  func.func @transform_3(%arg0: i32, %arg1: i32) -> (i32, i32) {
    %c0_i32 = arith.constant 0 : i32
    %c0_i32_0 = arith.constant 0 : i32
    %c0_i32_1 = arith.constant 0 : i32
    return %c0_i32, %c0_i32_0 : i32, i32
  }
  func.func @transform_4(%arg0: i32, %arg1: i32) -> (i32, i32) {
    %c0_i32 = arith.constant 0 : i32
    %c0_i32_0 = arith.constant 0 : i32
    %c0_i32_1 = arith.constant 0 : i32
    return %c0_i32, %c0_i32_0 : i32, i32
  }
  func.func @transform_5(%arg0: i32, %arg1: i32) -> (i32, i32) {
    %c0_i32 = arith.constant 0 : i32
    %c0_i32_0 = arith.constant 0 : i32
    %c0_i32_1 = arith.constant 0 : i32
    return %c0_i32, %c0_i32_0 : i32, i32
  }
  func.func @transform_6(%arg0: i32, %arg1: i32) -> (i32, i32) {
    %c0_i32 = arith.constant 0 : i32
    %c0_i32_0 = arith.constant 0 : i32
    %c0_i32_1 = arith.constant 0 : i32
    return %c0_i32, %c0_i32_0 : i32, i32
  }
  func.func @transform_7(%arg0: i32, %arg1: i32) -> (i32, i32) {
    %c0_i32 = arith.constant 0 : i32
    %c0_i32_0 = arith.constant 0 : i32
    %c0_i32_1 = arith.constant 0 : i32
    return %c0_i32, %c0_i32_0 : i32, i32
  }
  func.func @transform_8(%arg0: i32, %arg1: i32) -> (i32, i32) {
    %c0_i32 = arith.constant 0 : i32
    %c0_i32_0 = arith.constant 0 : i32
    %c0_i32_1 = arith.constant 0 : i32
    return %c0_i32, %c0_i32_0 : i32, i32
  }
  func.func @transform_9(%arg0: i32, %arg1: i32) -> (i32, i32) {
    %c0_i32 = arith.constant 0 : i32
    %c0_i32_0 = arith.constant 0 : i32
    return %arg0, %c0_i32 : i32, i32
  }
}

</mosaic_0001>

<llo_original>
// kernel: model1_forward.1
$region0: #{model1_forward.1}
  #allocation0 [shape = 'u32[]', space=smem, size = 0x4, offset = 0x4, fixed_abs, tag = 'smem constant byte address 0x4 - core index']
  #allocation1 [shape = 'u32[144,128]{1,0:T(1,128)}', space=vmem, size = 0x12000, scoped, tag = 'internal scratch']
  #allocation2 [shape = 'f32[8,1024]{1,0:T(8,128)}', space=vmem, size = 0x8000, scoped, tag = 'scratch operand']
  %s0 = inlined_call_operand.vmem [shape: bf16[8,1024], index: 0, kind: input, shape index: {}]
  %s1 = inlined_call_operand.hbm [shape: bf16[1024,1024], index: 1, kind: input, shape index: {}]
  %s2 = inlined_call_operand.hbm [shape: f32[1,1024], index: 2, kind: input, shape index: {}]
  %s3 = inlined_call_operand.hbm [shape: bf16[1024,512], index: 3, kind: input, shape index: {}]
  %s4 = inlined_call_operand.hbm [shape: f32[1,512], index: 4, kind: input, shape index: {}]
  %s5 = inlined_call_operand.hbm [shape: bf16[512,128], index: 5, kind: input, shape index: {}]
  %s6 = inlined_call_operand.hbm [shape: f32[1,128], index: 6, kind: input, shape index: {}]
  %s7 = inlined_call_operand.hbm [shape: bf16[128,128], index: 7, kind: input, shape index: {}]
  %s8 = inlined_call_operand.hbm [shape: f32[1,128], index: 8, kind: input, shape index: {}]
  %s9 = inlined_call_operand.vmem [shape: f32[8,128], index: 9, kind: output, shape index: {}]
  %s10 = sld [smem:[#allocation0]]
  $region86: #{model1_forward.1} parent=0
    _
  %s12 = ssub.s32 1, %s10
  %s13 = scalar_select 0, %s12, %s10
  $region1: #{model1_forward.1} parent=0
    #allocation3 [shape = 'u8[2097152]{0}', space=vmem, size = 0x200000, scoped, tag = 'input window, operand 1, single buffered']
    #allocation4 [shape = 's32[1]{0}', space=sflag, size = 0x4, scoped, tag = 'scoped memory for model1_forward.1']
    #allocation5 [shape = 'u8[4096]{0}', space=vmem, size = 0x1000, scoped, tag = 'input window, operand 2, single buffered']
    #allocation6 [shape = 's32[1]{0}', space=sflag, size = 0x4, scoped, tag = 'scoped memory for model1_forward.1']
    #allocation7 [shape = 'u8[1048576]{0}', space=vmem, size = 0x100000, scoped, tag = 'input window, operand 3, single buffered']
    #allocation8 [shape = 'u8[2048]{0}', space=vmem, size = 0x800, scoped, tag = 'input window, operand 4, single buffered']
    #allocation9 [shape = 's32[1]{0}', space=sflag, size = 0x4, scoped, tag = 'scoped memory for model1_forward.1']
    #allocation10 [shape = 'u8[131072]{0}', space=vmem, size = 0x20000, scoped, tag = 'input window, operand 5, single buffered']
    #allocation11 [shape = 'u8[512]{0}', space=vmem, size = 0x400, scoped, tag = 'input window, operand 6, single buffered']
    #allocation12 [shape = 's32[1]{0}', space=sflag, size = 0x4, scoped, tag = 'scoped memory for model1_forward.1']
    #allocation13 [shape = 'u8[32768]{0}', space=vmem, size = 0x8000, scoped, tag = 'input window, operand 7, single buffered']
    #allocation14 [shape = 'u8[512]{0}', space=vmem, size = 0x400, scoped, tag = 'input window, operand 8, single buffered']
    #allocation15 [shape = 's32[1]{0}', space=sflag, size = 0x4, scoped, tag = 'scoped memory for model1_forward.1']
    %14 = vsyncpa [#allocation4], 0
    %15 = vsyncpa [#allocation6], 0
    %16 = vsyncpa [#allocation9], 0
    %17 = vsyncpa [#allocation12], 0
    %18 = vsyncpa [#allocation15], 0
    // Predicated region
    $region2: #{model1_forward.1} parent=1 // pred_check
      _
    $region3: #{model1_forward.1} parent=1 // pred_check_branch
      %20 = sbr.rel (0) target = $region5
    $region4: #{model1_forward.1} parent=1 // pred_region
      _
    $region5: #{model1_forward.1} parent=1 // pred_fallthru
      _
    // Predicated region
    $region6: #{model1_forward.1} parent=1 // pred_check
      _
    $region7: #{model1_forward.1} parent=1 // pred_check_branch
      %22 = sbr.rel (0) target = $region9
    $region8: #{model1_forward.1} parent=1 // pred_region
      %s24 = ssub.s32 65536, 65536
      %25 = vsyncadd [#allocation4], %s24
      %s26 = sshll.u32 [#allocation3], 4
      %s27 = int_to_ptr.vmem [resolvable:$true] %s26
      %32 = dma.hbm_to_vmem [thread:$0]  %s1, 65536, %s27, [#allocation4], 512, 512, 32
    $region9: #{model1_forward.1} parent=1 // pred_fallthru
      _
    // Predicated region
    $region10: #{model1_forward.1} parent=1 // pred_check
      _
    $region11: #{model1_forward.1} parent=1 // pred_check_branch
      %34 = sbr.rel (0) target = $region13
    $region12: #{model1_forward.1} parent=1 // pred_region
      %s36 = ssub.s32 128, 128
      %37 = vsyncadd [#allocation6], %s36
      %s39 = sshll.u32 [#allocation5], 4
      %s40 = int_to_ptr.vmem [resolvable:$true] %s39
      %42 = dma.hbm_to_vmem [thread:$0]  %s2, 128, %s40, [#allocation6]
    $region13: #{model1_forward.1} parent=1 // pred_fallthru
      _
    // Predicated region
    $region14: #{model1_forward.1} parent=1 // pred_check
      _
    $region15: #{model1_forward.1} parent=1 // pred_check_branch
      %44 = sbr.rel (0) target = $region17
    $region16: #{model1_forward.1} parent=1 // pred_region
      %s46 = ssub.s32 32768, 32768
      %47 = vsyncadd [#allocation6], %s46
      %s48 = sshll.u32 [#allocation7], 4
      %s49 = int_to_ptr.vmem [resolvable:$true] %s48
      %54 = dma.hbm_to_vmem [thread:$0]  %s3, 32768, %s49, [#allocation6], 256, 256, 16
    $region17: #{model1_forward.1} parent=1 // pred_fallthru
      _
    // Predicated region
    $region18: #{model1_forward.1} parent=1 // pred_check
      _
    $region19: #{model1_forward.1} parent=1 // pred_check_branch
      %56 = sbr.rel (0) target = $region21
    $region20: #{model1_forward.1} parent=1 // pred_region
      %s58 = ssub.s32 64, 64
      %59 = vsyncadd [#allocation9], %s58
      %s61 = sshll.u32 [#allocation8], 4
      %s62 = int_to_ptr.vmem [resolvable:$true] %s61
      %64 = dma.hbm_to_vmem [thread:$0]  %s4, 64, %s62, [#allocation9]
    $region21: #{model1_forward.1} parent=1 // pred_fallthru
      _
    // Predicated region
    $region22: #{model1_forward.1} parent=1 // pred_check
      _
    $region23: #{model1_forward.1} parent=1 // pred_check_branch
      %66 = sbr.rel (0) target = $region25
    $region24: #{model1_forward.1} parent=1 // pred_region
      %s68 = ssub.s32 4096, 4096
      %69 = vsyncadd [#allocation9], %s68
      %s70 = sshll.u32 [#allocation10], 4
      %s71 = int_to_ptr.vmem [resolvable:$true] %s70
      %76 = dma.hbm_to_vmem [thread:$0]  %s5, 4096, %s71, [#allocation9], 64, 64, 4
    $region25: #{model1_forward.1} parent=1 // pred_fallthru
      _
    // Predicated region
    $region26: #{model1_forward.1} parent=1 // pred_check
      _
    $region27: #{model1_forward.1} parent=1 // pred_check_branch
      %78 = sbr.rel (0) target = $region29
    $region28: #{model1_forward.1} parent=1 // pred_region
      %s80 = ssub.s32 16, 16
      %81 = vsyncadd [#allocation12], %s80
      %s83 = sshll.u32 [#allocation11], 4
      %s84 = int_to_ptr.vmem [resolvable:$true] %s83
      %86 = dma.hbm_to_vmem [thread:$0]  %s6, 16, %s84, [#allocation12]
    $region29: #{model1_forward.1} parent=1 // pred_fallthru
      _
    // Predicated region
    $region30: #{model1_forward.1} parent=1 // pred_check
      _
    $region31: #{model1_forward.1} parent=1 // pred_check_branch
      %88 = sbr.rel (0) target = $region33
    $region32: #{model1_forward.1} parent=1 // pred_region
      %s90 = ssub.s32 1024, 1024
      %91 = vsyncadd [#allocation12], %s90
      %s92 = sshll.u32 [#allocation13], 4
      %s93 = int_to_ptr.vmem [resolvable:$true] %s92
      %98 = dma.hbm_to_vmem [thread:$0]  %s7, 1024, %s93, [#allocation12], 64, 64, 4
    $region33: #{model1_forward.1} parent=1 // pred_fallthru
      _
    // Predicated region
    $region34: #{model1_forward.1} parent=1 // pred_check
      _
    $region35: #{model1_forward.1} parent=1 // pred_check_branch
      %100 = sbr.rel (0) target = $region37
    $region36: #{model1_forward.1} parent=1 // pred_region
      %s102 = ssub.s32 16, 16
      %103 = vsyncadd [#allocation15], %s102
      %s105 = sshll.u32 [#allocation14], 4
      %s106 = int_to_ptr.vmem [resolvable:$true] %s105
      %108 = dma.hbm_to_vmem [thread:$0]  %s8, 16, %s106, [#allocation15]
    $region37: #{model1_forward.1} parent=1 // pred_fallthru
      _
    // Predicated region
    $region38: #{model1_forward.1} parent=1 // pred_check
      _
    $region39: #{model1_forward.1} parent=1 // pred_check_branch
      %110 = sbr.rel (0) target = $region41
    $region40: #{model1_forward.1} parent=1 // pred_region
      %111 = dma.done [#allocation4], 65536
    $region41: #{model1_forward.1} parent=1 // pred_fallthru
      _
    // Predicated region
    $region42: #{model1_forward.1} parent=1 // pred_check
      _
    $region43: #{model1_forward.1} parent=1 // pred_check_branch
      %113 = sbr.rel (0) target = $region45
    $region44: #{model1_forward.1} parent=1 // pred_region
      %114 = dma.done [#allocation6], 128
    $region45: #{model1_forward.1} parent=1 // pred_fallthru
      _
    // Predicated region
    $region46: #{model1_forward.1} parent=1 // pred_check
      _
    $region47: #{model1_forward.1} parent=1 // pred_check_branch
      %116 = sbr.rel (0) target = $region49
    $region48: #{model1_forward.1} parent=1 // pred_region
      %117 = dma.done [#allocation6], 32768
    $region49: #{model1_forward.1} parent=1 // pred_fallthru
      _
    // Predicated region
    $region50: #{model1_forward.1} parent=1 // pred_check
      _
    $region51: #{model1_forward.1} parent=1 // pred_check_branch
      %119 = sbr.rel (0) target = $region53
    $region52: #{model1_forward.1} parent=1 // pred_region
      %120 = dma.done [#allocation9], 64
    $region53: #{model1_forward.1} parent=1 // pred_fallthru
      _
    // Predicated region
    $region54: #{model1_forward.1} parent=1 // pred_check
      _
    $region55: #{model1_forward.1} parent=1 // pred_check_branch
      %122 = sbr.rel (0) target = $region57
    $region56: #{model1_forward.1} parent=1 // pred_region
      %123 = dma.done [#allocation9], 4096
    $region57: #{model1_forward.1} parent=1 // pred_fallthru
      _
    // Predicated region
    $region58: #{model1_forward.1} parent=1 // pred_check
      _
    $region59: #{model1_forward.1} parent=1 // pred_check_branch
      %125 = sbr.rel (0) target = $region61
    $region60: #{model1_forward.1} parent=1 // pred_region
      %126 = dma.done [#allocation12], 16
    $region61: #{model1_forward.1} parent=1 // pred_fallthru
      _
    // Predicated region
    $region62: #{model1_forward.1} parent=1 // pred_check
      _
    $region63: #{model1_forward.1} parent=1 // pred_check_branch
      %128 = sbr.rel (0) target = $region65
    $region64: #{model1_forward.1} parent=1 // pred_region
      %129 = dma.done [#allocation12], 1024
    $region65: #{model1_forward.1} parent=1 // pred_fallthru
      _
    // Predicated region
    $region66: #{model1_forward.1} parent=1 // pred_check
      _
    $region67: #{model1_forward.1} parent=1 // pred_check_branch
      %131 = sbr.rel (0) target = $region69
    $region68: #{model1_forward.1} parent=1 // pred_region
      %132 = dma.done [#allocation15], 16
    $region69: #{model1_forward.1} parent=1 // pred_fallthru
      _
    %p134 = scmp.eq.s32.totalorder 0, 0
    // Predicated region
    $region70: #{model1_forward.1} parent=1 // pred_check
      %p135 = pneg %p134
    $region71: #{model1_forward.1} parent=1 // pred_check_branch
      %137 = sbr.rel (%p135) target = $region73
    $region72: #{model1_forward.1} parent=1 // pred_region
      %138 = vst [vmem:[#allocation2] sm:$0xff] 0.0
      %139 = vst [vmem:[#allocation2 + $0x8] sm:$0xff] 0.0
      %140 = vst [vmem:[#allocation2 + $0x10] sm:$0xff] 0.0
      %141 = vst [vmem:[#allocation2 + $0x18] sm:$0xff] 0.0
      %142 = vst [vmem:[#allocation2 + $0x20] sm:$0xff] 0.0
      %143 = vst [vmem:[#allocation2 + $0x28] sm:$0xff] 0.0
      %144 = vst [vmem:[#allocation2 + $0x30] sm:$0xff] 0.0
      %145 = vst [vmem:[#allocation2 + $0x38] sm:$0xff] 0.0
    $region73: #{model1_forward.1} parent=1 // pred_fallthru
      _
    %v146 = vld [vmem:[#allocation2] sm:$0xff]
    %v147 = vld [vmem:[#allocation2 + $0x8] sm:$0xff]
    %v148 = vld [vmem:[#allocation2 + $0x10] sm:$0xff]
    %v149 = vld [vmem:[#allocation2 + $0x18] sm:$0xff]
    %v150 = vld [vmem:[#allocation2 + $0x20] sm:$0xff]
    %v151 = vld [vmem:[#allocation2 + $0x28] sm:$0xff]
    %v152 = vld [vmem:[#allocation2 + $0x30] sm:$0xff]
    %v153 = vld [vmem:[#allocation2 + $0x38] sm:$0xff]
    %v154 = vld [vmem:[%s0] sm:$0xff]
    %v155 = vld [vmem:[%s0 + $0x8] sm:$0xff]
    %v156 = vld [vmem:[%s0 + $0x10] sm:$0xff]
    %v157 = vld [vmem:[%s0 + $0x18] sm:$0xff]
    %v158 = vld [vmem:[#allocation3] sm:$0xff]
    %v159 = vld [vmem:[#allocation3 + $0x8] sm:$0xff]
    %v160 = vld [vmem:[#allocation3 + $0x10] sm:$0xff]
    %v161 = vld [vmem:[#allocation3 + $0x18] sm:$0xff]
    %v162 = vld [vmem:[#allocation3 + $0x20] sm:$0xff]
    %v163 = vld [vmem:[#allocation3 + $0x28] sm:$0xff]
    %v164 = vld [vmem:[#allocation3 + $0x30] sm:$0xff]
    %v165 = vld [vmem:[#allocation3 + $0x38] sm:$0xff]
    %v166 = vld [vmem:[#allocation3 + $0x40] sm:$0xff]
    %v167 = vld [vmem:[#allocation3 + $0x48] sm:$0xff]
    %v168 = vld [vmem:[#allocation3 + $0x50] sm:$0xff]
    %v169 = vld [vmem:[#allocation3 + $0x58] sm:$0xff]
    %v170 = vld [vmem:[#allocation3 + $0x60] sm:$0xff]
    %v171 = vld [vmem:[#allocation3 + $0x68] sm:$0xff]
    %v172 = vld [vmem:[#allocation3 + $0x70] sm:$0xff]
    %v173 = vld [vmem:[#allocation3 + $0x78] sm:$0xff]
    %v174 = vld [vmem:[#allocation3 + $0x80] sm:$0xff]
    %v175 = vld [vmem:[#allocation3 + $0x88] sm:$0xff]
    %v176 = vld [vmem:[#allocation3 + $0x90] sm:$0xff]
    %v177 = vld [vmem:[#allocation3 + $0x98] sm:$0xff]
    %v178 = vld [vmem:[#allocation3 + $0xa0] sm:$0xff]
    %v179 = vld [vmem:[#allocation3 + $0xa8] sm:$0xff]
    %v180 = vld [vmem:[#allocation3 + $0xb0] sm:$0xff]
    %v181 = vld [vmem:[#allocation3 + $0xb8] sm:$0xff]
    %v182 = vld [vmem:[#allocation3 + $0xc0] sm:$0xff]
    %v183 = vld [vmem:[#allocation3 + $0xc8] sm:$0xff]
    %v184 = vld [vmem:[#allocation3 + $0xd0] sm:$0xff]
    %v185 = vld [vmem:[#allocation3 + $0xd8] sm:$0xff]
    %v186 = vld [vmem:[#allocation3 + $0xe0] sm:$0xff]
    %v187 = vld [vmem:[#allocation3 + $0xe8] sm:$0xff]
    %v188 = vld [vmem:[#allocation3 + $0xf0] sm:$0xff]
    %v189 = vld [vmem:[#allocation3 + $0xf8] sm:$0xff]
    %v190 = vld [vmem:[#allocation3 + $0x100] sm:$0xff]
    %v191 = vld [vmem:[#allocation3 + $0x108] sm:$0xff]
    %v192 = vld [vmem:[#allocation3 + $0x110] sm:$0xff]
    %v193 = vld [vmem:[#allocation3 + $0x118] sm:$0xff]
    %v194 = vld [vmem:[#allocation3 + $0x120] sm:$0xff]
    %v195 = vld [vmem:[#allocation3 + $0x128] sm:$0xff]
    %v196 = vld [vmem:[#allocation3 + $0x130] sm:$0xff]
    %v197 = vld [vmem:[#allocation3 + $0x138] sm:$0xff]
    %v198 = vld [vmem:[#allocation3 + $0x140] sm:$0xff]
    %v199 = vld [vmem:[#allocation3 + $0x148] sm:$0xff]
    %v200 = vld [vmem:[#allocation3 + $0x150] sm:$0xff]
    %v201 = vld [vmem:[#allocation3 + $0x158] sm:$0xff]
    %v202 = vld [vmem:[#allocation3 + $0x160] sm:$0xff]
    %v203 = vld [vmem:[#allocation3 + $0x168] sm:$0xff]
    %v204 = vld [vmem:[#allocation3 + $0x170] sm:$0xff]
    %v205 = vld [vmem:[#allocation3 + $0x178] sm:$0xff]
    %v206 = vld [vmem:[#allocation3 + $0x180] sm:$0xff]
    %v207 = vld [vmem:[#allocation3 + $0x188] sm:$0xff]
    %v208 = vld [vmem:[#allocation3 + $0x190] sm:$0xff]
    %v209 = vld [vmem:[#allocation3 + $0x198] sm:$0xff]
    %v210 = vld [vmem:[#allocation3 + $0x1a0] sm:$0xff]
    %v211 = vld [vmem:[#allocation3 + $0x1a8] sm:$0xff]
    %v212 = vld [vmem:[#allocation3 + $0x1b0] sm:$0xff]
    %v213 = vld [vmem:[#allocation3 + $0x1b8] sm:$0xff]
    %v214 = vld [vmem:[#allocation3 + $0x1c0] sm:$0xff]
    %v215 = vld [vmem:[#allocation3 + $0x1c8] sm:$0xff]
    %v216 = vld [vmem:[#allocation3 + $0x1d0] sm:$0xff]
    %v217 = vld [vmem:[#allocation3 + $0x1d8] sm:$0xff]
    %v218 = vld [vmem:[#allocation3 + $0x1e0] sm:$0xff]
    %v219 = vld [vmem:[#allocation3 + $0x1e8] sm:$0xff]
    %v220 = vld [vmem:[#allocation3 + $0x1f0] sm:$0xff]
    %v221 = vld [vmem:[#allocation3 + $0x1f8] sm:$0xff]
    %v222 = vld [vmem:[#allocation3 + $0x200] sm:$0xff]
    %v223 = vld [vmem:[#allocation3 + $0x208] sm:$0xff]
    %v224 = vld [vmem:[#allocation3 + $0x210] sm:$0xff]
    %v225 = vld [vmem:[#allocation3 + $0x218] sm:$0xff]
    %v226 = vld [vmem:[#allocation3 + $0x220] sm:$0xff]
    %v227 = vld [vmem:[#allocation3 + $0x228] sm:$0xff]
    %v228 = vld [vmem:[#allocation3 + $0x230] sm:$0xff]
    %v229 = vld [vmem:[#allocation3 + $0x238] sm:$0xff]
    %v230 = vld [vmem:[#allocation3 + $0x240] sm:$0xff]
    %v231 = vld [vmem:[#allocation3 + $0x248] sm:$0xff]
    %v232 = vld [vmem:[#allocation3 + $0x250] sm:$0xff]
    %v233 = vld [vmem:[#allocation3 + $0x258] sm:$0xff]
    %v234 = vld [vmem:[#allocation3 + $0x260] sm:$0xff]
    %v235 = vld [vmem:[#allocation3 + $0x268] sm:$0xff]
    %v236 = vld [vmem:[#allocation3 + $0x270] sm:$0xff]
    %v237 = vld [vmem:[#allocation3 + $0x278] sm:$0xff]
    %v238 = vld [vmem:[#allocation3 + $0x280] sm:$0xff]
    %v239 = vld [vmem:[#allocation3 + $0x288] sm:$0xff]
    %v240 = vld [vmem:[#allocation3 + $0x290] sm:$0xff]
    %v241 = vld [vmem:[#allocation3 + $0x298] sm:$0xff]
    %v242 = vld [vmem:[#allocation3 + $0x2a0] sm:$0xff]
    %v243 = vld [vmem:[#allocation3 + $0x2a8] sm:$0xff]
    %v244 = vld [vmem:[#allocation3 + $0x2b0] sm:$0xff]
    %v245 = vld [vmem:[#allocation3 + $0x2b8] sm:$0xff]
    %v246 = vld [vmem:[#allocation3 + $0x2c0] sm:$0xff]
    %v247 = vld [vmem:[#allocation3 + $0x2c8] sm:$0xff]
    %v248 = vld [vmem:[#allocation3 + $0x2d0] sm:$0xff]
    %v249 = vld [vmem:[#allocation3 + $0x2d8] sm:$0xff]
    %v250 = vld [vmem:[#allocation3 + $0x2e0] sm:$0xff]
    %v251 = vld [vmem:[#allocation3 + $0x2e8] sm:$0xff]
    %v252 = vld [vmem:[#allocation3 + $0x2f0] sm:$0xff]
    %v253 = vld [vmem:[#allocation3 + $0x2f8] sm:$0xff]
    %v254 = vld [vmem:[#allocation3 + $0x300] sm:$0xff]
    %v255 = vld [vmem:[#allocation3 + $0x308] sm:$0xff]
    %v256 = vld [vmem:[#allocation3 + $0x310] sm:$0xff]
    %v257 = vld [vmem:[#allocation3 + $0x318] sm:$0xff]
    %v258 = vld [vmem:[#allocation3 + $0x320] sm:$0xff]
    %v259 = vld [vmem:[#allocation3 + $0x328] sm:$0xff]
    %v260 = vld [vmem:[#allocation3 + $0x330] sm:$0xff]
    %v261 = vld [vmem:[#allocation3 + $0x338] sm:$0xff]
    %v262 = vld [vmem:[#allocation3 + $0x340] sm:$0xff]
    %v263 = vld [vmem:[#allocation3 + $0x348] sm:$0xff]
    %v264 = vld [vmem:[#allocation3 + $0x350] sm:$0xff]
    %v265 = vld [vmem:[#allocation3 + $0x358] sm:$0xff]
    %v266 = vld [vmem:[#allocation3 + $0x360] sm:$0xff]
    %v267 = vld [vmem:[#allocation3 + $0x368] sm:$0xff]
    %v268 = vld [vmem:[#allocation3 + $0x370] sm:$0xff]
    %v269 = vld [vmem:[#allocation3 + $0x378] sm:$0xff]
    %v270 = vld [vmem:[#allocation3 + $0x380] sm:$0xff]
    %v271 = vld [vmem:[#allocation3 + $0x388] sm:$0xff]
    %v272 = vld [vmem:[#allocation3 + $0x390] sm:$0xff]
    %v273 = vld [vmem:[#allocation3 + $0x398] sm:$0xff]
    %v274 = vld [vmem:[#allocation3 + $0x3a0] sm:$0xff]
    %v275 = vld [vmem:[#allocation3 + $0x3a8] sm:$0xff]
    %v276 = vld [vmem:[#allocation3 + $0x3b0] sm:$0xff]
    %v277 = vld [vmem:[#allocation3 + $0x3b8] sm:$0xff]
    %v278 = vld [vmem:[#allocation3 + $0x3c0] sm:$0xff]
    %v279 = vld [vmem:[#allocation3 + $0x3c8] sm:$0xff]
    %v280 = vld [vmem:[#allocation3 + $0x3d0] sm:$0xff]
    %v281 = vld [vmem:[#allocation3 + $0x3d8] sm:$0xff]
    %v282 = vld [vmem:[#allocation3 + $0x3e0] sm:$0xff]
    %v283 = vld [vmem:[#allocation3 + $0x3e8] sm:$0xff]
    %v284 = vld [vmem:[#allocation3 + $0x3f0] sm:$0xff]
    %v285 = vld [vmem:[#allocation3 + $0x3f8] sm:$0xff]
    %v286 = vld [vmem:[#allocation3 + $0x400] sm:$0xff]
    %v287 = vld [vmem:[#allocation3 + $0x408] sm:$0xff]
    %v288 = vld [vmem:[#allocation3 + $0x410] sm:$0xff]
    %v289 = vld [vmem:[#allocation3 + $0x418] sm:$0xff]
    %v290 = vld [vmem:[#allocation3 + $0x420] sm:$0xff]
    %v291 = vld [vmem:[#allocation3 + $0x428] sm:$0xff]
    %v292 = vld [vmem:[#allocation3 + $0x430] sm:$0xff]
    %v293 = vld [vmem:[#allocation3 + $0x438] sm:$0xff]
    %v294 = vld [vmem:[#allocation3 + $0x440] sm:$0xff]
    %v295 = vld [vmem:[#allocation3 + $0x448] sm:$0xff]
    %v296 = vld [vmem:[#allocation3 + $0x450] sm:$0xff]
    %v297 = vld [vmem:[#allocation3 + $0x458] sm:$0xff]
    %v298 = vld [vmem:[#allocation3 + $0x460] sm:$0xff]
    %v299 = vld [vmem:[#allocation3 + $0x468] sm:$0xff]
    %v300 = vld [vmem:[#allocation3 + $0x470] sm:$0xff]
    %v301 = vld [vmem:[#allocation3 + $0x478] sm:$0xff]
    %v302 = vld [vmem:[#allocation3 + $0x480] sm:$0xff]
    %v303 = vld [vmem:[#allocation3 + $0x488] sm:$0xff]
    %v304 = vld [vmem:[#allocation3 + $0x490] sm:$0xff]
    %v305 = vld [vmem:[#allocation3 + $0x498] sm:$0xff]
    %v306 = vld [vmem:[#allocation3 + $0x4a0] sm:$0xff]
    %v307 = vld [vmem:[#allocation3 + $0x4a8] sm:$0xff]
    %v308 = vld [vmem:[#allocation3 + $0x4b0] sm:$0xff]
    %v309 = vld [vmem:[#allocation3 + $0x4b8] sm:$0xff]
    %v310 = vld [vmem:[#allocation3 + $0x4c0] sm:$0xff]
    %v311 = vld [vmem:[#allocation3 + $0x4c8] sm:$0xff]
    %v312 = vld [vmem:[#allocation3 + $0x4d0] sm:$0xff]
    %v313 = vld [vmem:[#allocation3 + $0x4d8] sm:$0xff]
    %v314 = vld [vmem:[#allocation3 + $0x4e0] sm:$0xff]
    %v315 = vld [vmem:[#allocation3 + $0x4e8] sm:$0xff]
    %v316 = vld [vmem:[#allocation3 + $0x4f0] sm:$0xff]
    %v317 = vld [vmem:[#allocation3 + $0x4f8] sm:$0xff]
    %v318 = vld [vmem:[#allocation3 + $0x500] sm:$0xff]
    %v319 = vld [vmem:[#allocation3 + $0x508] sm:$0xff]
    %v320 = vld [vmem:[#allocation3 + $0x510] sm:$0xff]
    %v321 = vld [vmem:[#allocation3 + $0x518] sm:$0xff]
    %v322 = vld [vmem:[#allocation3 + $0x520] sm:$0xff]
    %v323 = vld [vmem:[#allocation3 + $0x528] sm:$0xff]
    %v324 = vld [vmem:[#allocation3 + $0x530] sm:$0xff]
    %v325 = vld [vmem:[#allocation3 + $0x538] sm:$0xff]
    %v326 = vld [vmem:[#allocation3 + $0x540] sm:$0xff]
    %v327 = vld [vmem:[#allocation3 + $0x548] sm:$0xff]
    %v328 = vld [vmem:[#allocation3 + $0x550] sm:$0xff]
    %v329 = vld [vmem:[#allocation3 + $0x558] sm:$0xff]
    %v330 = vld [vmem:[#allocation3 + $0x560] sm:$0xff]
    %v331 = vld [vmem:[#allocation3 + $0x568] sm:$0xff]
    %v332 = vld [vmem:[#allocation3 + $0x570] sm:$0xff]
    %v333 = vld [vmem:[#allocation3 + $0x578] sm:$0xff]
    %v334 = vld [vmem:[#allocation3 + $0x580] sm:$0xff]
    %v335 = vld [vmem:[#allocation3 + $0x588] sm:$0xff]
    %v336 = vld [vmem:[#allocation3 + $0x590] sm:$0xff]
    %v337 = vld [vmem:[#allocation3 + $0x598] sm:$0xff]
    %v338 = vld [vmem:[#allocation3 + $0x5a0] sm:$0xff]
    %v339 = vld [vmem:[#allocation3 + $0x5a8] sm:$0xff]
    %v340 = vld [vmem:[#allocation3 + $0x5b0] sm:$0xff]
    %v341 = vld [vmem:[#allocation3 + $0x5b8] sm:$0xff]
    %v342 = vld [vmem:[#allocation3 + $0x5c0] sm:$0xff]
    %v343 = vld [vmem:[#allocation3 + $0x5c8] sm:$0xff]
    %v344 = vld [vmem:[#allocation3 + $0x5d0] sm:$0xff]
    %v345 = vld [vmem:[#allocation3 + $0x5d8] sm:$0xff]
    %v346 = vld [vmem:[#allocation3 + $0x5e0] sm:$0xff]
    %v347 = vld [vmem:[#allocation3 + $0x5e8] sm:$0xff]
    %v348 = vld [vmem:[#allocation3 + $0x5f0] sm:$0xff]
    %v349 = vld [vmem:[#allocation3 + $0x5f8] sm:$0xff]
    %v350 = vld [vmem:[#allocation3 + $0x600] sm:$0xff]
    %v351 = vld [vmem:[#allocation3 + $0x608] sm:$0xff]
    %v352 = vld [vmem:[#allocation3 + $0x610] sm:$0xff]
    %v353 = vld [vmem:[#allocation3 + $0x618] sm:$0xff]
    %v354 = vld [vmem:[#allocation3 + $0x620] sm:$0xff]
    %v355 = vld [vmem:[#allocation3 + $0x628] sm:$0xff]
    %v356 = vld [vmem:[#allocation3 + $0x630] sm:$0xff]
    %v357 = vld [vmem:[#allocation3 + $0x638] sm:$0xff]
    %v358 = vld [vmem:[#allocation3 + $0x640] sm:$0xff]
    %v359 = vld [vmem:[#allocation3 + $0x648] sm:$0xff]
    %v360 = vld [vmem:[#allocation3 + $0x650] sm:$0xff]
    %v361 = vld [vmem:[#allocation3 + $0x658] sm:$0xff]
    %v362 = vld [vmem:[#allocation3 + $0x660] sm:$0xff]
    %v363 = vld [vmem:[#allocation3 + $0x668] sm:$0xff]
    %v364 = vld [vmem:[#allocation3 + $0x670] sm:$0xff]
    %v365 = vld [vmem:[#allocation3 + $0x678] sm:$0xff]
    %v366 = vld [vmem:[#allocation3 + $0x680] sm:$0xff]
    %v367 = vld [vmem:[#allocation3 + $0x688] sm:$0xff]
    %v368 = vld [vmem:[#allocation3 + $0x690] sm:$0xff]
    %v369 = vld [vmem:[#allocation3 + $0x698] sm:$0xff]
    %v370 = vld [vmem:[#allocation3 + $0x6a0] sm:$0xff]
    %v371 = vld [vmem:[#allocation3 + $0x6a8] sm:$0xff]
    %v372 = vld [vmem:[#allocation3 + $0x6b0] sm:$0xff]
    %v373 = vld [vmem:[#allocation3 + $0x6b8] sm:$0xff]
    %v374 = vld [vmem:[#allocation3 + $0x6c0] sm:$0xff]
    %v375 = vld [vmem:[#allocation3 + $0x6c8] sm:$0xff]
    %v376 = vld [vmem:[#allocation3 + $0x6d0] sm:$0xff]
    %v377 = vld [vmem:[#allocation3 + $0x6d8] sm:$0xff]
    %v378 = vld [vmem:[#allocation3 + $0x6e0] sm:$0xff]
    %v379 = vld [vmem:[#allocation3 + $0x6e8] sm:$0xff]
    %v380 = vld [vmem:[#allocation3 + $0x6f0] sm:$0xff]
    %v381 = vld [vmem:[#allocation3 + $0x6f8] sm:$0xff]
    %v382 = vld [vmem:[#allocation3 + $0x700] sm:$0xff]
    %v383 = vld [vmem:[#allocation3 + $0x708] sm:$0xff]
    %v384 = vld [vmem:[#allocation3 + $0x710] sm:$0xff]
    %v385 = vld [vmem:[#allocation3 + $0x718] sm:$0xff]
    %v386 = vld [vmem:[#allocation3 + $0x720] sm:$0xff]
    %v387 = vld [vmem:[#allocation3 + $0x728] sm:$0xff]
    %v388 = vld [vmem:[#allocation3 + $0x730] sm:$0xff]
    %v389 = vld [vmem:[#allocation3 + $0x738] sm:$0xff]
    %v390 = vld [vmem:[#allocation3 + $0x740] sm:$0xff]
    %v391 = vld [vmem:[#allocation3 + $0x748] sm:$0xff]
    %v392 = vld [vmem:[#allocation3 + $0x750] sm:$0xff]
    %v393 = vld [vmem:[#allocation3 + $0x758] sm:$0xff]
    %v394 = vld [vmem:[#allocation3 + $0x760] sm:$0xff]
    %v395 = vld [vmem:[#allocation3 + $0x768] sm:$0xff]
    %v396 = vld [vmem:[#allocation3 + $0x770] sm:$0xff]
    %v397 = vld [vmem:[#allocation3 + $0x778] sm:$0xff]
    %v398 = vld [vmem:[#allocation3 + $0x780] sm:$0xff]
    %v399 = vld [vmem:[#allocation3 + $0x788] sm:$0xff]
    %v400 = vld [vmem:[#allocation3 + $0x790] sm:$0xff]
    %v401 = vld [vmem:[#allocation3 + $0x798] sm:$0xff]
    %v402 = vld [vmem:[#allocation3 + $0x7a0] sm:$0xff]
    %v403 = vld [vmem:[#allocation3 + $0x7a8] sm:$0xff]
    %v404 = vld [vmem:[#allocation3 + $0x7b0] sm:$0xff]
    %v405 = vld [vmem:[#allocation3 + $0x7b8] sm:$0xff]
    %v406 = vld [vmem:[#allocation3 + $0x7c0] sm:$0xff]
    %v407 = vld [vmem:[#allocation3 + $0x7c8] sm:$0xff]
    %v408 = vld [vmem:[#allocation3 + $0x7d0] sm:$0xff]
    %v409 = vld [vmem:[#allocation3 + $0x7d8] sm:$0xff]
    %v410 = vld [vmem:[#allocation3 + $0x7e0] sm:$0xff]
    %v411 = vld [vmem:[#allocation3 + $0x7e8] sm:$0xff]
    %v412 = vld [vmem:[#allocation3 + $0x7f0] sm:$0xff]
    %v413 = vld [vmem:[#allocation3 + $0x7f8] sm:$0xff]
    %v414 = vld [vmem:[#allocation3 + $0x800] sm:$0xff]
    %v415 = vld [vmem:[#allocation3 + $0x808] sm:$0xff]
    %v416 = vld [vmem:[#allocation3 + $0x810] sm:$0xff]
    %v417 = vld [vmem:[#allocation3 + $0x818] sm:$0xff]
    %v418 = vld [vmem:[#allocation3 + $0x820] sm:$0xff]
    %v419 = vld [vmem:[#allocation3 + $0x828] sm:$0xff]
    %v420 = vld [vmem:[#allocation3 + $0x830] sm:$0xff]
    %v421 = vld [vmem:[#allocation3 + $0x838] sm:$0xff]
    %v422 = vld [vmem:[#allocation3 + $0x840] sm:$0xff]
    %v423 = vld [vmem:[#allocation3 + $0x848] sm:$0xff]
    %v424 = vld [vmem:[#allocation3 + $0x850] sm:$0xff]
    %v425 = vld [vmem:[#allocation3 + $0x858] sm:$0xff]
    %v426 = vld [vmem:[#allocation3 + $0x860] sm:$0xff]
    %v427 = vld [vmem:[#allocation3 + $0x868] sm:$0xff]
    %v428 = vld [vmem:[#allocation3 + $0x870] sm:$0xff]
    %v429 = vld [vmem:[#allocation3 + $0x878] sm:$0xff]
    %v430 = vld [vmem:[#allocation3 + $0x880] sm:$0xff]
    %v431 = vld [vmem:[#allocation3 + $0x888] sm:$0xff]
    %v432 = vld [vmem:[#allocation3 + $0x890] sm:$0xff]
    %v433 = vld [vmem:[#allocation3 + $0x898] sm:$0xff]
    %v434 = vld [vmem:[#allocation3 + $0x8a0] sm:$0xff]
    %v435 = vld [vmem:[#allocation3 + $0x8a8] sm:$0xff]
    %v436 = vld [vmem:[#allocation3 + $0x8b0] sm:$0xff]
    %v437 = vld [vmem:[#allocation3 + $0x8b8] sm:$0xff]
    %v438 = vld [vmem:[#allocation3 + $0x8c0] sm:$0xff]
    %v439 = vld [vmem:[#allocation3 + $0x8c8] sm:$0xff]
    %v440 = vld [vmem:[#allocation3 + $0x8d0] sm:$0xff]
    %v441 = vld [vmem:[#allocation3 + $0x8d8] sm:$0xff]
    %v442 = vld [vmem:[#allocation3 + $0x8e0] sm:$0xff]
    %v443 = vld [vmem:[#allocation3 + $0x8e8] sm:$0xff]
    %v444 = vld [vmem:[#allocation3 + $0x8f0] sm:$0xff]
    %v445 = vld [vmem:[#allocation3 + $0x8f8] sm:$0xff]
    %v446 = vld [vmem:[#allocation3 + $0x900] sm:$0xff]
    %v447 = vld [vmem:[#allocation3 + $0x908] sm:$0xff]
    %v448 = vld [vmem:[#allocation3 + $0x910] sm:$0xff]
    %v449 = vld [vmem:[#allocation3 + $0x918] sm:$0xff]
    %v450 = vld [vmem:[#allocation3 + $0x920] sm:$0xff]
    %v451 = vld [vmem:[#allocation3 + $0x928] sm:$0xff]
    %v452 = vld [vmem:[#allocation3 + $0x930] sm:$0xff]
    %v453 = vld [vmem:[#allocation3 + $0x938] sm:$0xff]
    %v454 = vld [vmem:[#allocation3 + $0x940] sm:$0xff]
    %v455 = vld [vmem:[#allocation3 + $0x948] sm:$0xff]
    %v456 = vld [vmem:[#allocation3 + $0x950] sm:$0xff]
    %v457 = vld [vmem:[#allocation3 + $0x958] sm:$0xff]
    %v458 = vld [vmem:[#allocation3 + $0x960] sm:$0xff]
    %v459 = vld [vmem:[#allocation3 + $0x968] sm:$0xff]
    %v460 = vld [vmem:[#allocation3 + $0x970] sm:$0xff]
    %v461 = vld [vmem:[#allocation3 + $0x978] sm:$0xff]
    %v462 = vld [vmem:[#allocation3 + $0x980] sm:$0xff]
    %v463 = vld [vmem:[#allocation3 + $0x988] sm:$0xff]
    %v464 = vld [vmem:[#allocation3 + $0x990] sm:$0xff]
    %v465 = vld [vmem:[#allocation3 + $0x998] sm:$0xff]
    %v466 = vld [vmem:[#allocation3 + $0x9a0] sm:$0xff]
    %v467 = vld [vmem:[#allocation3 + $0x9a8] sm:$0xff]
    %v468 = vld [vmem:[#allocation3 + $0x9b0] sm:$0xff]
    %v469 = vld [vmem:[#allocation3 + $0x9b8] sm:$0xff]
    %v470 = vld [vmem:[#allocation3 + $0x9c0] sm:$0xff]
    %v471 = vld [vmem:[#allocation3 + $0x9c8] sm:$0xff]
    %v472 = vld [vmem:[#allocation3 + $0x9d0] sm:$0xff]
    %v473 = vld [vmem:[#allocation3 + $0x9d8] sm:$0xff]
    %v474 = vld [vmem:[#allocation3 + $0x9e0] sm:$0xff]
    %v475 = vld [vmem:[#allocation3 + $0x9e8] sm:$0xff]
    %v476 = vld [vmem:[#allocation3 + $0x9f0] sm:$0xff]
    %v477 = vld [vmem:[#allocation3 + $0x9f8] sm:$0xff]
    %v478 = vld [vmem:[#allocation3 + $0xa00] sm:$0xff]
    %v479 = vld [vmem:[#allocation3 + $0xa08] sm:$0xff]
    %v480 = vld [vmem:[#allocation3 + $0xa10] sm:$0xff]
    %v481 = vld [vmem:[#allocation3 + $0xa18] sm:$0xff]
    %v482 = vld [vmem:[#allocation3 + $0xa20] sm:$0xff]
    %v483 = vld [vmem:[#allocation3 + $0xa28] sm:$0xff]
    %v484 = vld [vmem:[#allocation3 + $0xa30] sm:$0xff]
    %v485 = vld [vmem:[#allocation3 + $0xa38] sm:$0xff]
    %v486 = vld [vmem:[#allocation3 + $0xa40] sm:$0xff]
    %v487 = vld [vmem:[#allocation3 + $0xa48] sm:$0xff]
    %v488 = vld [vmem:[#allocation3 + $0xa50] sm:$0xff]
    %v489 = vld [vmem:[#allocation3 + $0xa58] sm:$0xff]
    %v490 = vld [vmem:[#allocation3 + $0xa60] sm:$0xff]
    %v491 = vld [vmem:[#allocation3 + $0xa68] sm:$0xff]
    %v492 = vld [vmem:[#allocation3 + $0xa70] sm:$0xff]
    %v493 = vld [vmem:[#allocation3 + $0xa78] sm:$0xff]
    %v494 = vld [vmem:[#allocation3 + $0xa80] sm:$0xff]
    %v495 = vld [vmem:[#allocation3 + $0xa88] sm:$0xff]
    %v496 = vld [vmem:[#allocation3 + $0xa90] sm:$0xff]
    %v497 = vld [vmem:[#allocation3 + $0xa98] sm:$0xff]
    %v498 = vld [vmem:[#allocation3 + $0xaa0] sm:$0xff]
    %v499 = vld [vmem:[#allocation3 + $0xaa8] sm:$0xff]
    %v500 = vld [vmem:[#allocation3 + $0xab0] sm:$0xff]
    %v501 = vld [vmem:[#allocation3 + $0xab8] sm:$0xff]
    %v502 = vld [vmem:[#allocation3 + $0xac0] sm:$0xff]
    %v503 = vld [vmem:[#allocation3 + $0xac8] sm:$0xff]
    %v504 = vld [vmem:[#allocation3 + $0xad0] sm:$0xff]
    %v505 = vld [vmem:[#allocation3 + $0xad8] sm:$0xff]
    %v506 = vld [vmem:[#allocation3 + $0xae0] sm:$0xff]
    %v507 = vld [vmem:[#allocation3 + $0xae8] sm:$0xff]
    %v508 = vld [vmem:[#allocation3 + $0xaf0] sm:$0xff]
    %v509 = vld [vmem:[#allocation3 + $0xaf8] sm:$0xff]
    %v510 = vld [vmem:[#allocation3 + $0xb00] sm:$0xff]
    %v511 = vld [vmem:[#allocation3 + $0xb08] sm:$0xff]
    %v512 = vld [vmem:[#allocation3 + $0xb10] sm:$0xff]
    %v513 = vld [vmem:[#allocation3 + $0xb18] sm:$0xff]
    %v514 = vld [vmem:[#allocation3 + $0xb20] sm:$0xff]
    %v515 = vld [vmem:[#allocation3 + $0xb28] sm:$0xff]
    %v516 = vld [vmem:[#allocation3 + $0xb30] sm:$0xff]
    %v517 = vld [vmem:[#allocation3 + $0xb38] sm:$0xff]
    %v518 = vld [vmem:[#allocation3 + $0xb40] sm:$0xff]
    %v519 = vld [vmem:[#allocation3 + $0xb48] sm:$0xff]
    %v520 = vld [vmem:[#allocation3 + $0xb50] sm:$0xff]
    %v521 = vld [vmem:[#allocation3 + $0xb58] sm:$0xff]
    %v522 = vld [vmem:[#allocation3 + $0xb60] sm:$0xff]
    %v523 = vld [vmem:[#allocation3 + $0xb68] sm:$0xff]
    %v524 = vld [vmem:[#allocation3 + $0xb70] sm:$0xff]
    %v525 = vld [vmem:[#allocation3 + $0xb78] sm:$0xff]
    %v526 = vld [vmem:[#allocation3 + $0xb80] sm:$0xff]
    %v527 = vld [vmem:[#allocation3 + $0xb88] sm:$0xff]
    %v528 = vld [vmem:[#allocation3 + $0xb90] sm:$0xff]
    %v529 = vld [vmem:[#allocation3 + $0xb98] sm:$0xff]
    %v530 = vld [vmem:[#allocation3 + $0xba0] sm:$0xff]
    %v531 = vld [vmem:[#allocation3 + $0xba8] sm:$0xff]
    %v532 = vld [vmem:[#allocation3 + $0xbb0] sm:$0xff]
    %v533 = vld [vmem:[#allocation3 + $0xbb8] sm:$0xff]
    %v534 = vld [vmem:[#allocation3 + $0xbc0] sm:$0xff]
    %v535 = vld [vmem:[#allocation3 + $0xbc8] sm:$0xff]
    %v536 = vld [vmem:[#allocation3 + $0xbd0] sm:$0xff]
    %v537 = vld [vmem:[#allocation3 + $0xbd8] sm:$0xff]
    %v538 = vld [vmem:[#allocation3 + $0xbe0] sm:$0xff]
    %v539 = vld [vmem:[#allocation3 + $0xbe8] sm:$0xff]
    %v540 = vld [vmem:[#allocation3 + $0xbf0] sm:$0xff]
    %v541 = vld [vmem:[#allocation3 + $0xbf8] sm:$0xff]
    %v542 = vld [vmem:[#allocation3 + $0xc00] sm:$0xff]
    %v543 = vld [vmem:[#allocation3 + $0xc08] sm:$0xff]
    %v544 = vld [vmem:[#allocation3 + $0xc10] sm:$0xff]
    %v545 = vld [vmem:[#allocation3 + $0xc18] sm:$0xff]
    %v546 = vld [vmem:[#allocation3 + $0xc20] sm:$0xff]
    %v547 = vld [vmem:[#allocation3 + $0xc28] sm:$0xff]
    %v548 = vld [vmem:[#allocation3 + $0xc30] sm:$0xff]
    %v549 = vld [vmem:[#allocation3 + $0xc38] sm:$0xff]
    %v550 = vld [vmem:[#allocation3 + $0xc40] sm:$0xff]
    %v551 = vld [vmem:[#allocation3 + $0xc48] sm:$0xff]
    %v552 = vld [vmem:[#allocation3 + $0xc50] sm:$0xff]
    %v553 = vld [vmem:[#allocation3 + $0xc58] sm:$0xff]
    %v554 = vld [vmem:[#allocation3 + $0xc60] sm:$0xff]
    %v555 = vld [vmem:[#allocation3 + $0xc68] sm:$0xff]
    %v556 = vld [vmem:[#allocation3 + $0xc70] sm:$0xff]
    %v557 = vld [vmem:[#allocation3 + $0xc78] sm:$0xff]
    %v558 = vld [vmem:[#allocation3 + $0xc80] sm:$0xff]
    %v559 = vld [vmem:[#allocation3 + $0xc88] sm:$0xff]
    %v560 = vld [vmem:[#allocation3 + $0xc90] sm:$0xff]
    %v561 = vld [vmem:[#allocation3 + $0xc98] sm:$0xff]
    %v562 = vld [vmem:[#allocation3 + $0xca0] sm:$0xff]
    %v563 = vld [vmem:[#allocation3 + $0xca8] sm:$0xff]
    %v564 = vld [vmem:[#allocation3 + $0xcb0] sm:$0xff]
    %v565 = vld [vmem:[#allocation3 + $0xcb8] sm:$0xff]
    %v566 = vld [vmem:[#allocation3 + $0xcc0] sm:$0xff]
    %v567 = vld [vmem:[#allocation3 + $0xcc8] sm:$0xff]
    %v568 = vld [vmem:[#allocation3 + $0xcd0] sm:$0xff]
    %v569 = vld [vmem:[#allocation3 + $0xcd8] sm:$0xff]
    %v570 = vld [vmem:[#allocation3 + $0xce0] sm:$0xff]
    %v571 = vld [vmem:[#allocation3 + $0xce8] sm:$0xff]
    %v572 = vld [vmem:[#allocation3 + $0xcf0] sm:$0xff]
    %v573 = vld [vmem:[#allocation3 + $0xcf8] sm:$0xff]
    %v574 = vld [vmem:[#allocation3 + $0xd00] sm:$0xff]
    %v575 = vld [vmem:[#allocation3 + $0xd08] sm:$0xff]
    %v576 = vld [vmem:[#allocation3 + $0xd10] sm:$0xff]
    %v577 = vld [vmem:[#allocation3 + $0xd18] sm:$0xff]
    %v578 = vld [vmem:[#allocation3 + $0xd20] sm:$0xff]
    %v579 = vld [vmem:[#allocation3 + $0xd28] sm:$0xff]
    %v580 = vld [vmem:[#allocation3 + $0xd30] sm:$0xff]
    %v581 = vld [vmem:[#allocation3 + $0xd38] sm:$0xff]
    %v582 = vld [vmem:[#allocation3 + $0xd40] sm:$0xff]
    %v583 = vld [vmem:[#allocation3 + $0xd48] sm:$0xff]
    %v584 = vld [vmem:[#allocation3 + $0xd50] sm:$0xff]
    %v585 = vld [vmem:[#allocation3 + $0xd58] sm:$0xff]
    %v586 = vld [vmem:[#allocation3 + $0xd60] sm:$0xff]
    %v587 = vld [vmem:[#allocation3 + $0xd68] sm:$0xff]
    %v588 = vld [vmem:[#allocation3 + $0xd70] sm:$0xff]
    %v589 = vld [vmem:[#allocation3 + $0xd78] sm:$0xff]
    %v590 = vld [vmem:[#allocation3 + $0xd80] sm:$0xff]
    %v591 = vld [vmem:[#allocation3 + $0xd88] sm:$0xff]
    %v592 = vld [vmem:[#allocation3 + $0xd90] sm:$0xff]
    %v593 = vld [vmem:[#allocation3 + $0xd98] sm:$0xff]
    %v594 = vld [vmem:[#allocation3 + $0xda0] sm:$0xff]
    %v595 = vld [vmem:[#allocation3 + $0xda8] sm:$0xff]
    %v596 = vld [vmem:[#allocation3 + $0xdb0] sm:$0xff]
    %v597 = vld [vmem:[#allocation3 + $0xdb8] sm:$0xff]
    %v598 = vld [vmem:[#allocation3 + $0xdc0] sm:$0xff]
    %v599 = vld [vmem:[#allocation3 + $0xdc8] sm:$0xff]
    %v600 = vld [vmem:[#allocation3 + $0xdd0] sm:$0xff]
    %v601 = vld [vmem:[#allocation3 + $0xdd8] sm:$0xff]
    %v602 = vld [vmem:[#allocation3 + $0xde0] sm:$0xff]
    %v603 = vld [vmem:[#allocation3 + $0xde8] sm:$0xff]
    %v604 = vld [vmem:[#allocation3 + $0xdf0] sm:$0xff]
    %v605 = vld [vmem:[#allocation3 + $0xdf8] sm:$0xff]
    %v606 = vld [vmem:[#allocation3 + $0xe00] sm:$0xff]
    %v607 = vld [vmem:[#allocation3 + $0xe08] sm:$0xff]
    %v608 = vld [vmem:[#allocation3 + $0xe10] sm:$0xff]
    %v609 = vld [vmem:[#allocation3 + $0xe18] sm:$0xff]
    %v610 = vld [vmem:[#allocation3 + $0xe20] sm:$0xff]
    %v611 = vld [vmem:[#allocation3 + $0xe28] sm:$0xff]
    %v612 = vld [vmem:[#allocation3 + $0xe30] sm:$0xff]
    %v613 = vld [vmem:[#allocation3 + $0xe38] sm:$0xff]
    %v614 = vld [vmem:[#allocation3 + $0xe40] sm:$0xff]
    %v615 = vld [vmem:[#allocation3 + $0xe48] sm:$0xff]
    %v616 = vld [vmem:[#allocation3 + $0xe50] sm:$0xff]
    %v617 = vld [vmem:[#allocation3 + $0xe58] sm:$0xff]
    %v618 = vld [vmem:[#allocation3 + $0xe60] sm:$0xff]
    %v619 = vld [vmem:[#allocation3 + $0xe68] sm:$0xff]
    %v620 = vld [vmem:[#allocation3 + $0xe70] sm:$0xff]
    %v621 = vld [vmem:[#allocation3 + $0xe78] sm:$0xff]
    %v622 = vld [vmem:[#allocation3 + $0xe80] sm:$0xff]
    %v623 = vld [vmem:[#allocation3 + $0xe88] sm:$0xff]
    %v624 = vld [vmem:[#allocation3 + $0xe90] sm:$0xff]
    %v625 = vld [vmem:[#allocation3 + $0xe98] sm:$0xff]
    %v626 = vld [vmem:[#allocation3 + $0xea0] sm:$0xff]
    %v627 = vld [vmem:[#allocation3 + $0xea8] sm:$0xff]
    %v628 = vld [vmem:[#allocation3 + $0xeb0] sm:$0xff]
    %v629 = vld [vmem:[#allocation3 + $0xeb8] sm:$0xff]
    %v630 = vld [vmem:[#allocation3 + $0xec0] sm:$0xff]
    %v631 = vld [vmem:[#allocation3 + $0xec8] sm:$0xff]
    %v632 = vld [vmem:[#allocation3 + $0xed0] sm:$0xff]
    %v633 = vld [vmem:[#allocation3 + $0xed8] sm:$0xff]
    %v634 = vld [vmem:[#allocation3 + $0xee0] sm:$0xff]
    %v635 = vld [vmem:[#allocation3 + $0xee8] sm:$0xff]
    %v636 = vld [vmem:[#allocation3 + $0xef0] sm:$0xff]
    %v637 = vld [vmem:[#allocation3 + $0xef8] sm:$0xff]
    %v638 = vld [vmem:[#allocation3 + $0xf00] sm:$0xff]
    %v639 = vld [vmem:[#allocation3 + $0xf08] sm:$0xff]
    %v640 = vld [vmem:[#allocation3 + $0xf10] sm:$0xff]
    %v641 = vld [vmem:[#allocation3 + $0xf18] sm:$0xff]
    %v642 = vld [vmem:[#allocation3 + $0xf20] sm:$0xff]
    %v643 = vld [vmem:[#allocation3 + $0xf28] sm:$0xff]
    %v644 = vld [vmem:[#allocation3 + $0xf30] sm:$0xff]
    %v645 = vld [vmem:[#allocation3 + $0xf38] sm:$0xff]
    %v646 = vld [vmem:[#allocation3 + $0xf40] sm:$0xff]
    %v647 = vld [vmem:[#allocation3 + $0xf48] sm:$0xff]
    %v648 = vld [vmem:[#allocation3 + $0xf50] sm:$0xff]
    %v649 = vld [vmem:[#allocation3 + $0xf58] sm:$0xff]
    %v650 = vld [vmem:[#allocation3 + $0xf60] sm:$0xff]
    %v651 = vld [vmem:[#allocation3 + $0xf68] sm:$0xff]
    %v652 = vld [vmem:[#allocation3 + $0xf70] sm:$0xff]
    %v653 = vld [vmem:[#allocation3 + $0xf78] sm:$0xff]
    %v654 = vld [vmem:[#allocation3 + $0xf80] sm:$0xff]
    %v655 = vld [vmem:[#allocation3 + $0xf88] sm:$0xff]
    %v656 = vld [vmem:[#allocation3 + $0xf90] sm:$0xff]
    %v657 = vld [vmem:[#allocation3 + $0xf98] sm:$0xff]
    %v658 = vld [vmem:[#allocation3 + $0xfa0] sm:$0xff]
    %v659 = vld [vmem:[#allocation3 + $0xfa8] sm:$0xff]
    %v660 = vld [vmem:[#allocation3 + $0xfb0] sm:$0xff]
    %v661 = vld [vmem:[#allocation3 + $0xfb8] sm:$0xff]
    %v662 = vld [vmem:[#allocation3 + $0xfc0] sm:$0xff]
    %v663 = vld [vmem:[#allocation3 + $0xfc8] sm:$0xff]
    %v664 = vld [vmem:[#allocation3 + $0xfd0] sm:$0xff]
    %v665 = vld [vmem:[#allocation3 + $0xfd8] sm:$0xff]
    %v666 = vld [vmem:[#allocation3 + $0xfe0] sm:$0xff]
    %v667 = vld [vmem:[#allocation3 + $0xfe8] sm:$0xff]
    %v668 = vld [vmem:[#allocation3 + $0xff0] sm:$0xff]
    %v669 = vld [vmem:[#allocation3 + $0xff8] sm:$0xff]
    %v674 = vunpack.c.l.b16 %v154
    %v675 = vunpack.c.h.b16 %v154
    %v676 = vunpack.c.l.b16 %v155
    %v677 = vunpack.c.h.b16 %v155
    %v678 = vunpack.c.l.b16 %v156
    %v679 = vunpack.c.h.b16 %v156
    %v680 = vunpack.c.l.b16 %v157
    %v681 = vunpack.c.h.b16 %v157
    %v682 = vpack.c.b16 %v674, %v674
    %v683 = vpack.c.b16 %v675, %v675
    %v684 = vpack.c.b16 %v676, %v676
    %v685 = vpack.c.b16 %v677, %v677
    %v686 = vpack.c.b16 %v678, %v678
    %v687 = vpack.c.b16 %v679, %v679
    %v688 = vpack.c.b16 %v680, %v680
    %v689 = vpack.c.b16 %v681, %v681
    %v1210 = vunpack.c.l.b16 %v158
    %v1211 = vunpack.c.h.b16 %v158
    %v1212 = vunpack.c.l.b16 %v159
    %v1213 = vunpack.c.h.b16 %v159
    %v1214 = vunpack.c.l.b16 %v160
    %v1215 = vunpack.c.h.b16 %v160
    %v1216 = vunpack.c.l.b16 %v161
    %v1217 = vunpack.c.h.b16 %v161
    %v1218 = vunpack.c.l.b16 %v162
    %v1219 = vunpack.c.h.b16 %v162
    %v1220 = vunpack.c.l.b16 %v163
    %v1221 = vunpack.c.h.b16 %v163
    %v1222 = vunpack.c.l.b16 %v164
    %v1223 = vunpack.c.h.b16 %v164
    %v1224 = vunpack.c.l.b16 %v165
    %v1225 = vunpack.c.h.b16 %v165
    %v1226 = vunpack.c.l.b16 %v166
    %v1227 = vunpack.c.h.b16 %v166
    %v1228 = vunpack.c.l.b16 %v167
    %v1229 = vunpack.c.h.b16 %v167
    %v1230 = vunpack.c.l.b16 %v168
    %v1231 = vunpack.c.h.b16 %v168
    %v1232 = vunpack.c.l.b16 %v169
    %v1233 = vunpack.c.h.b16 %v169
    %v1234 = vunpack.c.l.b16 %v170
    %v1235 = vunpack.c.h.b16 %v170
    %v1236 = vunpack.c.l.b16 %v171
    %v1237 = vunpack.c.h.b16 %v171
    %v1238 = vunpack.c.l.b16 %v172
    %v1239 = vunpack.c.h.b16 %v172
    %v1240 = vunpack.c.l.b16 %v173
    %v1241 = vunpack.c.h.b16 %v173
    %v1242 = vunpack.c.l.b16 %v174
    %v1243 = vunpack.c.h.b16 %v174
    %v1244 = vunpack.c.l.b16 %v175
    %v1245 = vunpack.c.h.b16 %v175
    %v1246 = vunpack.c.l.b16 %v176
    %v1247 = vunpack.c.h.b16 %v176
    %v1248 = vunpack.c.l.b16 %v177
    %v1249 = vunpack.c.h.b16 %v177
    %v1250 = vunpack.c.l.b16 %v178
    %v1251 = vunpack.c.h.b16 %v178
    %v1252 = vunpack.c.l.b16 %v179
    %v1253 = vunpack.c.h.b16 %v179
    %v1254 = vunpack.c.l.b16 %v180
    %v1255 = vunpack.c.h.b16 %v180
    %v1256 = vunpack.c.l.b16 %v181
    %v1257 = vunpack.c.h.b16 %v181
    %v1258 = vunpack.c.l.b16 %v182
    %v1259 = vunpack.c.h.b16 %v182
    %v1260 = vunpack.c.l.b16 %v183
    %v1261 = vunpack.c.h.b16 %v183
    %v1262 = vunpack.c.l.b16 %v184
    %v1263 = vunpack.c.h.b16 %v184
    %v1264 = vunpack.c.l.b16 %v185
    %v1265 = vunpack.c.h.b16 %v185
    %v1266 = vunpack.c.l.b16 %v186
    %v1267 = vunpack.c.h.b16 %v186
    %v1268 = vunpack.c.l.b16 %v187
    %v1269 = vunpack.c.h.b16 %v187
    %v1270 = vunpack.c.l.b16 %v188
    %v1271 = vunpack.c.h.b16 %v188
    %v1272 = vunpack.c.l.b16 %v189
    %v1273 = vunpack.c.h.b16 %v189
    %v1274 = vunpack.c.l.b16 %v190
    %v1275 = vunpack.c.h.b16 %v190
    %v1276 = vunpack.c.l.b16 %v191
    %v1277 = vunpack.c.h.b16 %v191
    %v1278 = vunpack.c.l.b16 %v192
    %v1279 = vunpack.c.h.b16 %v192
    %v1280 = vunpack.c.l.b16 %v193
    %v1281 = vunpack.c.h.b16 %v193
    %v1282 = vunpack.c.l.b16 %v194
    %v1283 = vunpack.c.h.b16 %v194
    %v1284 = vunpack.c.l.b16 %v195
    %v1285 = vunpack.c.h.b16 %v195
    %v1286 = vunpack.c.l.b16 %v196
    %v1287 = vunpack.c.h.b16 %v196
    %v1288 = vunpack.c.l.b16 %v197
    %v1289 = vunpack.c.h.b16 %v197
    %v1290 = vunpack.c.l.b16 %v198
    %v1291 = vunpack.c.h.b16 %v198
    %v1292 = vunpack.c.l.b16 %v199
    %v1293 = vunpack.c.h.b16 %v199
    %v1294 = vunpack.c.l.b16 %v200
    %v1295 = vunpack.c.h.b16 %v200
    %v1296 = vunpack.c.l.b16 %v201
    %v1297 = vunpack.c.h.b16 %v201
    %v1298 = vunpack.c.l.b16 %v202
    %v1299 = vunpack.c.h.b16 %v202
    %v1300 = vunpack.c.l.b16 %v203
    %v1301 = vunpack.c.h.b16 %v203
    %v1302 = vunpack.c.l.b16 %v204
    %v1303 = vunpack.c.h.b16 %v204
    %v1304 = vunpack.c.l.b16 %v205
    %v1305 = vunpack.c.h.b16 %v205
    %v1306 = vunpack.c.l.b16 %v206
    %v1307 = vunpack.c.h.b16 %v206
    %v1308 = vunpack.c.l.b16 %v207
    %v1309 = vunpack.c.h.b16 %v207
    %v1310 = vunpack.c.l.b16 %v208
    %v1311 = vunpack.c.h.b16 %v208
    %v1312 = vunpack.c.l.b16 %v209
    %v1313 = vunpack.c.h.b16 %v209
    %v1314 = vunpack.c.l.b16 %v210
    %v1315 = vunpack.c.h.b16 %v210
    %v1316 = vunpack.c.l.b16 %v211
    %v1317 = vunpack.c.h.b16 %v211
    %v1318 = vunpack.c.l.b16 %v212
    %v1319 = vunpack.c.h.b16 %v212
    %v1320 = vunpack.c.l.b16 %v213
    %v1321 = vunpack.c.h.b16 %v213
    %v1322 = vunpack.c.l.b16 %v214
    %v1323 = vunpack.c.h.b16 %v214
    %v1324 = vunpack.c.l.b16 %v215
    %v1325 = vunpack.c.h.b16 %v215
    %v1326 = vunpack.c.l.b16 %v216
    %v1327 = vunpack.c.h.b16 %v216
    %v1328 = vunpack.c.l.b16 %v217
    %v1329 = vunpack.c.h.b16 %v217
    %v1330 = vunpack.c.l.b16 %v218
    %v1331 = vunpack.c.h.b16 %v218
    %v1332 = vunpack.c.l.b16 %v219
    %v1333 = vunpack.c.h.b16 %v219
    %v1334 = vunpack.c.l.b16 %v220
    %v1335 = vunpack.c.h.b16 %v220
    %v1336 = vunpack.c.l.b16 %v221
    %v1337 = vunpack.c.h.b16 %v221
    %v1338 = vunpack.c.l.b16 %v222
    %v1339 = vunpack.c.h.b16 %v222
    %v1340 = vunpack.c.l.b16 %v223
    %v1341 = vunpack.c.h.b16 %v223
    %v1342 = vunpack.c.l.b16 %v224
    %v1343 = vunpack.c.h.b16 %v224
    %v1344 = vunpack.c.l.b16 %v225
    %v1345 = vunpack.c.h.b16 %v225
    %v1346 = vunpack.c.l.b16 %v226
    %v1347 = vunpack.c.h.b16 %v226
    %v1348 = vunpack.c.l.b16 %v227
    %v1349 = vunpack.c.h.b16 %v227
    %v1350 = vunpack.c.l.b16 %v228
    %v1351 = vunpack.c.h.b16 %v228
    %v1352 = vunpack.c.l.b16 %v229
    %v1353 = vunpack.c.h.b16 %v229
    %v1354 = vunpack.c.l.b16 %v230
    %v1355 = vunpack.c.h.b16 %v230
    %v1356 = vunpack.c.l.b16 %v231
    %v1357 = vunpack.c.h.b16 %v231
    %v1358 = vunpack.c.l.b16 %v232
    %v1359 = vunpack.c.h.b16 %v232
    %v1360 = vunpack.c.l.b16 %v233
    %v1361 = vunpack.c.h.b16 %v233
    %v1362 = vunpack.c.l.b16 %v234
    %v1363 = vunpack.c.h.b16 %v234
    %v1364 = vunpack.c.l.b16 %v235
    %v1365 = vunpack.c.h.b16 %v235
    %v1366 = vunpack.c.l.b16 %v236
    %v1367 = vunpack.c.h.b16 %v236
    %v1368 = vunpack.c.l.b16 %v237
    %v1369 = vunpack.c.h.b16 %v237
    %v1370 = vunpack.c.l.b16 %v238
    %v1371 = vunpack.c.h.b16 %v238
    %v1372 = vunpack.c.l.b16 %v239
    %v1373 = vunpack.c.h.b16 %v239
    %v1374 = vunpack.c.l.b16 %v240
    %v1375 = vunpack.c.h.b16 %v240
    %v1376 = vunpack.c.l.b16 %v241
    %v1377 = vunpack.c.h.b16 %v241
    %v1378 = vunpack.c.l.b16 %v242
    %v1379 = vunpack.c.h.b16 %v242
    %v1380 = vunpack.c.l.b16 %v243
    %v1381 = vunpack.c.h.b16 %v243
    %v1382 = vunpack.c.l.b16 %v244
    %v1383 = vunpack.c.h.b16 %v244
    %v1384 = vunpack.c.l.b16 %v245
    %v1385 = vunpack.c.h.b16 %v245
    %v1386 = vunpack.c.l.b16 %v246
    %v1387 = vunpack.c.h.b16 %v246
    %v1388 = vunpack.c.l.b16 %v247
    %v1389 = vunpack.c.h.b16 %v247
    %v1390 = vunpack.c.l.b16 %v248
    %v1391 = vunpack.c.h.b16 %v248
    %v1392 = vunpack.c.l.b16 %v249
    %v1393 = vunpack.c.h.b16 %v249
    %v1394 = vunpack.c.l.b16 %v250
    %v1395 = vunpack.c.h.b16 %v250
    %v1396 = vunpack.c.l.b16 %v251
    %v1397 = vunpack.c.h.b16 %v251
    %v1398 = vunpack.c.l.b16 %v252
    %v1399 = vunpack.c.h.b16 %v252
    %v1400 = vunpack.c.l.b16 %v253
    %v1401 = vunpack.c.h.b16 %v253
    %v1402 = vunpack.c.l.b16 %v254
    %v1403 = vunpack.c.h.b16 %v254
    %v1404 = vunpack.c.l.b16 %v255
    %v1405 = vunpack.c.h.b16 %v255
    %v1406 = vunpack.c.l.b16 %v256
    %v1407 = vunpack.c.h.b16 %v256
    %v1408 = vunpack.c.l.b16 %v257
    %v1409 = vunpack.c.h.b16 %v257
    %v1410 = vunpack.c.l.b16 %v258
    %v1411 = vunpack.c.h.b16 %v258
    %v1412 = vunpack.c.l.b16 %v259
    %v1413 = vunpack.c.h.b16 %v259
    %v1414 = vunpack.c.l.b16 %v260
    %v1415 = vunpack.c.h.b16 %v260
    %v1416 = vunpack.c.l.b16 %v261
    %v1417 = vunpack.c.h.b16 %v261
    %v1418 = vunpack.c.l.b16 %v262
    %v1419 = vunpack.c.h.b16 %v262
    %v1420 = vunpack.c.l.b16 %v263
    %v1421 = vunpack.c.h.b16 %v263
    %v1422 = vunpack.c.l.b16 %v264
    %v1423 = vunpack.c.h.b16 %v264
    %v1424 = vunpack.c.l.b16 %v265
    %v1425 = vunpack.c.h.b16 %v265
    %v1426 = vunpack.c.l.b16 %v266
    %v1427 = vunpack.c.h.b16 %v266
    %v1428 = vunpack.c.l.b16 %v267
    %v1429 = vunpack.c.h.b16 %v267
    %v1430 = vunpack.c.l.b16 %v268
    %v1431 = vunpack.c.h.b16 %v268
    %v1432 = vunpack.c.l.b16 %v269
    %v1433 = vunpack.c.h.b16 %v269
    %v1434 = vunpack.c.l.b16 %v270
    %v1435 = vunpack.c.h.b16 %v270
    %v1436 = vunpack.c.l.b16 %v271
    %v1437 = vunpack.c.h.b16 %v271
    %v1438 = vunpack.c.l.b16 %v272
    %v1439 = vunpack.c.h.b16 %v272
    %v1440 = vunpack.c.l.b16 %v273
    %v1441 = vunpack.c.h.b16 %v273
    %v1442 = vunpack.c.l.b16 %v274
    %v1443 = vunpack.c.h.b16 %v274
    %v1444 = vunpack.c.l.b16 %v275
    %v1445 = vunpack.c.h.b16 %v275
    %v1446 = vunpack.c.l.b16 %v276
    %v1447 = vunpack.c.h.b16 %v276
    %v1448 = vunpack.c.l.b16 %v277
    %v1449 = vunpack.c.h.b16 %v277
    %v1450 = vunpack.c.l.b16 %v278
    %v1451 = vunpack.c.h.b16 %v278
    %v1452 = vunpack.c.l.b16 %v279
    %v1453 = vunpack.c.h.b16 %v279
    %v1454 = vunpack.c.l.b16 %v280
    %v1455 = vunpack.c.h.b16 %v280
    %v1456 = vunpack.c.l.b16 %v281
    %v1457 = vunpack.c.h.b16 %v281
    %v1458 = vunpack.c.l.b16 %v282
    %v1459 = vunpack.c.h.b16 %v282
    %v1460 = vunpack.c.l.b16 %v283
    %v1461 = vunpack.c.h.b16 %v283
    %v1462 = vunpack.c.l.b16 %v284
    %v1463 = vunpack.c.h.b16 %v284
    %v1464 = vunpack.c.l.b16 %v285
    %v1465 = vunpack.c.h.b16 %v285
    %v1466 = vunpack.c.l.b16 %v286
    %v1467 = vunpack.c.h.b16 %v286
    %v1468 = vunpack.c.l.b16 %v287
    %v1469 = vunpack.c.h.b16 %v287
    %v1470 = vunpack.c.l.b16 %v288
    %v1471 = vunpack.c.h.b16 %v288
    %v1472 = vunpack.c.l.b16 %v289
    %v1473 = vunpack.c.h.b16 %v289
    %v1474 = vunpack.c.l.b16 %v290
    %v1475 = vunpack.c.h.b16 %v290
    %v1476 = vunpack.c.l.b16 %v291
    %v1477 = vunpack.c.h.b16 %v291
    %v1478 = vunpack.c.l.b16 %v292
    %v1479 = vunpack.c.h.b16 %v292
    %v1480 = vunpack.c.l.b16 %v293
    %v1481 = vunpack.c.h.b16 %v293
    %v1482 = vunpack.c.l.b16 %v294
    %v1483 = vunpack.c.h.b16 %v294
    %v1484 = vunpack.c.l.b16 %v295
    %v1485 = vunpack.c.h.b16 %v295
    %v1486 = vunpack.c.l.b16 %v296
    %v1487 = vunpack.c.h.b16 %v296
    %v1488 = vunpack.c.l.b16 %v297
    %v1489 = vunpack.c.h.b16 %v297
    %v1490 = vunpack.c.l.b16 %v298
    %v1491 = vunpack.c.h.b16 %v298
    %v1492 = vunpack.c.l.b16 %v299
    %v1493 = vunpack.c.h.b16 %v299
    %v1494 = vunpack.c.l.b16 %v300
    %v1495 = vunpack.c.h.b16 %v300
    %v1496 = vunpack.c.l.b16 %v301
    %v1497 = vunpack.c.h.b16 %v301
    %v1498 = vunpack.c.l.b16 %v302
    %v1499 = vunpack.c.h.b16 %v302
    %v1500 = vunpack.c.l.b16 %v303
    %v1501 = vunpack.c.h.b16 %v303
    %v1502 = vunpack.c.l.b16 %v304
    %v1503 = vunpack.c.h.b16 %v304
    %v1504 = vunpack.c.l.b16 %v305
    %v1505 = vunpack.c.h.b16 %v305
    %v1506 = vunpack.c.l.b16 %v306
    %v1507 = vunpack.c.h.b16 %v306
    %v1508 = vunpack.c.l.b16 %v307
    %v1509 = vunpack.c.h.b16 %v307
    %v1510 = vunpack.c.l.b16 %v308
    %v1511 = vunpack.c.h.b16 %v308
    %v1512 = vunpack.c.l.b16 %v309
    %v1513 = vunpack.c.h.b16 %v309
    %v1514 = vunpack.c.l.b16 %v310
    %v1515 = vunpack.c.h.b16 %v310
    %v1516 = vunpack.c.l.b16 %v311
    %v1517 = vunpack.c.h.b16 %v311
    %v1518 = vunpack.c.l.b16 %v312
    %v1519 = vunpack.c.h.b16 %v312
    %v1520 = vunpack.c.l.b16 %v313
    %v1521 = vunpack.c.h.b16 %v313
    %v1522 = vunpack.c.l.b16 %v314
    %v1523 = vunpack.c.h.b16 %v314
    %v1524 = vunpack.c.l.b16 %v315
    %v1525 = vunpack.c.h.b16 %v315
    %v1526 = vunpack.c.l.b16 %v316
    %v1527 = vunpack.c.h.b16 %v316
    %v1528 = vunpack.c.l.b16 %v317
    %v1529 = vunpack.c.h.b16 %v317
    %v1530 = vunpack.c.l.b16 %v318
    %v1531 = vunpack.c.h.b16 %v318
    %v1532 = vunpack.c.l.b16 %v319
    %v1533 = vunpack.c.h.b16 %v319
    %v1534 = vunpack.c.l.b16 %v320
    %v1535 = vunpack.c.h.b16 %v320
    %v1536 = vunpack.c.l.b16 %v321
    %v1537 = vunpack.c.h.b16 %v321
    %v1538 = vunpack.c.l.b16 %v322
    %v1539 = vunpack.c.h.b16 %v322
    %v1540 = vunpack.c.l.b16 %v323
    %v1541 = vunpack.c.h.b16 %v323
    %v1542 = vunpack.c.l.b16 %v324
    %v1543 = vunpack.c.h.b16 %v324
    %v1544 = vunpack.c.l.b16 %v325
    %v1545 = vunpack.c.h.b16 %v325
    %v1546 = vunpack.c.l.b16 %v326
    %v1547 = vunpack.c.h.b16 %v326
    %v1548 = vunpack.c.l.b16 %v327
    %v1549 = vunpack.c.h.b16 %v327
    %v1550 = vunpack.c.l.b16 %v328
    %v1551 = vunpack.c.h.b16 %v328
    %v1552 = vunpack.c.l.b16 %v329
    %v1553 = vunpack.c.h.b16 %v329
    %v1554 = vunpack.c.l.b16 %v330
    %v1555 = vunpack.c.h.b16 %v330
    %v1556 = vunpack.c.l.b16 %v331
    %v1557 = vunpack.c.h.b16 %v331
    %v1558 = vunpack.c.l.b16 %v332
    %v1559 = vunpack.c.h.b16 %v332
    %v1560 = vunpack.c.l.b16 %v333
    %v1561 = vunpack.c.h.b16 %v333
    %v1562 = vunpack.c.l.b16 %v334
    %v1563 = vunpack.c.h.b16 %v334
    %v1564 = vunpack.c.l.b16 %v335
    %v1565 = vunpack.c.h.b16 %v335
    %v1566 = vunpack.c.l.b16 %v336
    %v1567 = vunpack.c.h.b16 %v336
    %v1568 = vunpack.c.l.b16 %v337
    %v1569 = vunpack.c.h.b16 %v337
    %v1570 = vunpack.c.l.b16 %v338
    %v1571 = vunpack.c.h.b16 %v338
    %v1572 = vunpack.c.l.b16 %v339
    %v1573 = vunpack.c.h.b16 %v339
    %v1574 = vunpack.c.l.b16 %v340
    %v1575 = vunpack.c.h.b16 %v340
    %v1576 = vunpack.c.l.b16 %v341
    %v1577 = vunpack.c.h.b16 %v341
    %v1578 = vunpack.c.l.b16 %v342
    %v1579 = vunpack.c.h.b16 %v342
    %v1580 = vunpack.c.l.b16 %v343
    %v1581 = vunpack.c.h.b16 %v343
    %v1582 = vunpack.c.l.b16 %v344
    %v1583 = vunpack.c.h.b16 %v344
    %v1584 = vunpack.c.l.b16 %v345
    %v1585 = vunpack.c.h.b16 %v345
    %v1586 = vunpack.c.l.b16 %v346
    %v1587 = vunpack.c.h.b16 %v346
    %v1588 = vunpack.c.l.b16 %v347
    %v1589 = vunpack.c.h.b16 %v347
    %v1590 = vunpack.c.l.b16 %v348
    %v1591 = vunpack.c.h.b16 %v348
    %v1592 = vunpack.c.l.b16 %v349
    %v1593 = vunpack.c.h.b16 %v349
    %v1594 = vunpack.c.l.b16 %v350
    %v1595 = vunpack.c.h.b16 %v350
    %v1596 = vunpack.c.l.b16 %v351
    %v1597 = vunpack.c.h.b16 %v351
    %v1598 = vunpack.c.l.b16 %v352
    %v1599 = vunpack.c.h.b16 %v352
    %v1600 = vunpack.c.l.b16 %v353
    %v1601 = vunpack.c.h.b16 %v353
    %v1602 = vunpack.c.l.b16 %v354
    %v1603 = vunpack.c.h.b16 %v354
    %v1604 = vunpack.c.l.b16 %v355
    %v1605 = vunpack.c.h.b16 %v355
    %v1606 = vunpack.c.l.b16 %v356
    %v1607 = vunpack.c.h.b16 %v356
    %v1608 = vunpack.c.l.b16 %v357
    %v1609 = vunpack.c.h.b16 %v357
    %v1610 = vunpack.c.l.b16 %v358
    %v1611 = vunpack.c.h.b16 %v358
    %v1612 = vunpack.c.l.b16 %v359
    %v1613 = vunpack.c.h.b16 %v359
    %v1614 = vunpack.c.l.b16 %v360
    %v1615 = vunpack.c.h.b16 %v360
    %v1616 = vunpack.c.l.b16 %v361
    %v1617 = vunpack.c.h.b16 %v361
    %v1618 = vunpack.c.l.b16 %v362
    %v1619 = vunpack.c.h.b16 %v362
    %v1620 = vunpack.c.l.b16 %v363
    %v1621 = vunpack.c.h.b16 %v363
    %v1622 = vunpack.c.l.b16 %v364
    %v1623 = vunpack.c.h.b16 %v364
    %v1624 = vunpack.c.l.b16 %v365
    %v1625 = vunpack.c.h.b16 %v365
    %v1626 = vunpack.c.l.b16 %v366
    %v1627 = vunpack.c.h.b16 %v366
    %v1628 = vunpack.c.l.b16 %v367
    %v1629 = vunpack.c.h.b16 %v367
    %v1630 = vunpack.c.l.b16 %v368
    %v1631 = vunpack.c.h.b16 %v368
    %v1632 = vunpack.c.l.b16 %v369
    %v1633 = vunpack.c.h.b16 %v369
    %v1634 = vunpack.c.l.b16 %v370
    %v1635 = vunpack.c.h.b16 %v370
    %v1636 = vunpack.c.l.b16 %v371
    %v1637 = vunpack.c.h.b16 %v371
    %v1638 = vunpack.c.l.b16 %v372
    %v1639 = vunpack.c.h.b16 %v372
    %v1640 = vunpack.c.l.b16 %v373
    %v1641 = vunpack.c.h.b16 %v373
    %v1642 = vunpack.c.l.b16 %v374
    %v1643 = vunpack.c.h.b16 %v374
    %v1644 = vunpack.c.l.b16 %v375
    %v1645 = vunpack.c.h.b16 %v375
    %v1646 = vunpack.c.l.b16 %v376
    %v1647 = vunpack.c.h.b16 %v376
    %v1648 = vunpack.c.l.b16 %v377
    %v1649 = vunpack.c.h.b16 %v377
    %v1650 = vunpack.c.l.b16 %v378
    %v1651 = vunpack.c.h.b16 %v378
    %v1652 = vunpack.c.l.b16 %v379
    %v1653 = vunpack.c.h.b16 %v379
    %v1654 = vunpack.c.l.b16 %v380
    %v1655 = vunpack.c.h.b16 %v380
    %v1656 = vunpack.c.l.b16 %v381
    %v1657 = vunpack.c.h.b16 %v381
    %v1658 = vunpack.c.l.b16 %v382
    %v1659 = vunpack.c.h.b16 %v382
    %v1660 = vunpack.c.l.b16 %v383
    %v1661 = vunpack.c.h.b16 %v383
    %v1662 = vunpack.c.l.b16 %v384
    %v1663 = vunpack.c.h.b16 %v384
    %v1664 = vunpack.c.l.b16 %v385
    %v1665 = vunpack.c.h.b16 %v385
    %v1666 = vunpack.c.l.b16 %v386
    %v1667 = vunpack.c.h.b16 %v386
    %v1668 = vunpack.c.l.b16 %v387
    %v1669 = vunpack.c.h.b16 %v387
    %v1670 = vunpack.c.l.b16 %v388
    %v1671 = vunpack.c.h.b16 %v388
    %v1672 = vunpack.c.l.b16 %v389
    %v1673 = vunpack.c.h.b16 %v389
    %v1674 = vunpack.c.l.b16 %v390
    %v1675 = vunpack.c.h.b16 %v390
    %v1676 = vunpack.c.l.b16 %v391
    %v1677 = vunpack.c.h.b16 %v391
    %v1678 = vunpack.c.l.b16 %v392
    %v1679 = vunpack.c.h.b16 %v392
    %v1680 = vunpack.c.l.b16 %v393
    %v1681 = vunpack.c.h.b16 %v393
    %v1682 = vunpack.c.l.b16 %v394
    %v1683 = vunpack.c.h.b16 %v394
    %v1684 = vunpack.c.l.b16 %v395
    %v1685 = vunpack.c.h.b16 %v395
    %v1686 = vunpack.c.l.b16 %v396
    %v1687 = vunpack.c.h.b16 %v396
    %v1688 = vunpack.c.l.b16 %v397
    %v1689 = vunpack.c.h.b16 %v397
    %v1690 = vunpack.c.l.b16 %v398
    %v1691 = vunpack.c.h.b16 %v398
    %v1692 = vunpack.c.l.b16 %v399
    %v1693 = vunpack.c.h.b16 %v399
    %v1694 = vunpack.c.l.b16 %v400
    %v1695 = vunpack.c.h.b16 %v400
    %v1696 = vunpack.c.l.b16 %v401
    %v1697 = vunpack.c.h.b16 %v401
    %v1698 = vunpack.c.l.b16 %v402
    %v1699 = vunpack.c.h.b16 %v402
    %v1700 = vunpack.c.l.b16 %v403
    %v1701 = vunpack.c.h.b16 %v403
    %v1702 = vunpack.c.l.b16 %v404
    %v1703 = vunpack.c.h.b16 %v404
    %v1704 = vunpack.c.l.b16 %v405
    %v1705 = vunpack.c.h.b16 %v405
    %v1706 = vunpack.c.l.b16 %v406
    %v1707 = vunpack.c.h.b16 %v406
    %v1708 = vunpack.c.l.b16 %v407
    %v1709 = vunpack.c.h.b16 %v407
    %v1710 = vunpack.c.l.b16 %v408
    %v1711 = vunpack.c.h.b16 %v408
    %v1712 = vunpack.c.l.b16 %v409
    %v1713 = vunpack.c.h.b16 %v409
    %v1714 = vunpack.c.l.b16 %v410
    %v1715 = vunpack.c.h.b16 %v410
    %v1716 = vunpack.c.l.b16 %v411
    %v1717 = vunpack.c.h.b16 %v411
    %v1718 = vunpack.c.l.b16 %v412
    %v1719 = vunpack.c.h.b16 %v412
    %v1720 = vunpack.c.l.b16 %v413
    %v1721 = vunpack.c.h.b16 %v413
    %v1722 = vunpack.c.l.b16 %v414
    %v1723 = vunpack.c.h.b16 %v414
    %v1724 = vunpack.c.l.b16 %v415
    %v1725 = vunpack.c.h.b16 %v415
    %v1726 = vunpack.c.l.b16 %v416
    %v1727 = vunpack.c.h.b16 %v416
    %v1728 = vunpack.c.l.b16 %v417
    %v1729 = vunpack.c.h.b16 %v417
    %v1730 = vunpack.c.l.b16 %v418
    %v1731 = vunpack.c.h.b16 %v418
    %v1732 = vunpack.c.l.b16 %v419
    %v1733 = vunpack.c.h.b16 %v419
    %v1734 = vunpack.c.l.b16 %v420
    %v1735 = vunpack.c.h.b16 %v420
    %v1736 = vunpack.c.l.b16 %v421
    %v1737 = vunpack.c.h.b16 %v421
    %v1738 = vunpack.c.l.b16 %v422
    %v1739 = vunpack.c.h.b16 %v422
    %v1740 = vunpack.c.l.b16 %v423
    %v1741 = vunpack.c.h.b16 %v423
    %v1742 = vunpack.c.l.b16 %v424
    %v1743 = vunpack.c.h.b16 %v424
    %v1744 = vunpack.c.l.b16 %v425
    %v1745 = vunpack.c.h.b16 %v425
    %v1746 = vunpack.c.l.b16 %v426
    %v1747 = vunpack.c.h.b16 %v426
    %v1748 = vunpack.c.l.b16 %v427
    %v1749 = vunpack.c.h.b16 %v427
    %v1750 = vunpack.c.l.b16 %v428
    %v1751 = vunpack.c.h.b16 %v428
    %v1752 = vunpack.c.l.b16 %v429
    %v1753 = vunpack.c.h.b16 %v429
    %v1754 = vunpack.c.l.b16 %v430
    %v1755 = vunpack.c.h.b16 %v430
    %v1756 = vunpack.c.l.b16 %v431
    %v1757 = vunpack.c.h.b16 %v431
    %v1758 = vunpack.c.l.b16 %v432
    %v1759 = vunpack.c.h.b16 %v432
    %v1760 = vunpack.c.l.b16 %v433
    %v1761 = vunpack.c.h.b16 %v433
    %v1762 = vunpack.c.l.b16 %v434
    %v1763 = vunpack.c.h.b16 %v434
    %v1764 = vunpack.c.l.b16 %v435
    %v1765 = vunpack.c.h.b16 %v435
    %v1766 = vunpack.c.l.b16 %v436
    %v1767 = vunpack.c.h.b16 %v436
    %v1768 = vunpack.c.l.b16 %v437
    %v1769 = vunpack.c.h.b16 %v437
    %v1770 = vunpack.c.l.b16 %v438
    %v1771 = vunpack.c.h.b16 %v438
    %v1772 = vunpack.c.l.b16 %v439
    %v1773 = vunpack.c.h.b16 %v439
    %v1774 = vunpack.c.l.b16 %v440
    %v1775 = vunpack.c.h.b16 %v440
    %v1776 = vunpack.c.l.b16 %v441
    %v1777 = vunpack.c.h.b16 %v441
    %v1778 = vunpack.c.l.b16 %v442
    %v1779 = vunpack.c.h.b16 %v442
    %v1780 = vunpack.c.l.b16 %v443
    %v1781 = vunpack.c.h.b16 %v443
    %v1782 = vunpack.c.l.b16 %v444
    %v1783 = vunpack.c.h.b16 %v444
    %v1784 = vunpack.c.l.b16 %v445
    %v1785 = vunpack.c.h.b16 %v445
    %v1786 = vunpack.c.l.b16 %v446
    %v1787 = vunpack.c.h.b16 %v446
    %v1788 = vunpack.c.l.b16 %v447
    %v1789 = vunpack.c.h.b16 %v447
    %v1790 = vunpack.c.l.b16 %v448
    %v1791 = vunpack.c.h.b16 %v448
    %v1792 = vunpack.c.l.b16 %v449
    %v1793 = vunpack.c.h.b16 %v449
    %v1794 = vunpack.c.l.b16 %v450
    %v1795 = vunpack.c.h.b16 %v450
    %v1796 = vunpack.c.l.b16 %v451
    %v1797 = vunpack.c.h.b16 %v451
    %v1798 = vunpack.c.l.b16 %v452
    %v1799 = vunpack.c.h.b16 %v452
    %v1800 = vunpack.c.l.b16 %v453
    %v1801 = vunpack.c.h.b16 %v453
    %v1802 = vunpack.c.l.b16 %v454
    %v1803 = vunpack.c.h.b16 %v454
    %v1804 = vunpack.c.l.b16 %v455
    %v1805 = vunpack.c.h.b16 %v455
    %v1806 = vunpack.c.l.b16 %v456
    %v1807 = vunpack.c.h.b16 %v456
    %v1808 = vunpack.c.l.b16 %v457
    %v1809 = vunpack.c.h.b16 %v457
    %v1810 = vunpack.c.l.b16 %v458
    %v1811 = vunpack.c.h.b16 %v458
    %v1812 = vunpack.c.l.b16 %v459
    %v1813 = vunpack.c.h.b16 %v459
    %v1814 = vunpack.c.l.b16 %v460
    %v1815 = vunpack.c.h.b16 %v460
    %v1816 = vunpack.c.l.b16 %v461
    %v1817 = vunpack.c.h.b16 %v461
    %v1818 = vunpack.c.l.b16 %v462
    %v1819 = vunpack.c.h.b16 %v462
    %v1820 = vunpack.c.l.b16 %v463
    %v1821 = vunpack.c.h.b16 %v463
    %v1822 = vunpack.c.l.b16 %v464
    %v1823 = vunpack.c.h.b16 %v464
    %v1824 = vunpack.c.l.b16 %v465
    %v1825 = vunpack.c.h.b16 %v465
    %v1826 = vunpack.c.l.b16 %v466
    %v1827 = vunpack.c.h.b16 %v466
    %v1828 = vunpack.c.l.b16 %v467
    %v1829 = vunpack.c.h.b16 %v467
    %v1830 = vunpack.c.l.b16 %v468
    %v1831 = vunpack.c.h.b16 %v468
    %v1832 = vunpack.c.l.b16 %v469
    %v1833 = vunpack.c.h.b16 %v469
    %v1834 = vunpack.c.l.b16 %v470
    %v1835 = vunpack.c.h.b16 %v470
    %v1836 = vunpack.c.l.b16 %v471
    %v1837 = vunpack.c.h.b16 %v471
    %v1838 = vunpack.c.l.b16 %v472
    %v1839 = vunpack.c.h.b16 %v472
    %v1840 = vunpack.c.l.b16 %v473
    %v1841 = vunpack.c.h.b16 %v473
    %v1842 = vunpack.c.l.b16 %v474
    %v1843 = vunpack.c.h.b16 %v474
    %v1844 = vunpack.c.l.b16 %v475
    %v1845 = vunpack.c.h.b16 %v475
    %v1846 = vunpack.c.l.b16 %v476
    %v1847 = vunpack.c.h.b16 %v476
    %v1848 = vunpack.c.l.b16 %v477
    %v1849 = vunpack.c.h.b16 %v477
    %v1850 = vunpack.c.l.b16 %v478
    %v1851 = vunpack.c.h.b16 %v478
    %v1852 = vunpack.c.l.b16 %v479
    %v1853 = vunpack.c.h.b16 %v479
    %v1854 = vunpack.c.l.b16 %v480
    %v1855 = vunpack.c.h.b16 %v480
    %v1856 = vunpack.c.l.b16 %v481
    %v1857 = vunpack.c.h.b16 %v481
    %v1858 = vunpack.c.l.b16 %v482
    %v1859 = vunpack.c.h.b16 %v482
    %v1860 = vunpack.c.l.b16 %v483
    %v1861 = vunpack.c.h.b16 %v483
    %v1862 = vunpack.c.l.b16 %v484
    %v1863 = vunpack.c.h.b16 %v484
    %v1864 = vunpack.c.l.b16 %v485
    %v1865 = vunpack.c.h.b16 %v485
    %v1866 = vunpack.c.l.b16 %v486
    %v1867 = vunpack.c.h.b16 %v486
    %v1868 = vunpack.c.l.b16 %v487
    %v1869 = vunpack.c.h.b16 %v487
    %v1870 = vunpack.c.l.b16 %v488
    %v1871 = vunpack.c.h.b16 %v488
    %v1872 = vunpack.c.l.b16 %v489
    %v1873 = vunpack.c.h.b16 %v489
    %v1874 = vunpack.c.l.b16 %v490
    %v1875 = vunpack.c.h.b16 %v490
    %v1876 = vunpack.c.l.b16 %v491
    %v1877 = vunpack.c.h.b16 %v491
    %v1878 = vunpack.c.l.b16 %v492
    %v1879 = vunpack.c.h.b16 %v492
    %v1880 = vunpack.c.l.b16 %v493
    %v1881 = vunpack.c.h.b16 %v493
    %v1882 = vunpack.c.l.b16 %v494
    %v1883 = vunpack.c.h.b16 %v494
    %v1884 = vunpack.c.l.b16 %v495
    %v1885 = vunpack.c.h.b16 %v495
    %v1886 = vunpack.c.l.b16 %v496
    %v1887 = vunpack.c.h.b16 %v496
    %v1888 = vunpack.c.l.b16 %v497
    %v1889 = vunpack.c.h.b16 %v497
    %v1890 = vunpack.c.l.b16 %v498
    %v1891 = vunpack.c.h.b16 %v498
    %v1892 = vunpack.c.l.b16 %v499
    %v1893 = vunpack.c.h.b16 %v499
    %v1894 = vunpack.c.l.b16 %v500
    %v1895 = vunpack.c.h.b16 %v500
    %v1896 = vunpack.c.l.b16 %v501
    %v1897 = vunpack.c.h.b16 %v501
    %v1898 = vunpack.c.l.b16 %v502
    %v1899 = vunpack.c.h.b16 %v502
    %v1900 = vunpack.c.l.b16 %v503
    %v1901 = vunpack.c.h.b16 %v503
    %v1902 = vunpack.c.l.b16 %v504
    %v1903 = vunpack.c.h.b16 %v504
    %v1904 = vunpack.c.l.b16 %v505
    %v1905 = vunpack.c.h.b16 %v505
    %v1906 = vunpack.c.l.b16 %v506
    %v1907 = vunpack.c.h.b16 %v506
    %v1908 = vunpack.c.l.b16 %v507
    %v1909 = vunpack.c.h.b16 %v507
    %v1910 = vunpack.c.l.b16 %v508
    %v1911 = vunpack.c.h.b16 %v508
    %v1912 = vunpack.c.l.b16 %v509
    %v1913 = vunpack.c.h.b16 %v509
    %v1914 = vunpack.c.l.b16 %v510
    %v1915 = vunpack.c.h.b16 %v510
    %v1916 = vunpack.c.l.b16 %v511
    %v1917 = vunpack.c.h.b16 %v511
    %v1918 = vunpack.c.l.b16 %v512
    %v1919 = vunpack.c.h.b16 %v512
    %v1920 = vunpack.c.l.b16 %v513
    %v1921 = vunpack.c.h.b16 %v513
    %v1922 = vunpack.c.l.b16 %v514
    %v1923 = vunpack.c.h.b16 %v514
    %v1924 = vunpack.c.l.b16 %v515
    %v1925 = vunpack.c.h.b16 %v515
    %v1926 = vunpack.c.l.b16 %v516
    %v1927 = vunpack.c.h.b16 %v516
    %v1928 = vunpack.c.l.b16 %v517
    %v1929 = vunpack.c.h.b16 %v517
    %v1930 = vunpack.c.l.b16 %v518
    %v1931 = vunpack.c.h.b16 %v518
    %v1932 = vunpack.c.l.b16 %v519
    %v1933 = vunpack.c.h.b16 %v519
    %v1934 = vunpack.c.l.b16 %v520
    %v1935 = vunpack.c.h.b16 %v520
    %v1936 = vunpack.c.l.b16 %v521
    %v1937 = vunpack.c.h.b16 %v521
    %v1938 = vunpack.c.l.b16 %v522
    %v1939 = vunpack.c.h.b16 %v522
    %v1940 = vunpack.c.l.b16 %v523
    %v1941 = vunpack.c.h.b16 %v523
    %v1942 = vunpack.c.l.b16 %v524
    %v1943 = vunpack.c.h.b16 %v524
    %v1944 = vunpack.c.l.b16 %v525
    %v1945 = vunpack.c.h.b16 %v525
    %v1946 = vunpack.c.l.b16 %v526
    %v1947 = vunpack.c.h.b16 %v526
    %v1948 = vunpack.c.l.b16 %v527
    %v1949 = vunpack.c.h.b16 %v527
    %v1950 = vunpack.c.l.b16 %v528
    %v1951 = vunpack.c.h.b16 %v528
    %v1952 = vunpack.c.l.b16 %v529
    %v1953 = vunpack.c.h.b16 %v529
    %v1954 = vunpack.c.l.b16 %v530
    %v1955 = vunpack.c.h.b16 %v530
    %v1956 = vunpack.c.l.b16 %v531
    %v1957 = vunpack.c.h.b16 %v531
    %v1958 = vunpack.c.l.b16 %v532
    %v1959 = vunpack.c.h.b16 %v532
    %v1960 = vunpack.c.l.b16 %v533
    %v1961 = vunpack.c.h.b16 %v533
    %v1962 = vunpack.c.l.b16 %v534
    %v1963 = vunpack.c.h.b16 %v534
    %v1964 = vunpack.c.l.b16 %v535
    %v1965 = vunpack.c.h.b16 %v535
    %v1966 = vunpack.c.l.b16 %v536
    %v1967 = vunpack.c.h.b16 %v536
    %v1968 = vunpack.c.l.b16 %v537
    %v1969 = vunpack.c.h.b16 %v537
    %v1970 = vunpack.c.l.b16 %v538
    %v1971 = vunpack.c.h.b16 %v538
    %v1972 = vunpack.c.l.b16 %v539
    %v1973 = vunpack.c.h.b16 %v539
    %v1974 = vunpack.c.l.b16 %v540
    %v1975 = vunpack.c.h.b16 %v540
    %v1976 = vunpack.c.l.b16 %v541
    %v1977 = vunpack.c.h.b16 %v541
    %v1978 = vunpack.c.l.b16 %v542
    %v1979 = vunpack.c.h.b16 %v542
    %v1980 = vunpack.c.l.b16 %v543
    %v1981 = vunpack.c.h.b16 %v543
    %v1982 = vunpack.c.l.b16 %v544
    %v1983 = vunpack.c.h.b16 %v544
    %v1984 = vunpack.c.l.b16 %v545
    %v1985 = vunpack.c.h.b16 %v545
    %v1986 = vunpack.c.l.b16 %v546
    %v1987 = vunpack.c.h.b16 %v546
    %v1988 = vunpack.c.l.b16 %v547
    %v1989 = vunpack.c.h.b16 %v547
    %v1990 = vunpack.c.l.b16 %v548
    %v1991 = vunpack.c.h.b16 %v548
    %v1992 = vunpack.c.l.b16 %v549
    %v1993 = vunpack.c.h.b16 %v549
    %v1994 = vunpack.c.l.b16 %v550
    %v1995 = vunpack.c.h.b16 %v550
    %v1996 = vunpack.c.l.b16 %v551
    %v1997 = vunpack.c.h.b16 %v551
    %v1998 = vunpack.c.l.b16 %v552
    %v1999 = vunpack.c.h.b16 %v552
    %v2000 = vunpack.c.l.b16 %v553
    %v2001 = vunpack.c.h.b16 %v553
    %v2002 = vunpack.c.l.b16 %v554
    %v2003 = vunpack.c.h.b16 %v554
    %v2004 = vunpack.c.l.b16 %v555
    %v2005 = vunpack.c.h.b16 %v555
    %v2006 = vunpack.c.l.b16 %v556
    %v2007 = vunpack.c.h.b16 %v556
    %v2008 = vunpack.c.l.b16 %v557
    %v2009 = vunpack.c.h.b16 %v557
    %v2010 = vunpack.c.l.b16 %v558
    %v2011 = vunpack.c.h.b16 %v558
    %v2012 = vunpack.c.l.b16 %v559
    %v2013 = vunpack.c.h.b16 %v559
    %v2014 = vunpack.c.l.b16 %v560
    %v2015 = vunpack.c.h.b16 %v560
    %v2016 = vunpack.c.l.b16 %v561
    %v2017 = vunpack.c.h.b16 %v561
    %v2018 = vunpack.c.l.b16 %v562
    %v2019 = vunpack.c.h.b16 %v562
    %v2020 = vunpack.c.l.b16 %v563
    %v2021 = vunpack.c.h.b16 %v563
    %v2022 = vunpack.c.l.b16 %v564
    %v2023 = vunpack.c.h.b16 %v564
    %v2024 = vunpack.c.l.b16 %v565
    %v2025 = vunpack.c.h.b16 %v565
    %v2026 = vunpack.c.l.b16 %v566
    %v2027 = vunpack.c.h.b16 %v566
    %v2028 = vunpack.c.l.b16 %v567
    %v2029 = vunpack.c.h.b16 %v567
    %v2030 = vunpack.c.l.b16 %v568
    %v2031 = vunpack.c.h.b16 %v568
    %v2032 = vunpack.c.l.b16 %v569
    %v2033 = vunpack.c.h.b16 %v569
    %v2034 = vunpack.c.l.b16 %v570
    %v2035 = vunpack.c.h.b16 %v570
    %v2036 = vunpack.c.l.b16 %v571
    %v2037 = vunpack.c.h.b16 %v571
    %v2038 = vunpack.c.l.b16 %v572
    %v2039 = vunpack.c.h.b16 %v572
    %v2040 = vunpack.c.l.b16 %v573
    %v2041 = vunpack.c.h.b16 %v573
    %v2042 = vunpack.c.l.b16 %v574
    %v2043 = vunpack.c.h.b16 %v574
    %v2044 = vunpack.c.l.b16 %v575
    %v2045 = vunpack.c.h.b16 %v575
    %v2046 = vunpack.c.l.b16 %v576
    %v2047 = vunpack.c.h.b16 %v576
    %v2048 = vunpack.c.l.b16 %v577
    %v2049 = vunpack.c.h.b16 %v577
    %v2050 = vunpack.c.l.b16 %v578
    %v2051 = vunpack.c.h.b16 %v578
    %v2052 = vunpack.c.l.b16 %v579
    %v2053 = vunpack.c.h.b16 %v579
    %v2054 = vunpack.c.l.b16 %v580
    %v2055 = vunpack.c.h.b16 %v580
    %v2056 = vunpack.c.l.b16 %v581
    %v2057 = vunpack.c.h.b16 %v581
    %v2058 = vunpack.c.l.b16 %v582
    %v2059 = vunpack.c.h.b16 %v582
    %v2060 = vunpack.c.l.b16 %v583
    %v2061 = vunpack.c.h.b16 %v583
    %v2062 = vunpack.c.l.b16 %v584
    %v2063 = vunpack.c.h.b16 %v584
    %v2064 = vunpack.c.l.b16 %v585
    %v2065 = vunpack.c.h.b16 %v585
    %v2066 = vunpack.c.l.b16 %v586
    %v2067 = vunpack.c.h.b16 %v586
    %v2068 = vunpack.c.l.b16 %v587
    %v2069 = vunpack.c.h.b16 %v587
    %v2070 = vunpack.c.l.b16 %v588
    %v2071 = vunpack.c.h.b16 %v588
    %v2072 = vunpack.c.l.b16 %v589
    %v2073 = vunpack.c.h.b16 %v589
    %v2074 = vunpack.c.l.b16 %v590
    %v2075 = vunpack.c.h.b16 %v590
    %v2076 = vunpack.c.l.b16 %v591
    %v2077 = vunpack.c.h.b16 %v591
    %v2078 = vunpack.c.l.b16 %v592
    %v2079 = vunpack.c.h.b16 %v592
    %v2080 = vunpack.c.l.b16 %v593
    %v2081 = vunpack.c.h.b16 %v593
    %v2082 = vunpack.c.l.b16 %v594
    %v2083 = vunpack.c.h.b16 %v594
    %v2084 = vunpack.c.l.b16 %v595
    %v2085 = vunpack.c.h.b16 %v595
    %v2086 = vunpack.c.l.b16 %v596
    %v2087 = vunpack.c.h.b16 %v596
    %v2088 = vunpack.c.l.b16 %v597
    %v2089 = vunpack.c.h.b16 %v597
    %v2090 = vunpack.c.l.b16 %v598
    %v2091 = vunpack.c.h.b16 %v598
    %v2092 = vunpack.c.l.b16 %v599
    %v2093 = vunpack.c.h.b16 %v599
    %v2094 = vunpack.c.l.b16 %v600
    %v2095 = vunpack.c.h.b16 %v600
    %v2096 = vunpack.c.l.b16 %v601
    %v2097 = vunpack.c.h.b16 %v601
    %v2098 = vunpack.c.l.b16 %v602
    %v2099 = vunpack.c.h.b16 %v602
    %v2100 = vunpack.c.l.b16 %v603
    %v2101 = vunpack.c.h.b16 %v603
    %v2102 = vunpack.c.l.b16 %v604
    %v2103 = vunpack.c.h.b16 %v604
    %v2104 = vunpack.c.l.b16 %v605
    %v2105 = vunpack.c.h.b16 %v605
    %v2106 = vunpack.c.l.b16 %v606
    %v2107 = vunpack.c.h.b16 %v606
    %v2108 = vunpack.c.l.b16 %v607
    %v2109 = vunpack.c.h.b16 %v607
    %v2110 = vunpack.c.l.b16 %v608
    %v2111 = vunpack.c.h.b16 %v608
    %v2112 = vunpack.c.l.b16 %v609
    %v2113 = vunpack.c.h.b16 %v609
    %v2114 = vunpack.c.l.b16 %v610
    %v2115 = vunpack.c.h.b16 %v610
    %v2116 = vunpack.c.l.b16 %v611
    %v2117 = vunpack.c.h.b16 %v611
    %v2118 = vunpack.c.l.b16 %v612
    %v2119 = vunpack.c.h.b16 %v612
    %v2120 = vunpack.c.l.b16 %v613
    %v2121 = vunpack.c.h.b16 %v613
    %v2122 = vunpack.c.l.b16 %v614
    %v2123 = vunpack.c.h.b16 %v614
    %v2124 = vunpack.c.l.b16 %v615
    %v2125 = vunpack.c.h.b16 %v615
    %v2126 = vunpack.c.l.b16 %v616
    %v2127 = vunpack.c.h.b16 %v616
    %v2128 = vunpack.c.l.b16 %v617
    %v2129 = vunpack.c.h.b16 %v617
    %v2130 = vunpack.c.l.b16 %v618
    %v2131 = vunpack.c.h.b16 %v618
    %v2132 = vunpack.c.l.b16 %v619
    %v2133 = vunpack.c.h.b16 %v619
    %v2134 = vunpack.c.l.b16 %v620
    %v2135 = vunpack.c.h.b16 %v620
    %v2136 = vunpack.c.l.b16 %v621
    %v2137 = vunpack.c.h.b16 %v621
    %v2138 = vunpack.c.l.b16 %v622
    %v2139 = vunpack.c.h.b16 %v622
    %v2140 = vunpack.c.l.b16 %v623
    %v2141 = vunpack.c.h.b16 %v623
    %v2142 = vunpack.c.l.b16 %v624
    %v2143 = vunpack.c.h.b16 %v624
    %v2144 = vunpack.c.l.b16 %v625
    %v2145 = vunpack.c.h.b16 %v625
    %v2146 = vunpack.c.l.b16 %v626
    %v2147 = vunpack.c.h.b16 %v626
    %v2148 = vunpack.c.l.b16 %v627
    %v2149 = vunpack.c.h.b16 %v627
    %v2150 = vunpack.c.l.b16 %v628
    %v2151 = vunpack.c.h.b16 %v628
    %v2152 = vunpack.c.l.b16 %v629
    %v2153 = vunpack.c.h.b16 %v629
    %v2154 = vunpack.c.l.b16 %v630
    %v2155 = vunpack.c.h.b16 %v630
    %v2156 = vunpack.c.l.b16 %v631
    %v2157 = vunpack.c.h.b16 %v631
    %v2158 = vunpack.c.l.b16 %v632
    %v2159 = vunpack.c.h.b16 %v632
    %v2160 = vunpack.c.l.b16 %v633
    %v2161 = vunpack.c.h.b16 %v633
    %v2162 = vunpack.c.l.b16 %v634
    %v2163 = vunpack.c.h.b16 %v634
    %v2164 = vunpack.c.l.b16 %v635
    %v2165 = vunpack.c.h.b16 %v635
    %v2166 = vunpack.c.l.b16 %v636
    %v2167 = vunpack.c.h.b16 %v636
    %v2168 = vunpack.c.l.b16 %v637
    %v2169 = vunpack.c.h.b16 %v637
    %v2170 = vunpack.c.l.b16 %v638
    %v2171 = vunpack.c.h.b16 %v638
    %v2172 = vunpack.c.l.b16 %v639
    %v2173 = vunpack.c.h.b16 %v639
    %v2174 = vunpack.c.l.b16 %v640
    %v2175 = vunpack.c.h.b16 %v640
    %v2176 = vunpack.c.l.b16 %v641
    %v2177 = vunpack.c.h.b16 %v641
    %v2178 = vunpack.c.l.b16 %v642
    %v2179 = vunpack.c.h.b16 %v642
    %v2180 = vunpack.c.l.b16 %v643
    %v2181 = vunpack.c.h.b16 %v643
    %v2182 = vunpack.c.l.b16 %v644
    %v2183 = vunpack.c.h.b16 %v644
    %v2184 = vunpack.c.l.b16 %v645
    %v2185 = vunpack.c.h.b16 %v645
    %v2186 = vunpack.c.l.b16 %v646
    %v2187 = vunpack.c.h.b16 %v646
    %v2188 = vunpack.c.l.b16 %v647
    %v2189 = vunpack.c.h.b16 %v647
    %v2190 = vunpack.c.l.b16 %v648
    %v2191 = vunpack.c.h.b16 %v648
    %v2192 = vunpack.c.l.b16 %v649
    %v2193 = vunpack.c.h.b16 %v649
    %v2194 = vunpack.c.l.b16 %v650
    %v2195 = vunpack.c.h.b16 %v650
    %v2196 = vunpack.c.l.b16 %v651
    %v2197 = vunpack.c.h.b16 %v651
    %v2198 = vunpack.c.l.b16 %v652
    %v2199 = vunpack.c.h.b16 %v652
    %v2200 = vunpack.c.l.b16 %v653
    %v2201 = vunpack.c.h.b16 %v653
    %v2202 = vunpack.c.l.b16 %v654
    %v2203 = vunpack.c.h.b16 %v654
    %v2204 = vunpack.c.l.b16 %v655
    %v2205 = vunpack.c.h.b16 %v655
    %v2206 = vunpack.c.l.b16 %v656
    %v2207 = vunpack.c.h.b16 %v656
    %v2208 = vunpack.c.l.b16 %v657
    %v2209 = vunpack.c.h.b16 %v657
    %v2210 = vunpack.c.l.b16 %v658
    %v2211 = vunpack.c.h.b16 %v658
    %v2212 = vunpack.c.l.b16 %v659
    %v2213 = vunpack.c.h.b16 %v659
    %v2214 = vunpack.c.l.b16 %v660
    %v2215 = vunpack.c.h.b16 %v660
    %v2216 = vunpack.c.l.b16 %v661
    %v2217 = vunpack.c.h.b16 %v661
    %v2218 = vunpack.c.l.b16 %v662
    %v2219 = vunpack.c.h.b16 %v662
    %v2220 = vunpack.c.l.b16 %v663
    %v2221 = vunpack.c.h.b16 %v663
    %v2222 = vunpack.c.l.b16 %v664
    %v2223 = vunpack.c.h.b16 %v664
    %v2224 = vunpack.c.l.b16 %v665
    %v2225 = vunpack.c.h.b16 %v665
    %v2226 = vunpack.c.l.b16 %v666
    %v2227 = vunpack.c.h.b16 %v666
    %v2228 = vunpack.c.l.b16 %v667
    %v2229 = vunpack.c.h.b16 %v667
    %v2230 = vunpack.c.l.b16 %v668
    %v2231 = vunpack.c.h.b16 %v668
    %v2232 = vunpack.c.l.b16 %v669
    %v2233 = vunpack.c.h.b16 %v669
    %v2234 = vpack.c.b16 %v1218, %v1210
    %v2235 = vpack.c.b16 %v1219, %v1211
    %v2236 = vpack.c.b16 %v1220, %v1212
    %v2237 = vpack.c.b16 %v1221, %v1213
    %v2238 = vpack.c.b16 %v1222, %v1214
    %v2239 = vpack.c.b16 %v1223, %v1215
    %v2240 = vpack.c.b16 %v1224, %v1216
    %v2241 = vpack.c.b16 %v1225, %v1217
    %v2242 = vpack.c.b16 %v1234, %v1226
    %v2243 = vpack.c.b16 %v1235, %v1227
    %v2244 = vpack.c.b16 %v1236, %v1228
    %v2245 = vpack.c.b16 %v1237, %v1229
    %v2246 = vpack.c.b16 %v1238, %v1230
    %v2247 = vpack.c.b16 %v1239, %v1231
    %v2248 = vpack.c.b16 %v1240, %v1232
    %v2249 = vpack.c.b16 %v1241, %v1233
    %v2250 = vpack.c.b16 %v1250, %v1242
    %v2251 = vpack.c.b16 %v1251, %v1243
    %v2252 = vpack.c.b16 %v1252, %v1244
    %v2253 = vpack.c.b16 %v1253, %v1245
    %v2254 = vpack.c.b16 %v1254, %v1246
    %v2255 = vpack.c.b16 %v1255, %v1247
    %v2256 = vpack.c.b16 %v1256, %v1248
    %v2257 = vpack.c.b16 %v1257, %v1249
    %v2258 = vpack.c.b16 %v1266, %v1258
    %v2259 = vpack.c.b16 %v1267, %v1259
    %v2260 = vpack.c.b16 %v1268, %v1260
    %v2261 = vpack.c.b16 %v1269, %v1261
    %v2262 = vpack.c.b16 %v1270, %v1262
    %v2263 = vpack.c.b16 %v1271, %v1263
    %v2264 = vpack.c.b16 %v1272, %v1264
    %v2265 = vpack.c.b16 %v1273, %v1265
    %v2266 = vpack.c.b16 %v1282, %v1274
    %v2267 = vpack.c.b16 %v1283, %v1275
    %v2268 = vpack.c.b16 %v1284, %v1276
    %v2269 = vpack.c.b16 %v1285, %v1277
    %v2270 = vpack.c.b16 %v1286, %v1278
    %v2271 = vpack.c.b16 %v1287, %v1279
    %v2272 = vpack.c.b16 %v1288, %v1280
    %v2273 = vpack.c.b16 %v1289, %v1281
    %v2274 = vpack.c.b16 %v1298, %v1290
    %v2275 = vpack.c.b16 %v1299, %v1291
    %v2276 = vpack.c.b16 %v1300, %v1292
    %v2277 = vpack.c.b16 %v1301, %v1293
    %v2278 = vpack.c.b16 %v1302, %v1294
    %v2279 = vpack.c.b16 %v1303, %v1295
    %v2280 = vpack.c.b16 %v1304, %v1296
    %v2281 = vpack.c.b16 %v1305, %v1297
    %v2282 = vpack.c.b16 %v1314, %v1306
    %v2283 = vpack.c.b16 %v1315, %v1307
    %v2284 = vpack.c.b16 %v1316, %v1308
    %v2285 = vpack.c.b16 %v1317, %v1309
    %v2286 = vpack.c.b16 %v1318, %v1310
    %v2287 = vpack.c.b16 %v1319, %v1311
    %v2288 = vpack.c.b16 %v1320, %v1312
    %v2289 = vpack.c.b16 %v1321, %v1313
    %v2290 = vpack.c.b16 %v1330, %v1322
    %v2291 = vpack.c.b16 %v1331, %v1323
    %v2292 = vpack.c.b16 %v1332, %v1324
    %v2293 = vpack.c.b16 %v1333, %v1325
    %v2294 = vpack.c.b16 %v1334, %v1326
    %v2295 = vpack.c.b16 %v1335, %v1327
    %v2296 = vpack.c.b16 %v1336, %v1328
    %v2297 = vpack.c.b16 %v1337, %v1329
    %v2298 = vpack.c.b16 %v1346, %v1338
    %v2299 = vpack.c.b16 %v1347, %v1339
    %v2300 = vpack.c.b16 %v1348, %v1340
    %v2301 = vpack.c.b16 %v1349, %v1341
    %v2302 = vpack.c.b16 %v1350, %v1342
    %v2303 = vpack.c.b16 %v1351, %v1343
    %v2304 = vpack.c.b16 %v1352, %v1344
    %v2305 = vpack.c.b16 %v1353, %v1345
    %v2306 = vpack.c.b16 %v1362, %v1354
    %v2307 = vpack.c.b16 %v1363, %v1355
    %v2308 = vpack.c.b16 %v1364, %v1356
    %v2309 = vpack.c.b16 %v1365, %v1357
    %v2310 = vpack.c.b16 %v1366, %v1358
    %v2311 = vpack.c.b16 %v1367, %v1359
    %v2312 = vpack.c.b16 %v1368, %v1360
    %v2313 = vpack.c.b16 %v1369, %v1361
    %v2314 = vpack.c.b16 %v1378, %v1370
    %v2315 = vpack.c.b16 %v1379, %v1371
    %v2316 = vpack.c.b16 %v1380, %v1372
    %v2317 = vpack.c.b16 %v1381, %v1373
    %v2318 = vpack.c.b16 %v1382, %v1374
    %v2319 = vpack.c.b16 %v1383, %v1375
    %v2320 = vpack.c.b16 %v1384, %v1376
    %v2321 = vpack.c.b16 %v1385, %v1377
    %v2322 = vpack.c.b16 %v1394, %v1386
    %v2323 = vpack.c.b16 %v1395, %v1387
    %v2324 = vpack.c.b16 %v1396, %v1388
    %v2325 = vpack.c.b16 %v1397, %v1389
    %v2326 = vpack.c.b16 %v1398, %v1390
    %v2327 = vpack.c.b16 %v1399, %v1391
    %v2328 = vpack.c.b16 %v1400, %v1392
    %v2329 = vpack.c.b16 %v1401, %v1393
    %v2330 = vpack.c.b16 %v1410, %v1402
    %v2331 = vpack.c.b16 %v1411, %v1403
    %v2332 = vpack.c.b16 %v1412, %v1404
    %v2333 = vpack.c.b16 %v1413, %v1405
    %v2334 = vpack.c.b16 %v1414, %v1406
    %v2335 = vpack.c.b16 %v1415, %v1407
    %v2336 = vpack.c.b16 %v1416, %v1408
    %v2337 = vpack.c.b16 %v1417, %v1409
    %v2338 = vpack.c.b16 %v1426, %v1418
    %v2339 = vpack.c.b16 %v1427, %v1419
    %v2340 = vpack.c.b16 %v1428, %v1420
    %v2341 = vpack.c.b16 %v1429, %v1421
    %v2342 = vpack.c.b16 %v1430, %v1422
    %v2343 = vpack.c.b16 %v1431, %v1423
    %v2344 = vpack.c.b16 %v1432, %v1424
    %v2345 = vpack.c.b16 %v1433, %v1425
    %v2346 = vpack.c.b16 %v1442, %v1434
    %v2347 = vpack.c.b16 %v1443, %v1435
    %v2348 = vpack.c.b16 %v1444, %v1436
    %v2349 = vpack.c.b16 %v1445, %v1437
    %v2350 = vpack.c.b16 %v1446, %v1438
    %v2351 = vpack.c.b16 %v1447, %v1439
    %v2352 = vpack.c.b16 %v1448, %v1440
    %v2353 = vpack.c.b16 %v1449, %v1441
    %v2354 = vpack.c.b16 %v1458, %v1450
    %v2355 = vpack.c.b16 %v1459, %v1451
    %v2356 = vpack.c.b16 %v1460, %v1452
    %v2357 = vpack.c.b16 %v1461, %v1453
    %v2358 = vpack.c.b16 %v1462, %v1454
    %v2359 = vpack.c.b16 %v1463, %v1455
    %v2360 = vpack.c.b16 %v1464, %v1456
    %v2361 = vpack.c.b16 %v1465, %v1457
    %v2362 = vpack.c.b16 %v1474, %v1466
    %v2363 = vpack.c.b16 %v1475, %v1467
    %v2364 = vpack.c.b16 %v1476, %v1468
    %v2365 = vpack.c.b16 %v1477, %v1469
    %v2366 = vpack.c.b16 %v1478, %v1470
    %v2367 = vpack.c.b16 %v1479, %v1471
    %v2368 = vpack.c.b16 %v1480, %v1472
    %v2369 = vpack.c.b16 %v1481, %v1473
    %v2370 = vpack.c.b16 %v1490, %v1482
    %v2371 = vpack.c.b16 %v1491, %v1483
    %v2372 = vpack.c.b16 %v1492, %v1484
    %v2373 = vpack.c.b16 %v1493, %v1485
    %v2374 = vpack.c.b16 %v1494, %v1486
    %v2375 = vpack.c.b16 %v1495, %v1487
    %v2376 = vpack.c.b16 %v1496, %v1488
    %v2377 = vpack.c.b16 %v1497, %v1489
    %v2378 = vpack.c.b16 %v1506, %v1498
    %v2379 = vpack.c.b16 %v1507, %v1499
    %v2380 = vpack.c.b16 %v1508, %v1500
    %v2381 = vpack.c.b16 %v1509, %v1501
    %v2382 = vpack.c.b16 %v1510, %v1502
    %v2383 = vpack.c.b16 %v1511, %v1503
    %v2384 = vpack.c.b16 %v1512, %v1504
    %v2385 = vpack.c.b16 %v1513, %v1505
    %v2386 = vpack.c.b16 %v1522, %v1514
    %v2387 = vpack.c.b16 %v1523, %v1515
    %v2388 = vpack.c.b16 %v1524, %v1516
    %v2389 = vpack.c.b16 %v1525, %v1517
    %v2390 = vpack.c.b16 %v1526, %v1518
    %v2391 = vpack.c.b16 %v1527, %v1519
    %v2392 = vpack.c.b16 %v1528, %v1520
    %v2393 = vpack.c.b16 %v1529, %v1521
    %v2394 = vpack.c.b16 %v1538, %v1530
    %v2395 = vpack.c.b16 %v1539, %v1531
    %v2396 = vpack.c.b16 %v1540, %v1532
    %v2397 = vpack.c.b16 %v1541, %v1533
    %v2398 = vpack.c.b16 %v1542, %v1534
    %v2399 = vpack.c.b16 %v1543, %v1535
    %v2400 = vpack.c.b16 %v1544, %v1536
    %v2401 = vpack.c.b16 %v1545, %v1537
    %v2402 = vpack.c.b16 %v1554, %v1546
    %v2403 = vpack.c.b16 %v1555, %v1547
    %v2404 = vpack.c.b16 %v1556, %v1548
    %v2405 = vpack.c.b16 %v1557, %v1549
    %v2406 = vpack.c.b16 %v1558, %v1550
    %v2407 = vpack.c.b16 %v1559, %v1551
    %v2408 = vpack.c.b16 %v1560, %v1552
    %v2409 = vpack.c.b16 %v1561, %v1553
    %v2410 = vpack.c.b16 %v1570, %v1562
    %v2411 = vpack.c.b16 %v1571, %v1563
    %v2412 = vpack.c.b16 %v1572, %v1564
    %v2413 = vpack.c.b16 %v1573, %v1565
    %v2414 = vpack.c.b16 %v1574, %v1566
    %v2415 = vpack.c.b16 %v1575, %v1567
    %v2416 = vpack.c.b16 %v1576, %v1568
    %v2417 = vpack.c.b16 %v1577, %v1569
    %v2418 = vpack.c.b16 %v1586, %v1578
    %v2419 = vpack.c.b16 %v1587, %v1579
    %v2420 = vpack.c.b16 %v1588, %v1580
    %v2421 = vpack.c.b16 %v1589, %v1581
    %v2422 = vpack.c.b16 %v1590, %v1582
    %v2423 = vpack.c.b16 %v1591, %v1583
    %v2424 = vpack.c.b16 %v1592, %v1584
    %v2425 = vpack.c.b16 %v1593, %v1585
    %v2426 = vpack.c.b16 %v1602, %v1594
    %v2427 = vpack.c.b16 %v1603, %v1595
    %v2428 = vpack.c.b16 %v1604, %v1596
    %v2429 = vpack.c.b16 %v1605, %v1597
    %v2430 = vpack.c.b16 %v1606, %v1598
    %v2431 = vpack.c.b16 %v1607, %v1599
    %v2432 = vpack.c.b16 %v1608, %v1600
    %v2433 = vpack.c.b16 %v1609, %v1601
    %v2434 = vpack.c.b16 %v1618, %v1610
    %v2435 = vpack.c.b16 %v1619, %v1611
    %v2436 = vpack.c.b16 %v1620, %v1612
    %v2437 = vpack.c.b16 %v1621, %v1613
    %v2438 = vpack.c.b16 %v1622, %v1614
    %v2439 = vpack.c.b16 %v1623, %v1615
    %v2440 = vpack.c.b16 %v1624, %v1616
    %v2441 = vpack.c.b16 %v1625, %v1617
    %v2442 = vpack.c.b16 %v1634, %v1626
    %v2443 = vpack.c.b16 %v1635, %v1627
    %v2444 = vpack.c.b16 %v1636, %v1628
    %v2445 = vpack.c.b16 %v1637, %v1629
    %v2446 = vpack.c.b16 %v1638, %v1630
    %v2447 = vpack.c.b16 %v1639, %v1631
    %v2448 = vpack.c.b16 %v1640, %v1632
    %v2449 = vpack.c.b16 %v1641, %v1633
    %v2450 = vpack.c.b16 %v1650, %v1642
    %v2451 = vpack.c.b16 %v1651, %v1643
    %v2452 = vpack.c.b16 %v1652, %v1644
    %v2453 = vpack.c.b16 %v1653, %v1645
    %v2454 = vpack.c.b16 %v1654, %v1646
    %v2455 = vpack.c.b16 %v1655, %v1647
    %v2456 = vpack.c.b16 %v1656, %v1648
    %v2457 = vpack.c.b16 %v1657, %v1649
    %v2458 = vpack.c.b16 %v1666, %v1658
    %v2459 = vpack.c.b16 %v1667, %v1659
    %v2460 = vpack.c.b16 %v1668, %v1660
    %v2461 = vpack.c.b16 %v1669, %v1661
    %v2462 = vpack.c.b16 %v1670, %v1662
    %v2463 = vpack.c.b16 %v1671, %v1663
    %v2464 = vpack.c.b16 %v1672, %v1664
    %v2465 = vpack.c.b16 %v1673, %v1665
    %v2466 = vpack.c.b16 %v1682, %v1674
    %v2467 = vpack.c.b16 %v1683, %v1675
    %v2468 = vpack.c.b16 %v1684, %v1676
    %v2469 = vpack.c.b16 %v1685, %v1677
    %v2470 = vpack.c.b16 %v1686, %v1678
    %v2471 = vpack.c.b16 %v1687, %v1679
    %v2472 = vpack.c.b16 %v1688, %v1680
    %v2473 = vpack.c.b16 %v1689, %v1681
    %v2474 = vpack.c.b16 %v1698, %v1690
    %v2475 = vpack.c.b16 %v1699, %v1691
    %v2476 = vpack.c.b16 %v1700, %v1692
    %v2477 = vpack.c.b16 %v1701, %v1693
    %v2478 = vpack.c.b16 %v1702, %v1694
    %v2479 = vpack.c.b16 %v1703, %v1695
    %v2480 = vpack.c.b16 %v1704, %v1696
    %v2481 = vpack.c.b16 %v1705, %v1697
    %v2482 = vpack.c.b16 %v1714, %v1706
    %v2483 = vpack.c.b16 %v1715, %v1707
    %v2484 = vpack.c.b16 %v1716, %v1708
    %v2485 = vpack.c.b16 %v1717, %v1709
    %v2486 = vpack.c.b16 %v1718, %v1710
    %v2487 = vpack.c.b16 %v1719, %v1711
    %v2488 = vpack.c.b16 %v1720, %v1712
    %v2489 = vpack.c.b16 %v1721, %v1713
    %v2490 = vpack.c.b16 %v1730, %v1722
    %v2491 = vpack.c.b16 %v1731, %v1723
    %v2492 = vpack.c.b16 %v1732, %v1724
    %v2493 = vpack.c.b16 %v1733, %v1725
    %v2494 = vpack.c.b16 %v1734, %v1726
    %v2495 = vpack.c.b16 %v1735, %v1727
    %v2496 = vpack.c.b16 %v1736, %v1728
    %v2497 = vpack.c.b16 %v1737, %v1729
    %v2498 = vpack.c.b16 %v1746, %v1738
    %v2499 = vpack.c.b16 %v1747, %v1739
    %v2500 = vpack.c.b16 %v1748, %v1740
    %v2501 = vpack.c.b16 %v1749, %v1741
    %v2502 = vpack.c.b16 %v1750, %v1742
    %v2503 = vpack.c.b16 %v1751, %v1743
    %v2504 = vpack.c.b16 %v1752, %v1744
    %v2505 = vpack.c.b16 %v1753, %v1745
    %v2506 = vpack.c.b16 %v1762, %v1754
    %v2507 = vpack.c.b16 %v1763, %v1755
    %v2508 = vpack.c.b16 %v1764, %v1756
    %v2509 = vpack.c.b16 %v1765, %v1757
    %v2510 = vpack.c.b16 %v1766, %v1758
    %v2511 = vpack.c.b16 %v1767, %v1759
    %v2512 = vpack.c.b16 %v1768, %v1760
    %v2513 = vpack.c.b16 %v1769, %v1761
    %v2514 = vpack.c.b16 %v1778, %v1770
    %v2515 = vpack.c.b16 %v1779, %v1771
    %v2516 = vpack.c.b16 %v1780, %v1772
    %v2517 = vpack.c.b16 %v1781, %v1773
    %v2518 = vpack.c.b16 %v1782, %v1774
    %v2519 = vpack.c.b16 %v1783, %v1775
    %v2520 = vpack.c.b16 %v1784, %v1776
    %v2521 = vpack.c.b16 %v1785, %v1777
    %v2522 = vpack.c.b16 %v1794, %v1786
    %v2523 = vpack.c.b16 %v1795, %v1787
    %v2524 = vpack.c.b16 %v1796, %v1788
    %v2525 = vpack.c.b16 %v1797, %v1789
    %v2526 = vpack.c.b16 %v1798, %v1790
    %v2527 = vpack.c.b16 %v1799, %v1791
    %v2528 = vpack.c.b16 %v1800, %v1792
    %v2529 = vpack.c.b16 %v1801, %v1793
    %v2530 = vpack.c.b16 %v1810, %v1802
    %v2531 = vpack.c.b16 %v1811, %v1803
    %v2532 = vpack.c.b16 %v1812, %v1804
    %v2533 = vpack.c.b16 %v1813, %v1805
    %v2534 = vpack.c.b16 %v1814, %v1806
    %v2535 = vpack.c.b16 %v1815, %v1807
    %v2536 = vpack.c.b16 %v1816, %v1808
    %v2537 = vpack.c.b16 %v1817, %v1809
    %v2538 = vpack.c.b16 %v1826, %v1818
    %v2539 = vpack.c.b16 %v1827, %v1819
    %v2540 = vpack.c.b16 %v1828, %v1820
    %v2541 = vpack.c.b16 %v1829, %v1821
    %v2542 = vpack.c.b16 %v1830, %v1822
    %v2543 = vpack.c.b16 %v1831, %v1823
    %v2544 = vpack.c.b16 %v1832, %v1824
    %v2545 = vpack.c.b16 %v1833, %v1825
    %v2546 = vpack.c.b16 %v1842, %v1834
    %v2547 = vpack.c.b16 %v1843, %v1835
    %v2548 = vpack.c.b16 %v1844, %v1836
    %v2549 = vpack.c.b16 %v1845, %v1837
    %v2550 = vpack.c.b16 %v1846, %v1838
    %v2551 = vpack.c.b16 %v1847, %v1839
    %v2552 = vpack.c.b16 %v1848, %v1840
    %v2553 = vpack.c.b16 %v1849, %v1841
    %v2554 = vpack.c.b16 %v1858, %v1850
    %v2555 = vpack.c.b16 %v1859, %v1851
    %v2556 = vpack.c.b16 %v1860, %v1852
    %v2557 = vpack.c.b16 %v1861, %v1853
    %v2558 = vpack.c.b16 %v1862, %v1854
    %v2559 = vpack.c.b16 %v1863, %v1855
    %v2560 = vpack.c.b16 %v1864, %v1856
    %v2561 = vpack.c.b16 %v1865, %v1857
    %v2562 = vpack.c.b16 %v1874, %v1866
    %v2563 = vpack.c.b16 %v1875, %v1867
    %v2564 = vpack.c.b16 %v1876, %v1868
    %v2565 = vpack.c.b16 %v1877, %v1869
    %v2566 = vpack.c.b16 %v1878, %v1870
    %v2567 = vpack.c.b16 %v1879, %v1871
    %v2568 = vpack.c.b16 %v1880, %v1872
    %v2569 = vpack.c.b16 %v1881, %v1873
    %v2570 = vpack.c.b16 %v1890, %v1882
    %v2571 = vpack.c.b16 %v1891, %v1883
    %v2572 = vpack.c.b16 %v1892, %v1884
    %v2573 = vpack.c.b16 %v1893, %v1885
    %v2574 = vpack.c.b16 %v1894, %v1886
    %v2575 = vpack.c.b16 %v1895, %v1887
    %v2576 = vpack.c.b16 %v1896, %v1888
    %v2577 = vpack.c.b16 %v1897, %v1889
    %v2578 = vpack.c.b16 %v1906, %v1898
    %v2579 = vpack.c.b16 %v1907, %v1899
    %v2580 = vpack.c.b16 %v1908, %v1900
    %v2581 = vpack.c.b16 %v1909, %v1901
    %v2582 = vpack.c.b16 %v1910, %v1902
    %v2583 = vpack.c.b16 %v1911, %v1903
    %v2584 = vpack.c.b16 %v1912, %v1904
    %v2585 = vpack.c.b16 %v1913, %v1905
    %v2586 = vpack.c.b16 %v1922, %v1914
    %v2587 = vpack.c.b16 %v1923, %v1915
    %v2588 = vpack.c.b16 %v1924, %v1916
    %v2589 = vpack.c.b16 %v1925, %v1917
    %v2590 = vpack.c.b16 %v1926, %v1918
    %v2591 = vpack.c.b16 %v1927, %v1919
    %v2592 = vpack.c.b16 %v1928, %v1920
    %v2593 = vpack.c.b16 %v1929, %v1921
    %v2594 = vpack.c.b16 %v1938, %v1930
    %v2595 = vpack.c.b16 %v1939, %v1931
    %v2596 = vpack.c.b16 %v1940, %v1932
    %v2597 = vpack.c.b16 %v1941, %v1933
    %v2598 = vpack.c.b16 %v1942, %v1934
    %v2599 = vpack.c.b16 %v1943, %v1935
    %v2600 = vpack.c.b16 %v1944, %v1936
    %v2601 = vpack.c.b16 %v1945, %v1937
    %v2602 = vpack.c.b16 %v1954, %v1946
    %v2603 = vpack.c.b16 %v1955, %v1947
    %v2604 = vpack.c.b16 %v1956, %v1948
    %v2605 = vpack.c.b16 %v1957, %v1949
    %v2606 = vpack.c.b16 %v1958, %v1950
    %v2607 = vpack.c.b16 %v1959, %v1951
    %v2608 = vpack.c.b16 %v1960, %v1952
    %v2609 = vpack.c.b16 %v1961, %v1953
    %v2610 = vpack.c.b16 %v1970, %v1962
    %v2611 = vpack.c.b16 %v1971, %v1963
    %v2612 = vpack.c.b16 %v1972, %v1964
    %v2613 = vpack.c.b16 %v1973, %v1965
    %v2614 = vpack.c.b16 %v1974, %v1966
    %v2615 = vpack.c.b16 %v1975, %v1967
    %v2616 = vpack.c.b16 %v1976, %v1968
    %v2617 = vpack.c.b16 %v1977, %v1969
    %v2618 = vpack.c.b16 %v1986, %v1978
    %v2619 = vpack.c.b16 %v1987, %v1979
    %v2620 = vpack.c.b16 %v1988, %v1980
    %v2621 = vpack.c.b16 %v1989, %v1981
    %v2622 = vpack.c.b16 %v1990, %v1982
    %v2623 = vpack.c.b16 %v1991, %v1983
    %v2624 = vpack.c.b16 %v1992, %v1984
    %v2625 = vpack.c.b16 %v1993, %v1985
    %v2626 = vpack.c.b16 %v2002, %v1994
    %v2627 = vpack.c.b16 %v2003, %v1995
    %v2628 = vpack.c.b16 %v2004, %v1996
    %v2629 = vpack.c.b16 %v2005, %v1997
    %v2630 = vpack.c.b16 %v2006, %v1998
    %v2631 = vpack.c.b16 %v2007, %v1999
    %v2632 = vpack.c.b16 %v2008, %v2000
    %v2633 = vpack.c.b16 %v2009, %v2001
    %v2634 = vpack.c.b16 %v2018, %v2010
    %v2635 = vpack.c.b16 %v2019, %v2011
    %v2636 = vpack.c.b16 %v2020, %v2012
    %v2637 = vpack.c.b16 %v2021, %v2013
    %v2638 = vpack.c.b16 %v2022, %v2014
    %v2639 = vpack.c.b16 %v2023, %v2015
    %v2640 = vpack.c.b16 %v2024, %v2016
    %v2641 = vpack.c.b16 %v2025, %v2017
    %v2642 = vpack.c.b16 %v2034, %v2026
    %v2643 = vpack.c.b16 %v2035, %v2027
    %v2644 = vpack.c.b16 %v2036, %v2028
    %v2645 = vpack.c.b16 %v2037, %v2029
    %v2646 = vpack.c.b16 %v2038, %v2030
    %v2647 = vpack.c.b16 %v2039, %v2031
    %v2648 = vpack.c.b16 %v2040, %v2032
    %v2649 = vpack.c.b16 %v2041, %v2033
    %v2650 = vpack.c.b16 %v2050, %v2042
    %v2651 = vpack.c.b16 %v2051, %v2043
    %v2652 = vpack.c.b16 %v2052, %v2044
    %v2653 = vpack.c.b16 %v2053, %v2045
    %v2654 = vpack.c.b16 %v2054, %v2046
    %v2655 = vpack.c.b16 %v2055, %v2047
    %v2656 = vpack.c.b16 %v2056, %v2048
    %v2657 = vpack.c.b16 %v2057, %v2049
    %v2658 = vpack.c.b16 %v2066, %v2058
    %v2659 = vpack.c.b16 %v2067, %v2059
    %v2660 = vpack.c.b16 %v2068, %v2060
    %v2661 = vpack.c.b16 %v2069, %v2061
    %v2662 = vpack.c.b16 %v2070, %v2062
    %v2663 = vpack.c.b16 %v2071, %v2063
    %v2664 = vpack.c.b16 %v2072, %v2064
    %v2665 = vpack.c.b16 %v2073, %v2065
    %v2666 = vpack.c.b16 %v2082, %v2074
    %v2667 = vpack.c.b16 %v2083, %v2075
    %v2668 = vpack.c.b16 %v2084, %v2076
    %v2669 = vpack.c.b16 %v2085, %v2077
    %v2670 = vpack.c.b16 %v2086, %v2078
    %v2671 = vpack.c.b16 %v2087, %v2079
    %v2672 = vpack.c.b16 %v2088, %v2080
    %v2673 = vpack.c.b16 %v2089, %v2081
    %v2674 = vpack.c.b16 %v2098, %v2090
    %v2675 = vpack.c.b16 %v2099, %v2091
    %v2676 = vpack.c.b16 %v2100, %v2092
    %v2677 = vpack.c.b16 %v2101, %v2093
    %v2678 = vpack.c.b16 %v2102, %v2094
    %v2679 = vpack.c.b16 %v2103, %v2095
    %v2680 = vpack.c.b16 %v2104, %v2096
    %v2681 = vpack.c.b16 %v2105, %v2097
    %v2682 = vpack.c.b16 %v2114, %v2106
    %v2683 = vpack.c.b16 %v2115, %v2107
    %v2684 = vpack.c.b16 %v2116, %v2108
    %v2685 = vpack.c.b16 %v2117, %v2109
    %v2686 = vpack.c.b16 %v2118, %v2110
    %v2687 = vpack.c.b16 %v2119, %v2111
    %v2688 = vpack.c.b16 %v2120, %v2112
    %v2689 = vpack.c.b16 %v2121, %v2113
    %v2690 = vpack.c.b16 %v2130, %v2122
    %v2691 = vpack.c.b16 %v2131, %v2123
    %v2692 = vpack.c.b16 %v2132, %v2124
    %v2693 = vpack.c.b16 %v2133, %v2125
    %v2694 = vpack.c.b16 %v2134, %v2126
    %v2695 = vpack.c.b16 %v2135, %v2127
    %v2696 = vpack.c.b16 %v2136, %v2128
    %v2697 = vpack.c.b16 %v2137, %v2129
    %v2698 = vpack.c.b16 %v2146, %v2138
    %v2699 = vpack.c.b16 %v2147, %v2139
    %v2700 = vpack.c.b16 %v2148, %v2140
    %v2701 = vpack.c.b16 %v2149, %v2141
    %v2702 = vpack.c.b16 %v2150, %v2142
    %v2703 = vpack.c.b16 %v2151, %v2143
    %v2704 = vpack.c.b16 %v2152, %v2144
    %v2705 = vpack.c.b16 %v2153, %v2145
    %v2706 = vpack.c.b16 %v2162, %v2154
    %v2707 = vpack.c.b16 %v2163, %v2155
    %v2708 = vpack.c.b16 %v2164, %v2156
    %v2709 = vpack.c.b16 %v2165, %v2157
    %v2710 = vpack.c.b16 %v2166, %v2158
    %v2711 = vpack.c.b16 %v2167, %v2159
    %v2712 = vpack.c.b16 %v2168, %v2160
    %v2713 = vpack.c.b16 %v2169, %v2161
    %v2714 = vpack.c.b16 %v2178, %v2170
    %v2715 = vpack.c.b16 %v2179, %v2171
    %v2716 = vpack.c.b16 %v2180, %v2172
    %v2717 = vpack.c.b16 %v2181, %v2173
    %v2718 = vpack.c.b16 %v2182, %v2174
    %v2719 = vpack.c.b16 %v2183, %v2175
    %v2720 = vpack.c.b16 %v2184, %v2176
    %v2721 = vpack.c.b16 %v2185, %v2177
    %v2722 = vpack.c.b16 %v2194, %v2186
    %v2723 = vpack.c.b16 %v2195, %v2187
    %v2724 = vpack.c.b16 %v2196, %v2188
    %v2725 = vpack.c.b16 %v2197, %v2189
    %v2726 = vpack.c.b16 %v2198, %v2190
    %v2727 = vpack.c.b16 %v2199, %v2191
    %v2728 = vpack.c.b16 %v2200, %v2192
    %v2729 = vpack.c.b16 %v2201, %v2193
    %v2730 = vpack.c.b16 %v2210, %v2202
    %v2731 = vpack.c.b16 %v2211, %v2203
    %v2732 = vpack.c.b16 %v2212, %v2204
    %v2733 = vpack.c.b16 %v2213, %v2205
    %v2734 = vpack.c.b16 %v2214, %v2206
    %v2735 = vpack.c.b16 %v2215, %v2207
    %v2736 = vpack.c.b16 %v2216, %v2208
    %v2737 = vpack.c.b16 %v2217, %v2209
    %v2738 = vpack.c.b16 %v2226, %v2218
    %v2739 = vpack.c.b16 %v2227, %v2219
    %v2740 = vpack.c.b16 %v2228, %v2220
    %v2741 = vpack.c.b16 %v2229, %v2221
    %v2742 = vpack.c.b16 %v2230, %v2222
    %v2743 = vpack.c.b16 %v2231, %v2223
    %v2744 = vpack.c.b16 %v2232, %v2224
    %v2745 = vpack.c.b16 %v2233, %v2225
    %3258 = vmatprep.subr.bf16.mxu0 %v2235
    %3259 = vmatpush1.bf16.msra.mxu0 %v2234
    %3260 = vmatprep.subr.bf16.mxu0 %v2243
    %3261 = vmatpush1.bf16.msra.mxu0 %v2242
    %3262 = vmatprep.subr.bf16.mxu0 %v2251
    %3263 = vmatpush1.bf16.msra.mxu0 %v2250
    %3264 = vmatprep.subr.bf16.mxu0 %v2259
    %3265 = vmatpush1.bf16.msra.mxu0 %v2258
    %3266 = vmatprep.subr.bf16.mxu0 %v2267
    %3267 = vmatpush1.bf16.msra.mxu0 %v2266
    %3268 = vmatprep.subr.bf16.mxu0 %v2275
    %3269 = vmatpush1.bf16.msra.mxu0 %v2274
    %3270 = vmatprep.subr.bf16.mxu0 %v2283
    %3271 = vmatpush1.bf16.msra.mxu0 %v2282
    %3272 = vmatprep.subr.bf16.mxu0 %v2291
    %3273 = vmatpush1.bf16.msra.mxu0 %v2290
    %3274 = vmatprep.subr.bf16.mxu0 %v2299
    %3275 = vmatpush1.bf16.msra.mxu0 %v2298
    %3276 = vmatprep.subr.bf16.mxu0 %v2307
    %3277 = vmatpush1.bf16.msra.mxu0 %v2306
    %3278 = vmatprep.subr.bf16.mxu0 %v2315
    %3279 = vmatpush1.bf16.msra.mxu0 %v2314
    %3280 = vmatprep.subr.bf16.mxu0 %v2323
    %3281 = vmatpush1.bf16.msra.mxu0 %v2322
    %3282 = vmatprep.subr.bf16.mxu0 %v2331
    %3283 = vmatpush1.bf16.msra.mxu0 %v2330
    %3284 = vmatprep.subr.bf16.mxu0 %v2339
    %3285 = vmatpush1.bf16.msra.mxu0 %v2338
    %3286 = vmatprep.subr.bf16.mxu0 %v2347
    %3287 = vmatpush1.bf16.msra.mxu0 %v2346
    %3288 = vmatprep.subr.bf16.mxu0 %v2355
    %3289 = vmatpush1.bf16.msra.mxu0 %v2354
    %3290 = vmatprep.mubr.bf16.mxu0 %v683
    %3291 = vmatmul.mubr.bf16.gmra.mrb[0].mxu0 %v682
    %v3292 = vpop.f32.mrb[0].mxu0
    %v3293 = vadd.f32 0.0, %v3292
    %v3294 = vpop.f32.mrb[0].mxu0
    %v3295 = vadd.f32 0.0, %v3294
    %v3296 = vpop.f32.mrb[0].mxu0
    %v3297 = vpop.f32.mrb[0].mxu0
    %3298 = vdwg.mxu0
    %3299 = vmatprep.subr.bf16.mxu0 %v2363
    %3300 = vmatpush1.bf16.msra.mxu0 %v2362
    %3301 = vmatprep.subr.bf16.mxu0 %v2371
    %3302 = vmatpush1.bf16.msra.mxu0 %v2370
    %3303 = vmatprep.subr.bf16.mxu0 %v2379
    %3304 = vmatpush1.bf16.msra.mxu0 %v2378
    %3305 = vmatprep.subr.bf16.mxu0 %v2387
    %3306 = vmatpush1.bf16.msra.mxu0 %v2386
    %3307 = vmatprep.subr.bf16.mxu0 %v2395
    %3308 = vmatpush1.bf16.msra.mxu0 %v2394
    %3309 = vmatprep.subr.bf16.mxu0 %v2403
    %3310 = vmatpush1.bf16.msra.mxu0 %v2402
    %3311 = vmatprep.subr.bf16.mxu0 %v2411
    %3312 = vmatpush1.bf16.msra.mxu0 %v2410
    %3313 = vmatprep.subr.bf16.mxu0 %v2419
    %3314 = vmatpush1.bf16.msra.mxu0 %v2418
    %3315 = vmatprep.subr.bf16.mxu0 %v2427
    %3316 = vmatpush1.bf16.msra.mxu0 %v2426
    %3317 = vmatprep.subr.bf16.mxu0 %v2435
    %3318 = vmatpush1.bf16.msra.mxu0 %v2434
    %3319 = vmatprep.subr.bf16.mxu0 %v2443
    %3320 = vmatpush1.bf16.msra.mxu0 %v2442
    %3321 = vmatprep.subr.bf16.mxu0 %v2451
    %3322 = vmatpush1.bf16.msra.mxu0 %v2450
    %3323 = vmatprep.subr.bf16.mxu0 %v2459
    %3324 = vmatpush1.bf16.msra.mxu0 %v2458
    %3325 = vmatprep.subr.bf16.mxu0 %v2467
    %3326 = vmatpush1.bf16.msra.mxu0 %v2466
    %3327 = vmatprep.subr.bf16.mxu0 %v2475
    %3328 = vmatpush1.bf16.msra.mxu0 %v2474
    %3329 = vmatprep.subr.bf16.mxu0 %v2483
    %3330 = vmatpush1.bf16.msra.mxu0 %v2482
    %3331 = vmatprep.mubr.bf16.mxu0 %v685
    %3332 = vmatmul.mubr.bf16.gmra.mrb[0].mxu0 %v684
    %v3333 = vpop.f32.mrb[0].mxu0
    %v3334 = vadd.f32 %v3293, %v3333
    %v3335 = vpop.f32.mrb[0].mxu0
    %v3336 = vadd.f32 %v3295, %v3335
    %v3337 = vpop.f32.mrb[0].mxu0
    %v3338 = vpop.f32.mrb[0].mxu0
    %3339 = vdwg.mxu0
    %3340 = vmatprep.subr.bf16.mxu0 %v2491
    %3341 = vmatpush1.bf16.msra.mxu0 %v2490
    %3342 = vmatprep.subr.bf16.mxu0 %v2499
    %3343 = vmatpush1.bf16.msra.mxu0 %v2498
    %3344 = vmatprep.subr.bf16.mxu0 %v2507
    %3345 = vmatpush1.bf16.msra.mxu0 %v2506
    %3346 = vmatprep.subr.bf16.mxu0 %v2515
    %3347 = vmatpush1.bf16.msra.mxu0 %v2514
    %3348 = vmatprep.subr.bf16.mxu0 %v2523
    %3349 = vmatpush1.bf16.msra.mxu0 %v2522
    %3350 = vmatprep.subr.bf16.mxu0 %v2531
    %3351 = vmatpush1.bf16.msra.mxu0 %v2530
    %3352 = vmatprep.subr.bf16.mxu0 %v2539
    %3353 = vmatpush1.bf16.msra.mxu0 %v2538
    %3354 = vmatprep.subr.bf16.mxu0 %v2547
    %3355 = vmatpush1.bf16.msra.mxu0 %v2546
    %3356 = vmatprep.subr.bf16.mxu0 %v2555
    %3357 = vmatpush1.bf16.msra.mxu0 %v2554
    %3358 = vmatprep.subr.bf16.mxu0 %v2563
    %3359 = vmatpush1.bf16.msra.mxu0 %v2562
    %3360 = vmatprep.subr.bf16.mxu0 %v2571
    %3361 = vmatpush1.bf16.msra.mxu0 %v2570
    %3362 = vmatprep.subr.bf16.mxu0 %v2579
    %3363 = vmatpush1.bf16.msra.mxu0 %v2578
    %3364 = vmatprep.subr.bf16.mxu0 %v2587
    %3365 = vmatpush1.bf16.msra.mxu0 %v2586
    %3366 = vmatprep.subr.bf16.mxu0 %v2595
    %3367 = vmatpush1.bf16.msra.mxu0 %v2594
    %3368 = vmatprep.subr.bf16.mxu0 %v2603
    %3369 = vmatpush1.bf16.msra.mxu0 %v2602
    %3370 = vmatprep.subr.bf16.mxu0 %v2611
    %3371 = vmatpush1.bf16.msra.mxu0 %v2610
    %3372 = vmatprep.mubr.bf16.mxu0 %v687
    %3373 = vmatmul.mubr.bf16.gmra.mrb[0].mxu0 %v686
    %v3374 = vpop.f32.mrb[0].mxu0
    %v3375 = vadd.f32 %v3334, %v3374
    %v3376 = vpop.f32.mrb[0].mxu0
    %v3377 = vadd.f32 %v3336, %v3376
    %v3378 = vpop.f32.mrb[0].mxu0
    %v3379 = vpop.f32.mrb[0].mxu0
    %3380 = vdwg.mxu0
    %3381 = vmatprep.subr.bf16.mxu0 %v2619
    %3382 = vmatpush1.bf16.msra.mxu0 %v2618
    %3383 = vmatprep.subr.bf16.mxu0 %v2627
    %3384 = vmatpush1.bf16.msra.mxu0 %v2626
    %3385 = vmatprep.subr.bf16.mxu0 %v2635
    %3386 = vmatpush1.bf16.msra.mxu0 %v2634
    %3387 = vmatprep.subr.bf16.mxu0 %v2643
    %3388 = vmatpush1.bf16.msra.mxu0 %v2642
    %3389 = vmatprep.subr.bf16.mxu0 %v2651
    %3390 = vmatpush1.bf16.msra.mxu0 %v2650
    %3391 = vmatprep.subr.bf16.mxu0 %v2659
    %3392 = vmatpush1.bf16.msra.mxu0 %v2658
    %3393 = vmatprep.subr.bf16.mxu0 %v2667
    %3394 = vmatpush1.bf16.msra.mxu0 %v2666
    %3395 = vmatprep.subr.bf16.mxu0 %v2675
    %3396 = vmatpush1.bf16.msra.mxu0 %v2674
    %3397 = vmatprep.subr.bf16.mxu0 %v2683
    %3398 = vmatpush1.bf16.msra.mxu0 %v2682
    %3399 = vmatprep.subr.bf16.mxu0 %v2691
    %3400 = vmatpush1.bf16.msra.mxu0 %v2690
    %3401 = vmatprep.subr.bf16.mxu0 %v2699
    %3402 = vmatpush1.bf16.msra.mxu0 %v2698
    %3403 = vmatprep.subr.bf16.mxu0 %v2707
    %3404 = vmatpush1.bf16.msra.mxu0 %v2706
    %3405 = vmatprep.subr.bf16.mxu0 %v2715
    %3406 = vmatpush1.bf16.msra.mxu0 %v2714
    %3407 = vmatprep.subr.bf16.mxu0 %v2723
    %3408 = vmatpush1.bf16.msra.mxu0 %v2722
    %3409 = vmatprep.subr.bf16.mxu0 %v2731
    %3410 = vmatpush1.bf16.msra.mxu0 %v2730
    %3411 = vmatprep.subr.bf16.mxu0 %v2739
    %3412 = vmatpush1.bf16.msra.mxu0 %v2738
    %3413 = vmatprep.mubr.bf16.mxu0 %v689
    %3414 = vmatmul.mubr.bf16.gmra.mrb[0].mxu0 %v688
    %v3415 = vpop.f32.mrb[0].mxu0
    %v3416 = vadd.f32 %v3375, %v3415
    %v3417 = vpop.f32.mrb[0].mxu0
    %v3418 = vadd.f32 %v3377, %v3417
    %v3419 = vpop.f32.mrb[0].mxu0
    %v3420 = vpop.f32.mrb[0].mxu0
    %3421 = vdwg.mxu0
    %3422 = vmatprep.subr.bf16.mxu0 %v2237
    %3423 = vmatpush1.bf16.msra.mxu0 %v2236
    %3424 = vmatprep.subr.bf16.mxu0 %v2245
    %3425 = vmatpush1.bf16.msra.mxu0 %v2244
    %3426 = vmatprep.subr.bf16.mxu0 %v2253
    %3427 = vmatpush1.bf16.msra.mxu0 %v2252
    %3428 = vmatprep.subr.bf16.mxu0 %v2261
    %3429 = vmatpush1.bf16.msra.mxu0 %v2260
    %3430 = vmatprep.subr.bf16.mxu0 %v2269
    %3431 = vmatpush1.bf16.msra.mxu0 %v2268
    %3432 = vmatprep.subr.bf16.mxu0 %v2277
    %3433 = vmatpush1.bf16.msra.mxu0 %v2276
    %3434 = vmatprep.subr.bf16.mxu0 %v2285
    %3435 = vmatpush1.bf16.msra.mxu0 %v2284
    %3436 = vmatprep.subr.bf16.mxu0 %v2293
    %3437 = vmatpush1.bf16.msra.mxu0 %v2292
    %3438 = vmatprep.subr.bf16.mxu0 %v2301
    %3439 = vmatpush1.bf16.msra.mxu0 %v2300
    %3440 = vmatprep.subr.bf16.mxu0 %v2309
    %3441 = vmatpush1.bf16.msra.mxu0 %v2308
    %3442 = vmatprep.subr.bf16.mxu0 %v2317
    %3443 = vmatpush1.bf16.msra.mxu0 %v2316
    %3444 = vmatprep.subr.bf16.mxu0 %v2325
    %3445 = vmatpush1.bf16.msra.mxu0 %v2324
    %3446 = vmatprep.subr.bf16.mxu0 %v2333
    %3447 = vmatpush1.bf16.msra.mxu0 %v2332
    %3448 = vmatprep.subr.bf16.mxu0 %v2341
    %3449 = vmatpush1.bf16.msra.mxu0 %v2340
    %3450 = vmatprep.subr.bf16.mxu0 %v2349
    %3451 = vmatpush1.bf16.msra.mxu0 %v2348
    %3452 = vmatprep.subr.bf16.mxu0 %v2357
    %3453 = vmatpush1.bf16.msra.mxu0 %v2356
    %3454 = vmatprep.mubr.bf16.mxu0 %v683
    %3455 = vmatmul.mubr.bf16.gmra.mrb[0].mxu0 %v682
    %v3456 = vpop.f32.mrb[0].mxu0
    %v3457 = vadd.f32 0.0, %v3456
    %v3458 = vpop.f32.mrb[0].mxu0
    %v3459 = vadd.f32 0.0, %v3458
    %v3460 = vpop.f32.mrb[0].mxu0
    %v3461 = vpop.f32.mrb[0].mxu0
    %3462 = vdwg.mxu0
    %3463 = vmatprep.subr.bf16.mxu0 %v2365
    %3464 = vmatpush1.bf16.msra.mxu0 %v2364
    %3465 = vmatprep.subr.bf16.mxu0 %v2373
    %3466 = vmatpush1.bf16.msra.mxu0 %v2372
    %3467 = vmatprep.subr.bf16.mxu0 %v2381
    %3468 = vmatpush1.bf16.msra.mxu0 %v2380
    %3469 = vmatprep.subr.bf16.mxu0 %v2389
    %3470 = vmatpush1.bf16.msra.mxu0 %v2388
    %3471 = vmatprep.subr.bf16.mxu0 %v2397
    %3472 = vmatpush1.bf16.msra.mxu0 %v2396
    %3473 = vmatprep.subr.bf16.mxu0 %v2405
    %3474 = vmatpush1.bf16.msra.mxu0 %v2404
    %3475 = vmatprep.subr.bf16.mxu0 %v2413
    %3476 = vmatpush1.bf16.msra.mxu0 %v2412
    %3477 = vmatprep.subr.bf16.mxu0 %v2421
    %3478 = vmatpush1.bf16.msra.mxu0 %v2420
    %3479 = vmatprep.subr.bf16.mxu0 %v2429
    %3480 = vmatpush1.bf16.msra.mxu0 %v2428
    %3481 = vmatprep.subr.bf16.mxu0 %v2437
    %3482 = vmatpush1.bf16.msra.mxu0 %v2436
    %3483 = vmatprep.subr.bf16.mxu0 %v2445
    %3484 = vmatpush1.bf16.msra.mxu0 %v2444
    %3485 = vmatprep.subr.bf16.mxu0 %v2453
    %3486 = vmatpush1.bf16.msra.mxu0 %v2452
    %3487 = vmatprep.subr.bf16.mxu0 %v2461
    %3488 = vmatpush1.bf16.msra.mxu0 %v2460
    %3489 = vmatprep.subr.bf16.mxu0 %v2469
    %3490 = vmatpush1.bf16.msra.mxu0 %v2468
    %3491 = vmatprep.subr.bf16.mxu0 %v2477
    %3492 = vmatpush1.bf16.msra.mxu0 %v2476
    %3493 = vmatprep.subr.bf16.mxu0 %v2485
    %3494 = vmatpush1.bf16.msra.mxu0 %v2484
    %3495 = vmatprep.mubr.bf16.mxu0 %v685
    %3496 = vmatmul.mubr.bf16.gmra.mrb[0].mxu0 %v684
    %v3497 = vpop.f32.mrb[0].mxu0
    %v3498 = vadd.f32 %v3457, %v3497
    %v3499 = vpop.f32.mrb[0].mxu0
    %v3500 = vadd.f32 %v3459, %v3499
    %v3501 = vpop.f32.mrb[0].mxu0
    %v3502 = vpop.f32.mrb[0].mxu0
    %3503 = vdwg.mxu0
    %3504 = vmatprep.subr.bf16.mxu0 %v2493
    %3505 = vmatpush1.bf16.msra.mxu0 %v2492
    %3506 = vmatprep.subr.bf16.mxu0 %v2501
    %3507 = vmatpush1.bf16.msra.mxu0 %v2500
    %3508 = vmatprep.subr.bf16.mxu0 %v2509
    %3509 = vmatpush1.bf16.msra.mxu0 %v2508
    %3510 = vmatprep.subr.bf16.mxu0 %v2517
    %3511 = vmatpush1.bf16.msra.mxu0 %v2516
    %3512 = vmatprep.subr.bf16.mxu0 %v2525
    %3513 = vmatpush1.bf16.msra.mxu0 %v2524
    %3514 = vmatprep.subr.bf16.mxu0 %v2533
    %3515 = vmatpush1.bf16.msra.mxu0 %v2532
    %3516 = vmatprep.subr.bf16.mxu0 %v2541
    %3517 = vmatpush1.bf16.msra.mxu0 %v2540
    %3518 = vmatprep.subr.bf16.mxu0 %v2549
    %3519 = vmatpush1.bf16.msra.mxu0 %v2548
    %3520 = vmatprep.subr.bf16.mxu0 %v2557
    %3521 = vmatpush1.bf16.msra.mxu0 %v2556
    %3522 = vmatprep.subr.bf16.mxu0 %v2565
    %3523 = vmatpush1.bf16.msra.mxu0 %v2564
    %3524 = vmatprep.subr.bf16.mxu0 %v2573
    %3525 = vmatpush1.bf16.msra.mxu0 %v2572
    %3526 = vmatprep.subr.bf16.mxu0 %v2581
    %3527 = vmatpush1.bf16.msra.mxu0 %v2580
    %3528 = vmatprep.subr.bf16.mxu0 %v2589
    %3529 = vmatpush1.bf16.msra.mxu0 %v2588
    %3530 = vmatprep.subr.bf16.mxu0 %v2597
    %3531 = vmatpush1.bf16.msra.mxu0 %v2596
    %3532 = vmatprep.subr.bf16.mxu0 %v2605
    %3533 = vmatpush1.bf16.msra.mxu0 %v2604
    %3534 = vmatprep.subr.bf16.mxu0 %v2613
    %3535 = vmatpush1.bf16.msra.mxu0 %v2612
    %3536 = vmatprep.mubr.bf16.mxu0 %v687
    %3537 = vmatmul.mubr.bf16.gmra.mrb[0].mxu0 %v686
    %v3538 = vpop.f32.mrb[0].mxu0
    %v3539 = vadd.f32 %v3498, %v3538
    %v3540 = vpop.f32.mrb[0].mxu0
    %v3541 = vadd.f32 %v3500, %v3540
    %v3542 = vpop.f32.mrb[0].mxu0
    %v3543 = vpop.f32.mrb[0].mxu0
    %3544 = vdwg.mxu0
    %3545 = vmatprep.subr.bf16.mxu0 %v2621
    %3546 = vmatpush1.bf16.msra.mxu0 %v2620
    %3547 = vmatprep.subr.bf16.mxu0 %v2629
    %3548 = vmatpush1.bf16.msra.mxu0 %v2628
    %3549 = vmatprep.subr.bf16.mxu0 %v2637
    %3550 = vmatpush1.bf16.msra.mxu0 %v2636
    %3551 = vmatprep.subr.bf16.mxu0 %v2645
    %3552 = vmatpush1.bf16.msra.mxu0 %v2644
    %3553 = vmatprep.subr.bf16.mxu0 %v2653
    %3554 = vmatpush1.bf16.msra.mxu0 %v2652
    %3555 = vmatprep.subr.bf16.mxu0 %v2661
    %3556 = vmatpush1.bf16.msra.mxu0 %v2660
    %3557 = vmatprep.subr.bf16.mxu0 %v2669
    %3558 = vmatpush1.bf16.msra.mxu0 %v2668
    %3559 = vmatprep.subr.bf16.mxu0 %v2677
    %3560 = vmatpush1.bf16.msra.mxu0 %v2676
    %3561 = vmatprep.subr.bf16.mxu0 %v2685
    %3562 = vmatpush1.bf16.msra.mxu0 %v2684
    %3563 = vmatprep.subr.bf16.mxu0 %v2693
    %3564 = vmatpush1.bf16.msra.mxu0 %v2692
    %3565 = vmatprep.subr.bf16.mxu0 %v2701
    %3566 = vmatpush1.bf16.msra.mxu0 %v2700
    %3567 = vmatprep.subr.bf16.mxu0 %v2709
    %3568 = vmatpush1.bf16.msra.mxu0 %v2708
    %3569 = vmatprep.subr.bf16.mxu0 %v2717
    %3570 = vmatpush1.bf16.msra.mxu0 %v2716
    %3571 = vmatprep.subr.bf16.mxu0 %v2725
    %3572 = vmatpush1.bf16.msra.mxu0 %v2724
    %3573 = vmatprep.subr.bf16.mxu0 %v2733
    %3574 = vmatpush1.bf16.msra.mxu0 %v2732
    %3575 = vmatprep.subr.bf16.mxu0 %v2741
    %3576 = vmatpush1.bf16.msra.mxu0 %v2740
    %3577 = vmatprep.mubr.bf16.mxu0 %v689
    %3578 = vmatmul.mubr.bf16.gmra.mrb[0].mxu0 %v688
    %v3579 = vpop.f32.mrb[0].mxu0
    %v3580 = vadd.f32 %v3539, %v3579
    %v3581 = vpop.f32.mrb[0].mxu0
    %v3582 = vadd.f32 %v3541, %v3581
    %v3583 = vpop.f32.mrb[0].mxu0
    %v3584 = vpop.f32.mrb[0].mxu0
    %3585 = vdwg.mxu0
    %3586 = vmatprep.subr.bf16.mxu0 %v2239
    %3587 = vmatpush1.bf16.msra.mxu0 %v2238
    %3588 = vmatprep.subr.bf16.mxu0 %v2247
    %3589 = vmatpush1.bf16.msra.mxu0 %v2246
    %3590 = vmatprep.subr.bf16.mxu0 %v2255
    %3591 = vmatpush1.bf16.msra.mxu0 %v2254
    %3592 = vmatprep.subr.bf16.mxu0 %v2263
    %3593 = vmatpush1.bf16.msra.mxu0 %v2262
    %3594 = vmatprep.subr.bf16.mxu0 %v2271
    %3595 = vmatpush1.bf16.msra.mxu0 %v2270
    %3596 = vmatprep.subr.bf16.mxu0 %v2279
    %3597 = vmatpush1.bf16.msra.mxu0 %v2278
    %3598 = vmatprep.subr.bf16.mxu0 %v2287
    %3599 = vmatpush1.bf16.msra.mxu0 %v2286
    %3600 = vmatprep.subr.bf16.mxu0 %v2295
    %3601 = vmatpush1.bf16.msra.mxu0 %v2294
    %3602 = vmatprep.subr.bf16.mxu0 %v2303
    %3603 = vmatpush1.bf16.msra.mxu0 %v2302
    %3604 = vmatprep.subr.bf16.mxu0 %v2311
    %3605 = vmatpush1.bf16.msra.mxu0 %v2310
    %3606 = vmatprep.subr.bf16.mxu0 %v2319
    %3607 = vmatpush1.bf16.msra.mxu0 %v2318
    %3608 = vmatprep.subr.bf16.mxu0 %v2327
    %3609 = vmatpush1.bf16.msra.mxu0 %v2326
    %3610 = vmatprep.subr.bf16.mxu0 %v2335
    %3611 = vmatpush1.bf16.msra.mxu0 %v2334
    %3612 = vmatprep.subr.bf16.mxu0 %v2343
    %3613 = vmatpush1.bf16.msra.mxu0 %v2342
    %3614 = vmatprep.subr.bf16.mxu0 %v2351
    %3615 = vmatpush1.bf16.msra.mxu0 %v2350
    %3616 = vmatprep.subr.bf16.mxu0 %v2359
    %3617 = vmatpush1.bf16.msra.mxu0 %v2358
    %3618 = vmatprep.mubr.bf16.mxu0 %v683
    %3619 = vmatmul.mubr.bf16.gmra.mrb[0].mxu0 %v682
    %v3620 = vpop.f32.mrb[0].mxu0
    %v3621 = vadd.f32 0.0, %v3620
    %v3622 = vpop.f32.mrb[0].mxu0
    %v3623 = vadd.f32 0.0, %v3622
    %v3624 = vpop.f32.mrb[0].mxu0
    %v3625 = vpop.f32.mrb[0].mxu0
    %3626 = vdwg.mxu0
    %3627 = vmatprep.subr.bf16.mxu0 %v2367
    %3628 = vmatpush1.bf16.msra.mxu0 %v2366
    %3629 = vmatprep.subr.bf16.mxu0 %v2375
    %3630 = vmatpush1.bf16.msra.mxu0 %v2374
    %3631 = vmatprep.subr.bf16.mxu0 %v2383
    %3632 = vmatpush1.bf16.msra.mxu0 %v2382
    %3633 = vmatprep.subr.bf16.mxu0 %v2391
    %3634 = vmatpush1.bf16.msra.mxu0 %v2390
    %3635 = vmatprep.subr.bf16.mxu0 %v2399
    %3636 = vmatpush1.bf16.msra.mxu0 %v2398
    %3637 = vmatprep.subr.bf16.mxu0 %v2407
    %3638 = vmatpush1.bf16.msra.mxu0 %v2406
    %3639 = vmatprep.subr.bf16.mxu0 %v2415
    %3640 = vmatpush1.bf16.msra.mxu0 %v2414
    %3641 = vmatprep.subr.bf16.mxu0 %v2423
    %3642 = vmatpush1.bf16.msra.mxu0 %v2422
    %3643 = vmatprep.subr.bf16.mxu0 %v2431
    %3644 = vmatpush1.bf16.msra.mxu0 %v2430
    %3645 = vmatprep.subr.bf16.mxu0 %v2439
    %3646 = vmatpush1.bf16.msra.mxu0 %v2438
    %3647 = vmatprep.subr.bf16.mxu0 %v2447
    %3648 = vmatpush1.bf16.msra.mxu0 %v2446
    %3649 = vmatprep.subr.bf16.mxu0 %v2455
    %3650 = vmatpush1.bf16.msra.mxu0 %v2454
    %3651 = vmatprep.subr.bf16.mxu0 %v2463
    %3652 = vmatpush1.bf16.msra.mxu0 %v2462
    %3653 = vmatprep.subr.bf16.mxu0 %v2471
    %3654 = vmatpush1.bf16.msra.mxu0 %v2470
    %3655 = vmatprep.subr.bf16.mxu0 %v2479
    %3656 = vmatpush1.bf16.msra.mxu0 %v2478
    %3657 = vmatprep.subr.bf16.mxu0 %v2487
    %3658 = vmatpush1.bf16.msra.mxu0 %v2486
    %3659 = vmatprep.mubr.bf16.mxu0 %v685
    %3660 = vmatmul.mubr.bf16.gmra.mrb[0].mxu0 %v684
    %v3661 = vpop.f32.mrb[0].mxu0
    %v3662 = vadd.f32 %v3621, %v3661
    %v3663 = vpop.f32.mrb[0].mxu0
    %v3664 = vadd.f32 %v3623, %v3663
    %v3665 = vpop.f32.mrb[0].mxu0
    %v3666 = vpop.f32.mrb[0].mxu0
    %3667 = vdwg.mxu0
    %3668 = vmatprep.subr.bf16.mxu0 %v2495
    %3669 = vmatpush1.bf16.msra.mxu0 %v2494
    %3670 = vmatprep.subr.bf16.mxu0 %v2503
    %3671 = vmatpush1.bf16.msra.mxu0 %v2502
    %3672 = vmatprep.subr.bf16.mxu0 %v2511
    %3673 = vmatpush1.bf16.msra.mxu0 %v2510
    %3674 = vmatprep.subr.bf16.mxu0 %v2519
    %3675 = vmatpush1.bf16.msra.mxu0 %v2518
    %3676 = vmatprep.subr.bf16.mxu0 %v2527
    %3677 = vmatpush1.bf16.msra.mxu0 %v2526
    %3678 = vmatprep.subr.bf16.mxu0 %v2535
    %3679 = vmatpush1.bf16.msra.mxu0 %v2534
    %3680 = vmatprep.subr.bf16.mxu0 %v2543
    %3681 = vmatpush1.bf16.msra.mxu0 %v2542
    %3682 = vmatprep.subr.bf16.mxu0 %v2551
    %3683 = vmatpush1.bf16.msra.mxu0 %v2550
    %3684 = vmatprep.subr.bf16.mxu0 %v2559
    %3685 = vmatpush1.bf16.msra.mxu0 %v2558
    %3686 = vmatprep.subr.bf16.mxu0 %v2567
    %3687 = vmatpush1.bf16.msra.mxu0 %v2566
    %3688 = vmatprep.subr.bf16.mxu0 %v2575
    %3689 = vmatpush1.bf16.msra.mxu0 %v2574
    %3690 = vmatprep.subr.bf16.mxu0 %v2583
    %3691 = vmatpush1.bf16.msra.mxu0 %v2582
    %3692 = vmatprep.subr.bf16.mxu0 %v2591
    %3693 = vmatpush1.bf16.msra.mxu0 %v2590
    %3694 = vmatprep.subr.bf16.mxu0 %v2599
    %3695 = vmatpush1.bf16.msra.mxu0 %v2598
    %3696 = vmatprep.subr.bf16.mxu0 %v2607
    %3697 = vmatpush1.bf16.msra.mxu0 %v2606
    %3698 = vmatprep.subr.bf16.mxu0 %v2615
    %3699 = vmatpush1.bf16.msra.mxu0 %v2614
    %3700 = vmatprep.mubr.bf16.mxu0 %v687
    %3701 = vmatmul.mubr.bf16.gmra.mrb[0].mxu0 %v686
    %v3702 = vpop.f32.mrb[0].mxu0
    %v3703 = vadd.f32 %v3662, %v3702
    %v3704 = vpop.f32.mrb[0].mxu0
    %v3705 = vadd.f32 %v3664, %v3704
    %v3706 = vpop.f32.mrb[0].mxu0
    %v3707 = vpop.f32.mrb[0].mxu0
    %3708 = vdwg.mxu0
    %3709 = vmatprep.subr.bf16.mxu0 %v2623
    %3710 = vmatpush1.bf16.msra.mxu0 %v2622
    %3711 = vmatprep.subr.bf16.mxu0 %v2631
    %3712 = vmatpush1.bf16.msra.mxu0 %v2630
    %3713 = vmatprep.subr.bf16.mxu0 %v2639
    %3714 = vmatpush1.bf16.msra.mxu0 %v2638
    %3715 = vmatprep.subr.bf16.mxu0 %v2647
    %3716 = vmatpush1.bf16.msra.mxu0 %v2646
    %3717 = vmatprep.subr.bf16.mxu0 %v2655
    %3718 = vmatpush1.bf16.msra.mxu0 %v2654
    %3719 = vmatprep.subr.bf16.mxu0 %v2663
    %3720 = vmatpush1.bf16.msra.mxu0 %v2662
    %3721 = vmatprep.subr.bf16.mxu0 %v2671
    %3722 = vmatpush1.bf16.msra.mxu0 %v2670
    %3723 = vmatprep.subr.bf16.mxu0 %v2679
    %3724 = vmatpush1.bf16.msra.mxu0 %v2678
    %3725 = vmatprep.subr.bf16.mxu0 %v2687
    %3726 = vmatpush1.bf16.msra.mxu0 %v2686
    %3727 = vmatprep.subr.bf16.mxu0 %v2695
    %3728 = vmatpush1.bf16.msra.mxu0 %v2694
    %3729 = vmatprep.subr.bf16.mxu0 %v2703
    %3730 = vmatpush1.bf16.msra.mxu0 %v2702
    %3731 = vmatprep.subr.bf16.mxu0 %v2711
    %3732 = vmatpush1.bf16.msra.mxu0 %v2710
    %3733 = vmatprep.subr.bf16.mxu0 %v2719
    %3734 = vmatpush1.bf16.msra.mxu0 %v2718
    %3735 = vmatprep.subr.bf16.mxu0 %v2727
    %3736 = vmatpush1.bf16.msra.mxu0 %v2726
    %3737 = vmatprep.subr.bf16.mxu0 %v2735
    %3738 = vmatpush1.bf16.msra.mxu0 %v2734
    %3739 = vmatprep.subr.bf16.mxu0 %v2743
    %3740 = vmatpush1.bf16.msra.mxu0 %v2742
    %3741 = vmatprep.mubr.bf16.mxu0 %v689
    %3742 = vmatmul.mubr.bf16.gmra.mrb[0].mxu0 %v688
    %v3743 = vpop.f32.mrb[0].mxu0
    %v3744 = vadd.f32 %v3703, %v3743
    %v3745 = vpop.f32.mrb[0].mxu0
    %v3746 = vadd.f32 %v3705, %v3745
    %v3747 = vpop.f32.mrb[0].mxu0
    %v3748 = vpop.f32.mrb[0].mxu0
    %3749 = vdwg.mxu0
    %3750 = vmatprep.subr.bf16.mxu0 %v2241
    %3751 = vmatpush1.bf16.msra.mxu0 %v2240
    %3752 = vmatprep.subr.bf16.mxu0 %v2249
    %3753 = vmatpush1.bf16.msra.mxu0 %v2248
    %3754 = vmatprep.subr.bf16.mxu0 %v2257
    %3755 = vmatpush1.bf16.msra.mxu0 %v2256
    %3756 = vmatprep.subr.bf16.mxu0 %v2265
    %3757 = vmatpush1.bf16.msra.mxu0 %v2264
    %3758 = vmatprep.subr.bf16.mxu0 %v2273
    %3759 = vmatpush1.bf16.msra.mxu0 %v2272
    %3760 = vmatprep.subr.bf16.mxu0 %v2281
    %3761 = vmatpush1.bf16.msra.mxu0 %v2280
    %3762 = vmatprep.subr.bf16.mxu0 %v2289
    %3763 = vmatpush1.bf16.msra.mxu0 %v2288
    %3764 = vmatprep.subr.bf16.mxu0 %v2297
    %3765 = vmatpush1.bf16.msra.mxu0 %v2296
    %3766 = vmatprep.subr.bf16.mxu0 %v2305
    %3767 = vmatpush1.bf16.msra.mxu0 %v2304
    %3768 = vmatprep.subr.bf16.mxu0 %v2313
    %3769 = vmatpush1.bf16.msra.mxu0 %v2312
    %3770 = vmatprep.subr.bf16.mxu0 %v2321
    %3771 = vmatpush1.bf16.msra.mxu0 %v2320
    %3772 = vmatprep.subr.bf16.mxu0 %v2329
    %3773 = vmatpush1.bf16.msra.mxu0 %v2328
    %3774 = vmatprep.subr.bf16.mxu0 %v2337
    %3775 = vmatpush1.bf16.msra.mxu0 %v2336
    %3776 = vmatprep.subr.bf16.mxu0 %v2345
    %3777 = vmatpush1.bf16.msra.mxu0 %v2344
    %3778 = vmatprep.subr.bf16.mxu0 %v2353
    %3779 = vmatpush1.bf16.msra.mxu0 %v2352
    %3780 = vmatprep.subr.bf16.mxu0 %v2361
    %3781 = vmatpush1.bf16.msra.mxu0 %v2360
    %3782 = vmatprep.mubr.bf16.mxu0 %v683
    %3783 = vmatmul.mubr.bf16.gmra.mrb[0].mxu0 %v682
    %v3784 = vpop.f32.mrb[0].mxu0
    %v3785 = vadd.f32 0.0, %v3784
    %v3786 = vpop.f32.mrb[0].mxu0
    %v3787 = vadd.f32 0.0, %v3786
    %v3788 = vpop.f32.mrb[0].mxu0
    %v3789 = vpop.f32.mrb[0].mxu0
    %3790 = vdwg.mxu0
    %3791 = vmatprep.subr.bf16.mxu0 %v2369
    %3792 = vmatpush1.bf16.msra.mxu0 %v2368
    %3793 = vmatprep.subr.bf16.mxu0 %v2377
    %3794 = vmatpush1.bf16.msra.mxu0 %v2376
    %3795 = vmatprep.subr.bf16.mxu0 %v2385
    %3796 = vmatpush1.bf16.msra.mxu0 %v2384
    %3797 = vmatprep.subr.bf16.mxu0 %v2393
    %3798 = vmatpush1.bf16.msra.mxu0 %v2392
    %3799 = vmatprep.subr.bf16.mxu0 %v2401
    %3800 = vmatpush1.bf16.msra.mxu0 %v2400
    %3801 = vmatprep.subr.bf16.mxu0 %v2409
    %3802 = vmatpush1.bf16.msra.mxu0 %v2408
    %3803 = vmatprep.subr.bf16.mxu0 %v2417
    %3804 = vmatpush1.bf16.msra.mxu0 %v2416
    %3805 = vmatprep.subr.bf16.mxu0 %v2425
    %3806 = vmatpush1.bf16.msra.mxu0 %v2424
    %3807 = vmatprep.subr.bf16.mxu0 %v2433
    %3808 = vmatpush1.bf16.msra.mxu0 %v2432
    %3809 = vmatprep.subr.bf16.mxu0 %v2441
    %3810 = vmatpush1.bf16.msra.mxu0 %v2440
    %3811 = vmatprep.subr.bf16.mxu0 %v2449
    %3812 = vmatpush1.bf16.msra.mxu0 %v2448
    %3813 = vmatprep.subr.bf16.mxu0 %v2457
    %3814 = vmatpush1.bf16.msra.mxu0 %v2456
    %3815 = vmatprep.subr.bf16.mxu0 %v2465
    %3816 = vmatpush1.bf16.msra.mxu0 %v2464
    %3817 = vmatprep.subr.bf16.mxu0 %v2473
    %3818 = vmatpush1.bf16.msra.mxu0 %v2472
    %3819 = vmatprep.subr.bf16.mxu0 %v2481
    %3820 = vmatpush1.bf16.msra.mxu0 %v2480
    %3821 = vmatprep.subr.bf16.mxu0 %v2489
    %3822 = vmatpush1.bf16.msra.mxu0 %v2488
    %3823 = vmatprep.mubr.bf16.mxu0 %v685
    %3824 = vmatmul.mubr.bf16.gmra.mrb[0].mxu0 %v684
    %v3825 = vpop.f32.mrb[0].mxu0
    %v3826 = vadd.f32 %v3785, %v3825
    %v3827 = vpop.f32.mrb[0].mxu0
    %v3828 = vadd.f32 %v3787, %v3827
    %v3829 = vpop.f32.mrb[0].mxu0
    %v3830 = vpop.f32.mrb[0].mxu0
    %3831 = vdwg.mxu0
    %3832 = vmatprep.subr.bf16.mxu0 %v2497
    %3833 = vmatpush1.bf16.msra.mxu0 %v2496
    %3834 = vmatprep.subr.bf16.mxu0 %v2505
    %3835 = vmatpush1.bf16.msra.mxu0 %v2504
    %3836 = vmatprep.subr.bf16.mxu0 %v2513
    %3837 = vmatpush1.bf16.msra.mxu0 %v2512
    %3838 = vmatprep.subr.bf16.mxu0 %v2521
    %3839 = vmatpush1.bf16.msra.mxu0 %v2520
    %3840 = vmatprep.subr.bf16.mxu0 %v2529
    %3841 = vmatpush1.bf16.msra.mxu0 %v2528
    %3842 = vmatprep.subr.bf16.mxu0 %v2537
    %3843 = vmatpush1.bf16.msra.mxu0 %v2536
    %3844 = vmatprep.subr.bf16.mxu0 %v2545
    %3845 = vmatpush1.bf16.msra.mxu0 %v2544
    %3846 = vmatprep.subr.bf16.mxu0 %v2553
    %3847 = vmatpush1.bf16.msra.mxu0 %v2552
    %3848 = vmatprep.subr.bf16.mxu0 %v2561
    %3849 = vmatpush1.bf16.msra.mxu0 %v2560
    %3850 = vmatprep.subr.bf16.mxu0 %v2569
    %3851 = vmatpush1.bf16.msra.mxu0 %v2568
    %3852 = vmatprep.subr.bf16.mxu0 %v2577
    %3853 = vmatpush1.bf16.msra.mxu0 %v2576
    %3854 = vmatprep.subr.bf16.mxu0 %v2585
    %3855 = vmatpush1.bf16.msra.mxu0 %v2584
    %3856 = vmatprep.subr.bf16.mxu0 %v2593
    %3857 = vmatpush1.bf16.msra.mxu0 %v2592
    %3858 = vmatprep.subr.bf16.mxu0 %v2601
    %3859 = vmatpush1.bf16.msra.mxu0 %v2600
    %3860 = vmatprep.subr.bf16.mxu0 %v2609
    %3861 = vmatpush1.bf16.msra.mxu0 %v2608
    %3862 = vmatprep.subr.bf16.mxu0 %v2617
    %3863 = vmatpush1.bf16.msra.mxu0 %v2616
    %3864 = vmatprep.mubr.bf16.mxu0 %v687
    %3865 = vmatmul.mubr.bf16.gmra.mrb[0].mxu0 %v686
    %v3866 = vpop.f32.mrb[0].mxu0
    %v3867 = vadd.f32 %v3826, %v3866
    %v3868 = vpop.f32.mrb[0].mxu0
    %v3869 = vadd.f32 %v3828, %v3868
    %v3870 = vpop.f32.mrb[0].mxu0
    %v3871 = vpop.f32.mrb[0].mxu0
    %3872 = vdwg.mxu0
    %3873 = vmatprep.subr.bf16.mxu0 %v2625
    %3874 = vmatpush1.bf16.msra.mxu0 %v2624
    %3875 = vmatprep.subr.bf16.mxu0 %v2633
    %3876 = vmatpush1.bf16.msra.mxu0 %v2632
    %3877 = vmatprep.subr.bf16.mxu0 %v2641
    %3878 = vmatpush1.bf16.msra.mxu0 %v2640
    %3879 = vmatprep.subr.bf16.mxu0 %v2649
    %3880 = vmatpush1.bf16.msra.mxu0 %v2648
    %3881 = vmatprep.subr.bf16.mxu0 %v2657
    %3882 = vmatpush1.bf16.msra.mxu0 %v2656
    %3883 = vmatprep.subr.bf16.mxu0 %v2665
    %3884 = vmatpush1.bf16.msra.mxu0 %v2664
    %3885 = vmatprep.subr.bf16.mxu0 %v2673
    %3886 = vmatpush1.bf16.msra.mxu0 %v2672
    %3887 = vmatprep.subr.bf16.mxu0 %v2681
    %3888 = vmatpush1.bf16.msra.mxu0 %v2680
    %3889 = vmatprep.subr.bf16.mxu0 %v2689
    %3890 = vmatpush1.bf16.msra.mxu0 %v2688
    %3891 = vmatprep.subr.bf16.mxu0 %v2697
    %3892 = vmatpush1.bf16.msra.mxu0 %v2696
    %3893 = vmatprep.subr.bf16.mxu0 %v2705
    %3894 = vmatpush1.bf16.msra.mxu0 %v2704
    %3895 = vmatprep.subr.bf16.mxu0 %v2713
    %3896 = vmatpush1.bf16.msra.mxu0 %v2712
    %3897 = vmatprep.subr.bf16.mxu0 %v2721
    %3898 = vmatpush1.bf16.msra.mxu0 %v2720
    %3899 = vmatprep.subr.bf16.mxu0 %v2729
    %3900 = vmatpush1.bf16.msra.mxu0 %v2728
    %3901 = vmatprep.subr.bf16.mxu0 %v2737
    %3902 = vmatpush1.bf16.msra.mxu0 %v2736
    %3903 = vmatprep.subr.bf16.mxu0 %v2745
    %3904 = vmatpush1.bf16.msra.mxu0 %v2744
    %3905 = vmatprep.mubr.bf16.mxu0 %v689
    %3906 = vmatmul.mubr.bf16.gmra.mrb[0].mxu0 %v688
    %v3907 = vpop.f32.mrb[0].mxu0
    %v3908 = vadd.f32 %v3867, %v3907
    %v3909 = vpop.f32.mrb[0].mxu0
    %v3910 = vadd.f32 %v3869, %v3909
    %v3911 = vpop.f32.mrb[0].mxu0
    %v3912 = vpop.f32.mrb[0].mxu0
    %3913 = vdwg.mxu0
    %v3914 = vadd.f32 %v146, %v3416
    %v3915 = vadd.f32 %v147, %v3418
    %v3916 = vadd.f32 %v148, %v3580
    %v3917 = vadd.f32 %v149, %v3582
    %v3918 = vadd.f32 %v150, %v3744
    %v3919 = vadd.f32 %v151, %v3746
    %v3920 = vadd.f32 %v152, %v3908
    %v3921 = vadd.f32 %v153, %v3910
    %3922 = vst [vmem:[#allocation2] sm:$0xff] %v3914
    %3923 = vst [vmem:[#allocation2 + $0x8] sm:$0xff] %v3915
    %3924 = vst [vmem:[#allocation2 + $0x10] sm:$0xff] %v3916
    %3925 = vst [vmem:[#allocation2 + $0x18] sm:$0xff] %v3917
    %3926 = vst [vmem:[#allocation2 + $0x20] sm:$0xff] %v3918
    %3927 = vst [vmem:[#allocation2 + $0x28] sm:$0xff] %v3919
    %3928 = vst [vmem:[#allocation2 + $0x30] sm:$0xff] %v3920
    %3929 = vst [vmem:[#allocation2 + $0x38] sm:$0xff] %v3921
    // Predicated region
    $region74: #{model1_forward.1} parent=1 // pred_check
      %p3930 = pneg %p134
    $region75: #{model1_forward.1} parent=1 // pred_check_branch
      %3932 = sbr.rel (%p3930) target = $region77
    $region76: #{model1_forward.1} parent=1 // pred_region
      %v3933 = vld [vmem:[#allocation2] sm:$0xff]
      %v3934 = vld [vmem:[#allocation2 + $0x8] sm:$0xff]
      %v3935 = vld [vmem:[#allocation2 + $0x10] sm:$0xff]
      %v3936 = vld [vmem:[#allocation2 + $0x18] sm:$0xff]
      %v3937 = vld [vmem:[#allocation2 + $0x20] sm:$0xff]
      %v3938 = vld [vmem:[#allocation2 + $0x28] sm:$0xff]
      %v3939 = vld [vmem:[#allocation2 + $0x30] sm:$0xff]
      %v3940 = vld [vmem:[#allocation2 + $0x38] sm:$0xff]
      %v3941 = vld [vmem:[#allocation5] sm:$0xff]
      %v3943 = vlaneseq
      %v3944 = vshrl.u32 %v3943, 7
      %v3945 = vsub.s32 0, %v3944
      %v3946 = vrot.slane %v3941, %v3945
      %v3947 = vlaneseq
      %v3948 = vshrl.u32 %v3947, 7
      %v3949 = vsub.s32 1, %v3948
      %v3950 = vrot.slane %v3941, %v3949
      %v3951 = vlaneseq
      %v3952 = vshrl.u32 %v3951, 7
      %v3953 = vsub.s32 2, %v3952
      %v3954 = vrot.slane %v3941, %v3953
      %v3955 = vlaneseq
      %v3956 = vshrl.u32 %v3955, 7
      %v3957 = vsub.s32 3, %v3956
      %v3958 = vrot.slane %v3941, %v3957
      %v3959 = vlaneseq
      %v3960 = vshrl.u32 %v3959, 7
      %v3961 = vsub.s32 4, %v3960
      %v3962 = vrot.slane %v3941, %v3961
      %v3963 = vlaneseq
      %v3964 = vshrl.u32 %v3963, 7
      %v3965 = vsub.s32 5, %v3964
      %v3966 = vrot.slane %v3941, %v3965
      %v3967 = vlaneseq
      %v3968 = vshrl.u32 %v3967, 7
      %v3969 = vsub.s32 6, %v3968
      %v3970 = vrot.slane %v3941, %v3969
      %v3971 = vlaneseq
      %v3972 = vshrl.u32 %v3971, 7
      %v3973 = vsub.s32 7, %v3972
      %v3974 = vrot.slane %v3941, %v3973
      %v3983 = vadd.f32 %v3933, %v3946
      %v3984 = vadd.f32 %v3934, %v3950
      %v3985 = vadd.f32 %v3935, %v3954
      %v3986 = vadd.f32 %v3936, %v3958
      %v3987 = vadd.f32 %v3937, %v3962
      %v3988 = vadd.f32 %v3938, %v3966
      %v3989 = vadd.f32 %v3939, %v3970
      %v3990 = vadd.f32 %v3940, %v3974
      %v3991 = vpack.c.bf16 %v3983, %v3983
      %v3992 = vpack.c.bf16 %v3984, %v3984
      %v3993 = vpack.c.bf16 %v3985, %v3985
      %v3994 = vpack.c.bf16 %v3986, %v3986
      %v3995 = vpack.c.bf16 %v3987, %v3987
      %v3996 = vpack.c.bf16 %v3988, %v3988
      %v3997 = vpack.c.bf16 %v3989, %v3989
      %v3998 = vpack.c.bf16 %v3990, %v3990
      %v3999 = vld [vmem:[#allocation7] sm:$0xff]
      %v4000 = vld [vmem:[#allocation7 + $0x8] sm:$0xff]
      %v4001 = vld [vmem:[#allocation7 + $0x10] sm:$0xff]
      %v4002 = vld [vmem:[#allocation7 + $0x18] sm:$0xff]
      %v4003 = vld [vmem:[#allocation7 + $0x20] sm:$0xff]
      %v4004 = vld [vmem:[#allocation7 + $0x28] sm:$0xff]
      %v4005 = vld [vmem:[#allocation7 + $0x30] sm:$0xff]
      %v4006 = vld [vmem:[#allocation7 + $0x38] sm:$0xff]
      %v4007 = vld [vmem:[#allocation7 + $0x40] sm:$0xff]
      %v4008 = vld [vmem:[#allocation7 + $0x48] sm:$0xff]
      %v4009 = vld [vmem:[#allocation7 + $0x50] sm:$0xff]
      %v4010 = vld [vmem:[#allocation7 + $0x58] sm:$0xff]
      %v4011 = vld [vmem:[#allocation7 + $0x60] sm:$0xff]
      %v4012 = vld [vmem:[#allocation7 + $0x68] sm:$0xff]
      %v4013 = vld [vmem:[#allocation7 + $0x70] sm:$0xff]
      %v4014 = vld [vmem:[#allocation7 + $0x78] sm:$0xff]
      %v4015 = vld [vmem:[#allocation7 + $0x80] sm:$0xff]
      %v4016 = vld [vmem:[#allocation7 + $0x88] sm:$0xff]
      %v4017 = vld [vmem:[#allocation7 + $0x90] sm:$0xff]
      %v4018 = vld [vmem:[#allocation7 + $0x98] sm:$0xff]
      %v4019 = vld [vmem:[#allocation7 + $0xa0] sm:$0xff]
      %v4020 = vld [vmem:[#allocation7 + $0xa8] sm:$0xff]
      %v4021 = vld [vmem:[#allocation7 + $0xb0] sm:$0xff]
      %v4022 = vld [vmem:[#allocation7 + $0xb8] sm:$0xff]
      %v4023 = vld [vmem:[#allocation7 + $0xc0] sm:$0xff]
      %v4024 = vld [vmem:[#allocation7 + $0xc8] sm:$0xff]
      %v4025 = vld [vmem:[#allocation7 + $0xd0] sm:$0xff]
      %v4026 = vld [vmem:[#allocation7 + $0xd8] sm:$0xff]
      %v4027 = vld [vmem:[#allocation7 + $0xe0] sm:$0xff]
      %v4028 = vld [vmem:[#allocation7 + $0xe8] sm:$0xff]
      %v4029 = vld [vmem:[#allocation7 + $0xf0] sm:$0xff]
      %v4030 = vld [vmem:[#allocation7 + $0xf8] sm:$0xff]
      %v4031 = vld [vmem:[#allocation7 + $0x100] sm:$0xff]
      %v4032 = vld [vmem:[#allocation7 + $0x108] sm:$0xff]
      %v4033 = vld [vmem:[#allocation7 + $0x110] sm:$0xff]
      %v4034 = vld [vmem:[#allocation7 + $0x118] sm:$0xff]
      %v4035 = vld [vmem:[#allocation7 + $0x120] sm:$0xff]
      %v4036 = vld [vmem:[#allocation7 + $0x128] sm:$0xff]
      %v4037 = vld [vmem:[#allocation7 + $0x130] sm:$0xff]
      %v4038 = vld [vmem:[#allocation7 + $0x138] sm:$0xff]
      %v4039 = vld [vmem:[#allocation7 + $0x140] sm:$0xff]
      %v4040 = vld [vmem:[#allocation7 + $0x148] sm:$0xff]
      %v4041 = vld [vmem:[#allocation7 + $0x150] sm:$0xff]
      %v4042 = vld [vmem:[#allocation7 + $0x158] sm:$0xff]
      %v4043 = vld [vmem:[#allocation7 + $0x160] sm:$0xff]
      %v4044 = vld [vmem:[#allocation7 + $0x168] sm:$0xff]
      %v4045 = vld [vmem:[#allocation7 + $0x170] sm:$0xff]
      %v4046 = vld [vmem:[#allocation7 + $0x178] sm:$0xff]
      %v4047 = vld [vmem:[#allocation7 + $0x180] sm:$0xff]
      %v4048 = vld [vmem:[#allocation7 + $0x188] sm:$0xff]
      %v4049 = vld [vmem:[#allocation7 + $0x190] sm:$0xff]
      %v4050 = vld [vmem:[#allocation7 + $0x198] sm:$0xff]
      %v4051 = vld [vmem:[#allocation7 + $0x1a0] sm:$0xff]
      %v4052 = vld [vmem:[#allocation7 + $0x1a8] sm:$0xff]
      %v4053 = vld [vmem:[#allocation7 + $0x1b0] sm:$0xff]
      %v4054 = vld [vmem:[#allocation7 + $0x1b8] sm:$0xff]
      %v4055 = vld [vmem:[#allocation7 + $0x1c0] sm:$0xff]
      %v4056 = vld [vmem:[#allocation7 + $0x1c8] sm:$0xff]
      %v4057 = vld [vmem:[#allocation7 + $0x1d0] sm:$0xff]
      %v4058 = vld [vmem:[#allocation7 + $0x1d8] sm:$0xff]
      %v4059 = vld [vmem:[#allocation7 + $0x1e0] sm:$0xff]
      %v4060 = vld [vmem:[#allocation7 + $0x1e8] sm:$0xff]
      %v4061 = vld [vmem:[#allocation7 + $0x1f0] sm:$0xff]
      %v4062 = vld [vmem:[#allocation7 + $0x1f8] sm:$0xff]
      %v4063 = vld [vmem:[#allocation7 + $0x200] sm:$0xff]
      %v4064 = vld [vmem:[#allocation7 + $0x208] sm:$0xff]
      %v4065 = vld [vmem:[#allocation7 + $0x210] sm:$0xff]
      %v4066 = vld [vmem:[#allocation7 + $0x218] sm:$0xff]
      %v4067 = vld [vmem:[#allocation7 + $0x220] sm:$0xff]
      %v4068 = vld [vmem:[#allocation7 + $0x228] sm:$0xff]
      %v4069 = vld [vmem:[#allocation7 + $0x230] sm:$0xff]
      %v4070 = vld [vmem:[#allocation7 + $0x238] sm:$0xff]
      %v4071 = vld [vmem:[#allocation7 + $0x240] sm:$0xff]
      %v4072 = vld [vmem:[#allocation7 + $0x248] sm:$0xff]
      %v4073 = vld [vmem:[#allocation7 + $0x250] sm:$0xff]
      %v4074 = vld [vmem:[#allocation7 + $0x258] sm:$0xff]
      %v4075 = vld [vmem:[#allocation7 + $0x260] sm:$0xff]
      %v4076 = vld [vmem:[#allocation7 + $0x268] sm:$0xff]
      %v4077 = vld [vmem:[#allocation7 + $0x270] sm:$0xff]
      %v4078 = vld [vmem:[#allocation7 + $0x278] sm:$0xff]
      %v4079 = vld [vmem:[#allocation7 + $0x280] sm:$0xff]
      %v4080 = vld [vmem:[#allocation7 + $0x288] sm:$0xff]
      %v4081 = vld [vmem:[#allocation7 + $0x290] sm:$0xff]
      %v4082 = vld [vmem:[#allocation7 + $0x298] sm:$0xff]
      %v4083 = vld [vmem:[#allocation7 + $0x2a0] sm:$0xff]
      %v4084 = vld [vmem:[#allocation7 + $0x2a8] sm:$0xff]
      %v4085 = vld [vmem:[#allocation7 + $0x2b0] sm:$0xff]
      %v4086 = vld [vmem:[#allocation7 + $0x2b8] sm:$0xff]
      %v4087 = vld [vmem:[#allocation7 + $0x2c0] sm:$0xff]
      %v4088 = vld [vmem:[#allocation7 + $0x2c8] sm:$0xff]
      %v4089 = vld [vmem:[#allocation7 + $0x2d0] sm:$0xff]
      %v4090 = vld [vmem:[#allocation7 + $0x2d8] sm:$0xff]
      %v4091 = vld [vmem:[#allocation7 + $0x2e0] sm:$0xff]
      %v4092 = vld [vmem:[#allocation7 + $0x2e8] sm:$0xff]
      %v4093 = vld [vmem:[#allocation7 + $0x2f0] sm:$0xff]
      %v4094 = vld [vmem:[#allocation7 + $0x2f8] sm:$0xff]
      %v4095 = vld [vmem:[#allocation7 + $0x300] sm:$0xff]
      %v4096 = vld [vmem:[#allocation7 + $0x308] sm:$0xff]
      %v4097 = vld [vmem:[#allocation7 + $0x310] sm:$0xff]
      %v4098 = vld [vmem:[#allocation7 + $0x318] sm:$0xff]
      %v4099 = vld [vmem:[#allocation7 + $0x320] sm:$0xff]
      %v4100 = vld [vmem:[#allocation7 + $0x328] sm:$0xff]
      %v4101 = vld [vmem:[#allocation7 + $0x330] sm:$0xff]
      %v4102 = vld [vmem:[#allocation7 + $0x338] sm:$0xff]
      %v4103 = vld [vmem:[#allocation7 + $0x340] sm:$0xff]
      %v4104 = vld [vmem:[#allocation7 + $0x348] sm:$0xff]
      %v4105 = vld [vmem:[#allocation7 + $0x350] sm:$0xff]
      %v4106 = vld [vmem:[#allocation7 + $0x358] sm:$0xff]
      %v4107 = vld [vmem:[#allocation7 + $0x360] sm:$0xff]
      %v4108 = vld [vmem:[#allocation7 + $0x368] sm:$0xff]
      %v4109 = vld [vmem:[#allocation7 + $0x370] sm:$0xff]
      %v4110 = vld [vmem:[#allocation7 + $0x378] sm:$0xff]
      %v4111 = vld [vmem:[#allocation7 + $0x380] sm:$0xff]
      %v4112 = vld [vmem:[#allocation7 + $0x388] sm:$0xff]
      %v4113 = vld [vmem:[#allocation7 + $0x390] sm:$0xff]
      %v4114 = vld [vmem:[#allocation7 + $0x398] sm:$0xff]
      %v4115 = vld [vmem:[#allocation7 + $0x3a0] sm:$0xff]
      %v4116 = vld [vmem:[#allocation7 + $0x3a8] sm:$0xff]
      %v4117 = vld [vmem:[#allocation7 + $0x3b0] sm:$0xff]
      %v4118 = vld [vmem:[#allocation7 + $0x3b8] sm:$0xff]
      %v4119 = vld [vmem:[#allocation7 + $0x3c0] sm:$0xff]
      %v4120 = vld [vmem:[#allocation7 + $0x3c8] sm:$0xff]
      %v4121 = vld [vmem:[#allocation7 + $0x3d0] sm:$0xff]
      %v4122 = vld [vmem:[#allocation7 + $0x3d8] sm:$0xff]
      %v4123 = vld [vmem:[#allocation7 + $0x3e0] sm:$0xff]
      %v4124 = vld [vmem:[#allocation7 + $0x3e8] sm:$0xff]
      %v4125 = vld [vmem:[#allocation7 + $0x3f0] sm:$0xff]
      %v4126 = vld [vmem:[#allocation7 + $0x3f8] sm:$0xff]
      %v4127 = vld [vmem:[#allocation7 + $0x400] sm:$0xff]
      %v4128 = vld [vmem:[#allocation7 + $0x408] sm:$0xff]
      %v4129 = vld [vmem:[#allocation7 + $0x410] sm:$0xff]
      %v4130 = vld [vmem:[#allocation7 + $0x418] sm:$0xff]
      %v4131 = vld [vmem:[#allocation7 + $0x420] sm:$0xff]
      %v4132 = vld [vmem:[#allocation7 + $0x428] sm:$0xff]
      %v4133 = vld [vmem:[#allocation7 + $0x430] sm:$0xff]
      %v4134 = vld [vmem:[#allocation7 + $0x438] sm:$0xff]
      %v4135 = vld [vmem:[#allocation7 + $0x440] sm:$0xff]
      %v4136 = vld [vmem:[#allocation7 + $0x448] sm:$0xff]
      %v4137 = vld [vmem:[#allocation7 + $0x450] sm:$0xff]
      %v4138 = vld [vmem:[#allocation7 + $0x458] sm:$0xff]
      %v4139 = vld [vmem:[#allocation7 + $0x460] sm:$0xff]
      %v4140 = vld [vmem:[#allocation7 + $0x468] sm:$0xff]
      %v4141 = vld [vmem:[#allocation7 + $0x470] sm:$0xff]
      %v4142 = vld [vmem:[#allocation7 + $0x478] sm:$0xff]
      %v4143 = vld [vmem:[#allocation7 + $0x480] sm:$0xff]
      %v4144 = vld [vmem:[#allocation7 + $0x488] sm:$0xff]
      %v4145 = vld [vmem:[#allocation7 + $0x490] sm:$0xff]
      %v4146 = vld [vmem:[#allocation7 + $0x498] sm:$0xff]
      %v4147 = vld [vmem:[#allocation7 + $0x4a0] sm:$0xff]
      %v4148 = vld [vmem:[#allocation7 + $0x4a8] sm:$0xff]
      %v4149 = vld [vmem:[#allocation7 + $0x4b0] sm:$0xff]
      %v4150 = vld [vmem:[#allocation7 + $0x4b8] sm:$0xff]
      %v4151 = vld [vmem:[#allocation7 + $0x4c0] sm:$0xff]
      %v4152 = vld [vmem:[#allocation7 + $0x4c8] sm:$0xff]
      %v4153 = vld [vmem:[#allocation7 + $0x4d0] sm:$0xff]
      %v4154 = vld [vmem:[#allocation7 + $0x4d8] sm:$0xff]
      %v4155 = vld [vmem:[#allocation7 + $0x4e0] sm:$0xff]
      %v4156 = vld [vmem:[#allocation7 + $0x4e8] sm:$0xff]
      %v4157 = vld [vmem:[#allocation7 + $0x4f0] sm:$0xff]
      %v4158 = vld [vmem:[#allocation7 + $0x4f8] sm:$0xff]
      %v4159 = vld [vmem:[#allocation7 + $0x500] sm:$0xff]
      %v4160 = vld [vmem:[#allocation7 + $0x508] sm:$0xff]
      %v4161 = vld [vmem:[#allocation7 + $0x510] sm:$0xff]
      %v4162 = vld [vmem:[#allocation7 + $0x518] sm:$0xff]
      %v4163 = vld [vmem:[#allocation7 + $0x520] sm:$0xff]
      %v4164 = vld [vmem:[#allocation7 + $0x528] sm:$0xff]
      %v4165 = vld [vmem:[#allocation7 + $0x530] sm:$0xff]
      %v4166 = vld [vmem:[#allocation7 + $0x538] sm:$0xff]
      %v4167 = vld [vmem:[#allocation7 + $0x540] sm:$0xff]
      %v4168 = vld [vmem:[#allocation7 + $0x548] sm:$0xff]
      %v4169 = vld [vmem:[#allocation7 + $0x550] sm:$0xff]
      %v4170 = vld [vmem:[#allocation7 + $0x558] sm:$0xff]
      %v4171 = vld [vmem:[#allocation7 + $0x560] sm:$0xff]
      %v4172 = vld [vmem:[#allocation7 + $0x568] sm:$0xff]
      %v4173 = vld [vmem:[#allocation7 + $0x570] sm:$0xff]
      %v4174 = vld [vmem:[#allocation7 + $0x578] sm:$0xff]
      %v4175 = vld [vmem:[#allocation7 + $0x580] sm:$0xff]
      %v4176 = vld [vmem:[#allocation7 + $0x588] sm:$0xff]
      %v4177 = vld [vmem:[#allocation7 + $0x590] sm:$0xff]
      %v4178 = vld [vmem:[#allocation7 + $0x598] sm:$0xff]
      %v4179 = vld [vmem:[#allocation7 + $0x5a0] sm:$0xff]
      %v4180 = vld [vmem:[#allocation7 + $0x5a8] sm:$0xff]
      %v4181 = vld [vmem:[#allocation7 + $0x5b0] sm:$0xff]
      %v4182 = vld [vmem:[#allocation7 + $0x5b8] sm:$0xff]
      %v4183 = vld [vmem:[#allocation7 + $0x5c0] sm:$0xff]
      %v4184 = vld [vmem:[#allocation7 + $0x5c8] sm:$0xff]
      %v4185 = vld [vmem:[#allocation7 + $0x5d0] sm:$0xff]
      %v4186 = vld [vmem:[#allocation7 + $0x5d8] sm:$0xff]
      %v4187 = vld [vmem:[#allocation7 + $0x5e0] sm:$0xff]
      %v4188 = vld [vmem:[#allocation7 + $0x5e8] sm:$0xff]
      %v4189 = vld [vmem:[#allocation7 + $0x5f0] sm:$0xff]
      %v4190 = vld [vmem:[#allocation7 + $0x5f8] sm:$0xff]
      %v4191 = vld [vmem:[#allocation7 + $0x600] sm:$0xff]
      %v4192 = vld [vmem:[#allocation7 + $0x608] sm:$0xff]
      %v4193 = vld [vmem:[#allocation7 + $0x610] sm:$0xff]
      %v4194 = vld [vmem:[#allocation7 + $0x618] sm:$0xff]
      %v4195 = vld [vmem:[#allocation7 + $0x620] sm:$0xff]
      %v4196 = vld [vmem:[#allocation7 + $0x628] sm:$0xff]
      %v4197 = vld [vmem:[#allocation7 + $0x630] sm:$0xff]
      %v4198 = vld [vmem:[#allocation7 + $0x638] sm:$0xff]
      %v4199 = vld [vmem:[#allocation7 + $0x640] sm:$0xff]
      %v4200 = vld [vmem:[#allocation7 + $0x648] sm:$0xff]
      %v4201 = vld [vmem:[#allocation7 + $0x650] sm:$0xff]
      %v4202 = vld [vmem:[#allocation7 + $0x658] sm:$0xff]
      %v4203 = vld [vmem:[#allocation7 + $0x660] sm:$0xff]
      %v4204 = vld [vmem:[#allocation7 + $0x668] sm:$0xff]
      %v4205 = vld [vmem:[#allocation7 + $0x670] sm:$0xff]
      %v4206 = vld [vmem:[#allocation7 + $0x678] sm:$0xff]
      %v4207 = vld [vmem:[#allocation7 + $0x680] sm:$0xff]
      %v4208 = vld [vmem:[#allocation7 + $0x688] sm:$0xff]
      %v4209 = vld [vmem:[#allocation7 + $0x690] sm:$0xff]
      %v4210 = vld [vmem:[#allocation7 + $0x698] sm:$0xff]
      %v4211 = vld [vmem:[#allocation7 + $0x6a0] sm:$0xff]
      %v4212 = vld [vmem:[#allocation7 + $0x6a8] sm:$0xff]
      %v4213 = vld [vmem:[#allocation7 + $0x6b0] sm:$0xff]
      %v4214 = vld [vmem:[#allocation7 + $0x6b8] sm:$0xff]
      %v4215 = vld [vmem:[#allocation7 + $0x6c0] sm:$0xff]
      %v4216 = vld [vmem:[#allocation7 + $0x6c8] sm:$0xff]
      %v4217 = vld [vmem:[#allocation7 + $0x6d0] sm:$0xff]
      %v4218 = vld [vmem:[#allocation7 + $0x6d8] sm:$0xff]
      %v4219 = vld [vmem:[#allocation7 + $0x6e0] sm:$0xff]
      %v4220 = vld [vmem:[#allocation7 + $0x6e8] sm:$0xff]
      %v4221 = vld [vmem:[#allocation7 + $0x6f0] sm:$0xff]
      %v4222 = vld [vmem:[#allocation7 + $0x6f8] sm:$0xff]
      %v4223 = vld [vmem:[#allocation7 + $0x700] sm:$0xff]
      %v4224 = vld [vmem:[#allocation7 + $0x708] sm:$0xff]
      %v4225 = vld [vmem:[#allocation7 + $0x710] sm:$0xff]
      %v4226 = vld [vmem:[#allocation7 + $0x718] sm:$0xff]
      %v4227 = vld [vmem:[#allocation7 + $0x720] sm:$0xff]
      %v4228 = vld [vmem:[#allocation7 + $0x728] sm:$0xff]
      %v4229 = vld [vmem:[#allocation7 + $0x730] sm:$0xff]
      %v4230 = vld [vmem:[#allocation7 + $0x738] sm:$0xff]
      %v4231 = vld [vmem:[#allocation7 + $0x740] sm:$0xff]
      %v4232 = vld [vmem:[#allocation7 + $0x748] sm:$0xff]
      %v4233 = vld [vmem:[#allocation7 + $0x750] sm:$0xff]
      %v4234 = vld [vmem:[#allocation7 + $0x758] sm:$0xff]
      %v4235 = vld [vmem:[#allocation7 + $0x760] sm:$0xff]
      %v4236 = vld [vmem:[#allocation7 + $0x768] sm:$0xff]
      %v4237 = vld [vmem:[#allocation7 + $0x770] sm:$0xff]
      %v4238 = vld [vmem:[#allocation7 + $0x778] sm:$0xff]
      %v4239 = vld [vmem:[#allocation7 + $0x780] sm:$0xff]
      %v4240 = vld [vmem:[#allocation7 + $0x788] sm:$0xff]
      %v4241 = vld [vmem:[#allocation7 + $0x790] sm:$0xff]
      %v4242 = vld [vmem:[#allocation7 + $0x798] sm:$0xff]
      %v4243 = vld [vmem:[#allocation7 + $0x7a0] sm:$0xff]
      %v4244 = vld [vmem:[#allocation7 + $0x7a8] sm:$0xff]
      %v4245 = vld [vmem:[#allocation7 + $0x7b0] sm:$0xff]
      %v4246 = vld [vmem:[#allocation7 + $0x7b8] sm:$0xff]
      %v4247 = vld [vmem:[#allocation7 + $0x7c0] sm:$0xff]
      %v4248 = vld [vmem:[#allocation7 + $0x7c8] sm:$0xff]
      %v4249 = vld [vmem:[#allocation7 + $0x7d0] sm:$0xff]
      %v4250 = vld [vmem:[#allocation7 + $0x7d8] sm:$0xff]
      %v4251 = vld [vmem:[#allocation7 + $0x7e0] sm:$0xff]
      %v4252 = vld [vmem:[#allocation7 + $0x7e8] sm:$0xff]
      %v4253 = vld [vmem:[#allocation7 + $0x7f0] sm:$0xff]
      %v4254 = vld [vmem:[#allocation7 + $0x7f8] sm:$0xff]
      %v4255 = vld [vmem:[#allocation8] sm:$0xf]
      %v4257 = vlaneseq
      %v4258 = vshrl.u32 %v4257, 7
      %v4259 = vsub.s32 0, %v4258
      %v4260 = vrot.slane %v4255, %v4259
      %v4261 = vlaneseq
      %v4262 = vshrl.u32 %v4261, 7
      %v4263 = vsub.s32 1, %v4262
      %v4264 = vrot.slane %v4255, %v4263
      %v4265 = vlaneseq
      %v4266 = vshrl.u32 %v4265, 7
      %v4267 = vsub.s32 2, %v4266
      %v4268 = vrot.slane %v4255, %v4267
      %v4269 = vlaneseq
      %v4270 = vshrl.u32 %v4269, 7
      %v4271 = vsub.s32 3, %v4270
      %v4272 = vrot.slane %v4255, %v4271
      %v4533 = vunpack.c.l.b16 %v3999
      %v4534 = vunpack.c.h.b16 %v3999
      %v4535 = vunpack.c.l.b16 %v4000
      %v4536 = vunpack.c.h.b16 %v4000
      %v4537 = vunpack.c.l.b16 %v4001
      %v4538 = vunpack.c.h.b16 %v4001
      %v4539 = vunpack.c.l.b16 %v4002
      %v4540 = vunpack.c.h.b16 %v4002
      %v4541 = vunpack.c.l.b16 %v4003
      %v4542 = vunpack.c.h.b16 %v4003
      %v4543 = vunpack.c.l.b16 %v4004
      %v4544 = vunpack.c.h.b16 %v4004
      %v4545 = vunpack.c.l.b16 %v4005
      %v4546 = vunpack.c.h.b16 %v4005
      %v4547 = vunpack.c.l.b16 %v4006
      %v4548 = vunpack.c.h.b16 %v4006
      %v4549 = vunpack.c.l.b16 %v4007
      %v4550 = vunpack.c.h.b16 %v4007
      %v4551 = vunpack.c.l.b16 %v4008
      %v4552 = vunpack.c.h.b16 %v4008
      %v4553 = vunpack.c.l.b16 %v4009
      %v4554 = vunpack.c.h.b16 %v4009
      %v4555 = vunpack.c.l.b16 %v4010
      %v4556 = vunpack.c.h.b16 %v4010
      %v4557 = vunpack.c.l.b16 %v4011
      %v4558 = vunpack.c.h.b16 %v4011
      %v4559 = vunpack.c.l.b16 %v4012
      %v4560 = vunpack.c.h.b16 %v4012
      %v4561 = vunpack.c.l.b16 %v4013
      %v4562 = vunpack.c.h.b16 %v4013
      %v4563 = vunpack.c.l.b16 %v4014
      %v4564 = vunpack.c.h.b16 %v4014
      %v4565 = vunpack.c.l.b16 %v4015
      %v4566 = vunpack.c.h.b16 %v4015
      %v4567 = vunpack.c.l.b16 %v4016
      %v4568 = vunpack.c.h.b16 %v4016
      %v4569 = vunpack.c.l.b16 %v4017
      %v4570 = vunpack.c.h.b16 %v4017
      %v4571 = vunpack.c.l.b16 %v4018
      %v4572 = vunpack.c.h.b16 %v4018
      %v4573 = vunpack.c.l.b16 %v4019
      %v4574 = vunpack.c.h.b16 %v4019
      %v4575 = vunpack.c.l.b16 %v4020
      %v4576 = vunpack.c.h.b16 %v4020
      %v4577 = vunpack.c.l.b16 %v4021
      %v4578 = vunpack.c.h.b16 %v4021
      %v4579 = vunpack.c.l.b16 %v4022
      %v4580 = vunpack.c.h.b16 %v4022
      %v4581 = vunpack.c.l.b16 %v4023
      %v4582 = vunpack.c.h.b16 %v4023
      %v4583 = vunpack.c.l.b16 %v4024
      %v4584 = vunpack.c.h.b16 %v4024
      %v4585 = vunpack.c.l.b16 %v4025
      %v4586 = vunpack.c.h.b16 %v4025
      %v4587 = vunpack.c.l.b16 %v4026
      %v4588 = vunpack.c.h.b16 %v4026
      %v4589 = vunpack.c.l.b16 %v4027
      %v4590 = vunpack.c.h.b16 %v4027
      %v4591 = vunpack.c.l.b16 %v4028
      %v4592 = vunpack.c.h.b16 %v4028
      %v4593 = vunpack.c.l.b16 %v4029
      %v4594 = vunpack.c.h.b16 %v4029
      %v4595 = vunpack.c.l.b16 %v4030
      %v4596 = vunpack.c.h.b16 %v4030
      %v4597 = vunpack.c.l.b16 %v4031
      %v4598 = vunpack.c.h.b16 %v4031
      %v4599 = vunpack.c.l.b16 %v4032
      %v4600 = vunpack.c.h.b16 %v4032
      %v4601 = vunpack.c.l.b16 %v4033
      %v4602 = vunpack.c.h.b16 %v4033
      %v4603 = vunpack.c.l.b16 %v4034
      %v4604 = vunpack.c.h.b16 %v4034
      %v4605 = vunpack.c.l.b16 %v4035
      %v4606 = vunpack.c.h.b16 %v4035
      %v4607 = vunpack.c.l.b16 %v4036
      %v4608 = vunpack.c.h.b16 %v4036
      %v4609 = vunpack.c.l.b16 %v4037
      %v4610 = vunpack.c.h.b16 %v4037
      %v4611 = vunpack.c.l.b16 %v4038
      %v4612 = vunpack.c.h.b16 %v4038
      %v4613 = vunpack.c.l.b16 %v4039
      %v4614 = vunpack.c.h.b16 %v4039
      %v4615 = vunpack.c.l.b16 %v4040
      %v4616 = vunpack.c.h.b16 %v4040
      %v4617 = vunpack.c.l.b16 %v4041
      %v4618 = vunpack.c.h.b16 %v4041
      %v4619 = vunpack.c.l.b16 %v4042
      %v4620 = vunpack.c.h.b16 %v4042
      %v4621 = vunpack.c.l.b16 %v4043
      %v4622 = vunpack.c.h.b16 %v4043
      %v4623 = vunpack.c.l.b16 %v4044
      %v4624 = vunpack.c.h.b16 %v4044
      %v4625 = vunpack.c.l.b16 %v4045
      %v4626 = vunpack.c.h.b16 %v4045
      %v4627 = vunpack.c.l.b16 %v4046
      %v4628 = vunpack.c.h.b16 %v4046
      %v4629 = vunpack.c.l.b16 %v4047
      %v4630 = vunpack.c.h.b16 %v4047
      %v4631 = vunpack.c.l.b16 %v4048
      %v4632 = vunpack.c.h.b16 %v4048
      %v4633 = vunpack.c.l.b16 %v4049
      %v4634 = vunpack.c.h.b16 %v4049
      %v4635 = vunpack.c.l.b16 %v4050
      %v4636 = vunpack.c.h.b16 %v4050
      %v4637 = vunpack.c.l.b16 %v4051
      %v4638 = vunpack.c.h.b16 %v4051
      %v4639 = vunpack.c.l.b16 %v4052
      %v4640 = vunpack.c.h.b16 %v4052
      %v4641 = vunpack.c.l.b16 %v4053
      %v4642 = vunpack.c.h.b16 %v4053
      %v4643 = vunpack.c.l.b16 %v4054
      %v4644 = vunpack.c.h.b16 %v4054
      %v4645 = vunpack.c.l.b16 %v4055
      %v4646 = vunpack.c.h.b16 %v4055
      %v4647 = vunpack.c.l.b16 %v4056
      %v4648 = vunpack.c.h.b16 %v4056
      %v4649 = vunpack.c.l.b16 %v4057
      %v4650 = vunpack.c.h.b16 %v4057
      %v4651 = vunpack.c.l.b16 %v4058
      %v4652 = vunpack.c.h.b16 %v4058
      %v4653 = vunpack.c.l.b16 %v4059
      %v4654 = vunpack.c.h.b16 %v4059
      %v4655 = vunpack.c.l.b16 %v4060
      %v4656 = vunpack.c.h.b16 %v4060
      %v4657 = vunpack.c.l.b16 %v4061
      %v4658 = vunpack.c.h.b16 %v4061
      %v4659 = vunpack.c.l.b16 %v4062
      %v4660 = vunpack.c.h.b16 %v4062
      %v4661 = vunpack.c.l.b16 %v4063
      %v4662 = vunpack.c.h.b16 %v4063
      %v4663 = vunpack.c.l.b16 %v4064
      %v4664 = vunpack.c.h.b16 %v4064
      %v4665 = vunpack.c.l.b16 %v4065
      %v4666 = vunpack.c.h.b16 %v4065
      %v4667 = vunpack.c.l.b16 %v4066
      %v4668 = vunpack.c.h.b16 %v4066
      %v4669 = vunpack.c.l.b16 %v4067
      %v4670 = vunpack.c.h.b16 %v4067
      %v4671 = vunpack.c.l.b16 %v4068
      %v4672 = vunpack.c.h.b16 %v4068
      %v4673 = vunpack.c.l.b16 %v4069
      %v4674 = vunpack.c.h.b16 %v4069
      %v4675 = vunpack.c.l.b16 %v4070
      %v4676 = vunpack.c.h.b16 %v4070
      %v4677 = vunpack.c.l.b16 %v4071
      %v4678 = vunpack.c.h.b16 %v4071
      %v4679 = vunpack.c.l.b16 %v4072
      %v4680 = vunpack.c.h.b16 %v4072
      %v4681 = vunpack.c.l.b16 %v4073
      %v4682 = vunpack.c.h.b16 %v4073
      %v4683 = vunpack.c.l.b16 %v4074
      %v4684 = vunpack.c.h.b16 %v4074
      %v4685 = vunpack.c.l.b16 %v4075
      %v4686 = vunpack.c.h.b16 %v4075
      %v4687 = vunpack.c.l.b16 %v4076
      %v4688 = vunpack.c.h.b16 %v4076
      %v4689 = vunpack.c.l.b16 %v4077
      %v4690 = vunpack.c.h.b16 %v4077
      %v4691 = vunpack.c.l.b16 %v4078
      %v4692 = vunpack.c.h.b16 %v4078
      %v4693 = vunpack.c.l.b16 %v4079
      %v4694 = vunpack.c.h.b16 %v4079
      %v4695 = vunpack.c.l.b16 %v4080
      %v4696 = vunpack.c.h.b16 %v4080
      %v4697 = vunpack.c.l.b16 %v4081
      %v4698 = vunpack.c.h.b16 %v4081
      %v4699 = vunpack.c.l.b16 %v4082
      %v4700 = vunpack.c.h.b16 %v4082
      %v4701 = vunpack.c.l.b16 %v4083
      %v4702 = vunpack.c.h.b16 %v4083
      %v4703 = vunpack.c.l.b16 %v4084
      %v4704 = vunpack.c.h.b16 %v4084
      %v4705 = vunpack.c.l.b16 %v4085
      %v4706 = vunpack.c.h.b16 %v4085
      %v4707 = vunpack.c.l.b16 %v4086
      %v4708 = vunpack.c.h.b16 %v4086
      %v4709 = vunpack.c.l.b16 %v4087
      %v4710 = vunpack.c.h.b16 %v4087
      %v4711 = vunpack.c.l.b16 %v4088
      %v4712 = vunpack.c.h.b16 %v4088
      %v4713 = vunpack.c.l.b16 %v4089
      %v4714 = vunpack.c.h.b16 %v4089
      %v4715 = vunpack.c.l.b16 %v4090
      %v4716 = vunpack.c.h.b16 %v4090
      %v4717 = vunpack.c.l.b16 %v4091
      %v4718 = vunpack.c.h.b16 %v4091
      %v4719 = vunpack.c.l.b16 %v4092
      %v4720 = vunpack.c.h.b16 %v4092
      %v4721 = vunpack.c.l.b16 %v4093
      %v4722 = vunpack.c.h.b16 %v4093
      %v4723 = vunpack.c.l.b16 %v4094
      %v4724 = vunpack.c.h.b16 %v4094
      %v4725 = vunpack.c.l.b16 %v4095
      %v4726 = vunpack.c.h.b16 %v4095
      %v4727 = vunpack.c.l.b16 %v4096
      %v4728 = vunpack.c.h.b16 %v4096
      %v4729 = vunpack.c.l.b16 %v4097
      %v4730 = vunpack.c.h.b16 %v4097
      %v4731 = vunpack.c.l.b16 %v4098
      %v4732 = vunpack.c.h.b16 %v4098
      %v4733 = vunpack.c.l.b16 %v4099
      %v4734 = vunpack.c.h.b16 %v4099
      %v4735 = vunpack.c.l.b16 %v4100
      %v4736 = vunpack.c.h.b16 %v4100
      %v4737 = vunpack.c.l.b16 %v4101
      %v4738 = vunpack.c.h.b16 %v4101
      %v4739 = vunpack.c.l.b16 %v4102
      %v4740 = vunpack.c.h.b16 %v4102
      %v4741 = vunpack.c.l.b16 %v4103
      %v4742 = vunpack.c.h.b16 %v4103
      %v4743 = vunpack.c.l.b16 %v4104
      %v4744 = vunpack.c.h.b16 %v4104
      %v4745 = vunpack.c.l.b16 %v4105
      %v4746 = vunpack.c.h.b16 %v4105
      %v4747 = vunpack.c.l.b16 %v4106
      %v4748 = vunpack.c.h.b16 %v4106
      %v4749 = vunpack.c.l.b16 %v4107
      %v4750 = vunpack.c.h.b16 %v4107
      %v4751 = vunpack.c.l.b16 %v4108
      %v4752 = vunpack.c.h.b16 %v4108
      %v4753 = vunpack.c.l.b16 %v4109
      %v4754 = vunpack.c.h.b16 %v4109
      %v4755 = vunpack.c.l.b16 %v4110
      %v4756 = vunpack.c.h.b16 %v4110
      %v4757 = vunpack.c.l.b16 %v4111
      %v4758 = vunpack.c.h.b16 %v4111
      %v4759 = vunpack.c.l.b16 %v4112
      %v4760 = vunpack.c.h.b16 %v4112
      %v4761 = vunpack.c.l.b16 %v4113
      %v4762 = vunpack.c.h.b16 %v4113
      %v4763 = vunpack.c.l.b16 %v4114
      %v4764 = vunpack.c.h.b16 %v4114
      %v4765 = vunpack.c.l.b16 %v4115
      %v4766 = vunpack.c.h.b16 %v4115
      %v4767 = vunpack.c.l.b16 %v4116
      %v4768 = vunpack.c.h.b16 %v4116
      %v4769 = vunpack.c.l.b16 %v4117
      %v4770 = vunpack.c.h.b16 %v4117
      %v4771 = vunpack.c.l.b16 %v4118
      %v4772 = vunpack.c.h.b16 %v4118
      %v4773 = vunpack.c.l.b16 %v4119
      %v4774 = vunpack.c.h.b16 %v4119
      %v4775 = vunpack.c.l.b16 %v4120
      %v4776 = vunpack.c.h.b16 %v4120
      %v4777 = vunpack.c.l.b16 %v4121
      %v4778 = vunpack.c.h.b16 %v4121
      %v4779 = vunpack.c.l.b16 %v4122
      %v4780 = vunpack.c.h.b16 %v4122
      %v4781 = vunpack.c.l.b16 %v4123
      %v4782 = vunpack.c.h.b16 %v4123
      %v4783 = vunpack.c.l.b16 %v4124
      %v4784 = vunpack.c.h.b16 %v4124
      %v4785 = vunpack.c.l.b16 %v4125
      %v4786 = vunpack.c.h.b16 %v4125
      %v4787 = vunpack.c.l.b16 %v4126
      %v4788 = vunpack.c.h.b16 %v4126
      %v4789 = vunpack.c.l.b16 %v4127
      %v4790 = vunpack.c.h.b16 %v4127
      %v4791 = vunpack.c.l.b16 %v4128
      %v4792 = vunpack.c.h.b16 %v4128
      %v4793 = vunpack.c.l.b16 %v4129
      %v4794 = vunpack.c.h.b16 %v4129
      %v4795 = vunpack.c.l.b16 %v4130
      %v4796 = vunpack.c.h.b16 %v4130
      %v4797 = vunpack.c.l.b16 %v4131
      %v4798 = vunpack.c.h.b16 %v4131
      %v4799 = vunpack.c.l.b16 %v4132
      %v4800 = vunpack.c.h.b16 %v4132
      %v4801 = vunpack.c.l.b16 %v4133
      %v4802 = vunpack.c.h.b16 %v4133
      %v4803 = vunpack.c.l.b16 %v4134
      %v4804 = vunpack.c.h.b16 %v4134
      %v4805 = vunpack.c.l.b16 %v4135
      %v4806 = vunpack.c.h.b16 %v4135
      %v4807 = vunpack.c.l.b16 %v4136
      %v4808 = vunpack.c.h.b16 %v4136
      %v4809 = vunpack.c.l.b16 %v4137
      %v4810 = vunpack.c.h.b16 %v4137
      %v4811 = vunpack.c.l.b16 %v4138
      %v4812 = vunpack.c.h.b16 %v4138
      %v4813 = vunpack.c.l.b16 %v4139
      %v4814 = vunpack.c.h.b16 %v4139
      %v4815 = vunpack.c.l.b16 %v4140
      %v4816 = vunpack.c.h.b16 %v4140
      %v4817 = vunpack.c.l.b16 %v4141
      %v4818 = vunpack.c.h.b16 %v4141
      %v4819 = vunpack.c.l.b16 %v4142
      %v4820 = vunpack.c.h.b16 %v4142
      %v4821 = vunpack.c.l.b16 %v4143
      %v4822 = vunpack.c.h.b16 %v4143
      %v4823 = vunpack.c.l.b16 %v4144
      %v4824 = vunpack.c.h.b16 %v4144
      %v4825 = vunpack.c.l.b16 %v4145
      %v4826 = vunpack.c.h.b16 %v4145
      %v4827 = vunpack.c.l.b16 %v4146
      %v4828 = vunpack.c.h.b16 %v4146
      %v4829 = vunpack.c.l.b16 %v4147
      %v4830 = vunpack.c.h.b16 %v4147
      %v4831 = vunpack.c.l.b16 %v4148
      %v4832 = vunpack.c.h.b16 %v4148
      %v4833 = vunpack.c.l.b16 %v4149
      %v4834 = vunpack.c.h.b16 %v4149
      %v4835 = vunpack.c.l.b16 %v4150
      %v4836 = vunpack.c.h.b16 %v4150
      %v4837 = vunpack.c.l.b16 %v4151
      %v4838 = vunpack.c.h.b16 %v4151
      %v4839 = vunpack.c.l.b16 %v4152
      %v4840 = vunpack.c.h.b16 %v4152
      %v4841 = vunpack.c.l.b16 %v4153
      %v4842 = vunpack.c.h.b16 %v4153
      %v4843 = vunpack.c.l.b16 %v4154
      %v4844 = vunpack.c.h.b16 %v4154
      %v4845 = vunpack.c.l.b16 %v4155
      %v4846 = vunpack.c.h.b16 %v4155
      %v4847 = vunpack.c.l.b16 %v4156
      %v4848 = vunpack.c.h.b16 %v4156
      %v4849 = vunpack.c.l.b16 %v4157
      %v4850 = vunpack.c.h.b16 %v4157
      %v4851 = vunpack.c.l.b16 %v4158
      %v4852 = vunpack.c.h.b16 %v4158
      %v4853 = vunpack.c.l.b16 %v4159
      %v4854 = vunpack.c.h.b16 %v4159
      %v4855 = vunpack.c.l.b16 %v4160
      %v4856 = vunpack.c.h.b16 %v4160
      %v4857 = vunpack.c.l.b16 %v4161
      %v4858 = vunpack.c.h.b16 %v4161
      %v4859 = vunpack.c.l.b16 %v4162
      %v4860 = vunpack.c.h.b16 %v4162
      %v4861 = vunpack.c.l.b16 %v4163
      %v4862 = vunpack.c.h.b16 %v4163
      %v4863 = vunpack.c.l.b16 %v4164
      %v4864 = vunpack.c.h.b16 %v4164
      %v4865 = vunpack.c.l.b16 %v4165
      %v4866 = vunpack.c.h.b16 %v4165
      %v4867 = vunpack.c.l.b16 %v4166
      %v4868 = vunpack.c.h.b16 %v4166
      %v4869 = vunpack.c.l.b16 %v4167
      %v4870 = vunpack.c.h.b16 %v4167
      %v4871 = vunpack.c.l.b16 %v4168
      %v4872 = vunpack.c.h.b16 %v4168
      %v4873 = vunpack.c.l.b16 %v4169
      %v4874 = vunpack.c.h.b16 %v4169
      %v4875 = vunpack.c.l.b16 %v4170
      %v4876 = vunpack.c.h.b16 %v4170
      %v4877 = vunpack.c.l.b16 %v4171
      %v4878 = vunpack.c.h.b16 %v4171
      %v4879 = vunpack.c.l.b16 %v4172
      %v4880 = vunpack.c.h.b16 %v4172
      %v4881 = vunpack.c.l.b16 %v4173
      %v4882 = vunpack.c.h.b16 %v4173
      %v4883 = vunpack.c.l.b16 %v4174
      %v4884 = vunpack.c.h.b16 %v4174
      %v4885 = vunpack.c.l.b16 %v4175
      %v4886 = vunpack.c.h.b16 %v4175
      %v4887 = vunpack.c.l.b16 %v4176
      %v4888 = vunpack.c.h.b16 %v4176
      %v4889 = vunpack.c.l.b16 %v4177
      %v4890 = vunpack.c.h.b16 %v4177
      %v4891 = vunpack.c.l.b16 %v4178
      %v4892 = vunpack.c.h.b16 %v4178
      %v4893 = vunpack.c.l.b16 %v4179
      %v4894 = vunpack.c.h.b16 %v4179
      %v4895 = vunpack.c.l.b16 %v4180
      %v4896 = vunpack.c.h.b16 %v4180
      %v4897 = vunpack.c.l.b16 %v4181
      %v4898 = vunpack.c.h.b16 %v4181
      %v4899 = vunpack.c.l.b16 %v4182
      %v4900 = vunpack.c.h.b16 %v4182
      %v4901 = vunpack.c.l.b16 %v4183
      %v4902 = vunpack.c.h.b16 %v4183
      %v4903 = vunpack.c.l.b16 %v4184
      %v4904 = vunpack.c.h.b16 %v4184
      %v4905 = vunpack.c.l.b16 %v4185
      %v4906 = vunpack.c.h.b16 %v4185
      %v4907 = vunpack.c.l.b16 %v4186
      %v4908 = vunpack.c.h.b16 %v4186
      %v4909 = vunpack.c.l.b16 %v4187
      %v4910 = vunpack.c.h.b16 %v4187
      %v4911 = vunpack.c.l.b16 %v4188
      %v4912 = vunpack.c.h.b16 %v4188
      %v4913 = vunpack.c.l.b16 %v4189
      %v4914 = vunpack.c.h.b16 %v4189
      %v4915 = vunpack.c.l.b16 %v4190
      %v4916 = vunpack.c.h.b16 %v4190
      %v4917 = vunpack.c.l.b16 %v4191
      %v4918 = vunpack.c.h.b16 %v4191
      %v4919 = vunpack.c.l.b16 %v4192
      %v4920 = vunpack.c.h.b16 %v4192
      %v4921 = vunpack.c.l.b16 %v4193
      %v4922 = vunpack.c.h.b16 %v4193
      %v4923 = vunpack.c.l.b16 %v4194
      %v4924 = vunpack.c.h.b16 %v4194
      %v4925 = vunpack.c.l.b16 %v4195
      %v4926 = vunpack.c.h.b16 %v4195
      %v4927 = vunpack.c.l.b16 %v4196
      %v4928 = vunpack.c.h.b16 %v4196
      %v4929 = vunpack.c.l.b16 %v4197
      %v4930 = vunpack.c.h.b16 %v4197
      %v4931 = vunpack.c.l.b16 %v4198
      %v4932 = vunpack.c.h.b16 %v4198
      %v4933 = vunpack.c.l.b16 %v4199
      %v4934 = vunpack.c.h.b16 %v4199
      %v4935 = vunpack.c.l.b16 %v4200
      %v4936 = vunpack.c.h.b16 %v4200
      %v4937 = vunpack.c.l.b16 %v4201
      %v4938 = vunpack.c.h.b16 %v4201
      %v4939 = vunpack.c.l.b16 %v4202
      %v4940 = vunpack.c.h.b16 %v4202
      %v4941 = vunpack.c.l.b16 %v4203
      %v4942 = vunpack.c.h.b16 %v4203
      %v4943 = vunpack.c.l.b16 %v4204
      %v4944 = vunpack.c.h.b16 %v4204
      %v4945 = vunpack.c.l.b16 %v4205
      %v4946 = vunpack.c.h.b16 %v4205
      %v4947 = vunpack.c.l.b16 %v4206
      %v4948 = vunpack.c.h.b16 %v4206
      %v4949 = vunpack.c.l.b16 %v4207
      %v4950 = vunpack.c.h.b16 %v4207
      %v4951 = vunpack.c.l.b16 %v4208
      %v4952 = vunpack.c.h.b16 %v4208
      %v4953 = vunpack.c.l.b16 %v4209
      %v4954 = vunpack.c.h.b16 %v4209
      %v4955 = vunpack.c.l.b16 %v4210
      %v4956 = vunpack.c.h.b16 %v4210
      %v4957 = vunpack.c.l.b16 %v4211
      %v4958 = vunpack.c.h.b16 %v4211
      %v4959 = vunpack.c.l.b16 %v4212
      %v4960 = vunpack.c.h.b16 %v4212
      %v4961 = vunpack.c.l.b16 %v4213
      %v4962 = vunpack.c.h.b16 %v4213
      %v4963 = vunpack.c.l.b16 %v4214
      %v4964 = vunpack.c.h.b16 %v4214
      %v4965 = vunpack.c.l.b16 %v4215
      %v4966 = vunpack.c.h.b16 %v4215
      %v4967 = vunpack.c.l.b16 %v4216
      %v4968 = vunpack.c.h.b16 %v4216
      %v4969 = vunpack.c.l.b16 %v4217
      %v4970 = vunpack.c.h.b16 %v4217
      %v4971 = vunpack.c.l.b16 %v4218
      %v4972 = vunpack.c.h.b16 %v4218
      %v4973 = vunpack.c.l.b16 %v4219
      %v4974 = vunpack.c.h.b16 %v4219
      %v4975 = vunpack.c.l.b16 %v4220
      %v4976 = vunpack.c.h.b16 %v4220
      %v4977 = vunpack.c.l.b16 %v4221
      %v4978 = vunpack.c.h.b16 %v4221
      %v4979 = vunpack.c.l.b16 %v4222
      %v4980 = vunpack.c.h.b16 %v4222
      %v4981 = vunpack.c.l.b16 %v4223
      %v4982 = vunpack.c.h.b16 %v4223
      %v4983 = vunpack.c.l.b16 %v4224
      %v4984 = vunpack.c.h.b16 %v4224
      %v4985 = vunpack.c.l.b16 %v4225
      %v4986 = vunpack.c.h.b16 %v4225
      %v4987 = vunpack.c.l.b16 %v4226
      %v4988 = vunpack.c.h.b16 %v4226
      %v4989 = vunpack.c.l.b16 %v4227
      %v4990 = vunpack.c.h.b16 %v4227
      %v4991 = vunpack.c.l.b16 %v4228
      %v4992 = vunpack.c.h.b16 %v4228
      %v4993 = vunpack.c.l.b16 %v4229
      %v4994 = vunpack.c.h.b16 %v4229
      %v4995 = vunpack.c.l.b16 %v4230
      %v4996 = vunpack.c.h.b16 %v4230
      %v4997 = vunpack.c.l.b16 %v4231
      %v4998 = vunpack.c.h.b16 %v4231
      %v4999 = vunpack.c.l.b16 %v4232
      %v5000 = vunpack.c.h.b16 %v4232
      %v5001 = vunpack.c.l.b16 %v4233
      %v5002 = vunpack.c.h.b16 %v4233
      %v5003 = vunpack.c.l.b16 %v4234
      %v5004 = vunpack.c.h.b16 %v4234
      %v5005 = vunpack.c.l.b16 %v4235
      %v5006 = vunpack.c.h.b16 %v4235
      %v5007 = vunpack.c.l.b16 %v4236
      %v5008 = vunpack.c.h.b16 %v4236
      %v5009 = vunpack.c.l.b16 %v4237
      %v5010 = vunpack.c.h.b16 %v4237
      %v5011 = vunpack.c.l.b16 %v4238
      %v5012 = vunpack.c.h.b16 %v4238
      %v5013 = vunpack.c.l.b16 %v4239
      %v5014 = vunpack.c.h.b16 %v4239
      %v5015 = vunpack.c.l.b16 %v4240
      %v5016 = vunpack.c.h.b16 %v4240
      %v5017 = vunpack.c.l.b16 %v4241
      %v5018 = vunpack.c.h.b16 %v4241
      %v5019 = vunpack.c.l.b16 %v4242
      %v5020 = vunpack.c.h.b16 %v4242
      %v5021 = vunpack.c.l.b16 %v4243
      %v5022 = vunpack.c.h.b16 %v4243
      %v5023 = vunpack.c.l.b16 %v4244
      %v5024 = vunpack.c.h.b16 %v4244
      %v5025 = vunpack.c.l.b16 %v4245
      %v5026 = vunpack.c.h.b16 %v4245
      %v5027 = vunpack.c.l.b16 %v4246
      %v5028 = vunpack.c.h.b16 %v4246
      %v5029 = vunpack.c.l.b16 %v4247
      %v5030 = vunpack.c.h.b16 %v4247
      %v5031 = vunpack.c.l.b16 %v4248
      %v5032 = vunpack.c.h.b16 %v4248
      %v5033 = vunpack.c.l.b16 %v4249
      %v5034 = vunpack.c.h.b16 %v4249
      %v5035 = vunpack.c.l.b16 %v4250
      %v5036 = vunpack.c.h.b16 %v4250
      %v5037 = vunpack.c.l.b16 %v4251
      %v5038 = vunpack.c.h.b16 %v4251
      %v5039 = vunpack.c.l.b16 %v4252
      %v5040 = vunpack.c.h.b16 %v4252
      %v5041 = vunpack.c.l.b16 %v4253
      %v5042 = vunpack.c.h.b16 %v4253
      %v5043 = vunpack.c.l.b16 %v4254
      %v5044 = vunpack.c.h.b16 %v4254
      %v5045 = vpack.c.b16 %v4537, %v4533
      %v5046 = vpack.c.b16 %v4538, %v4534
      %v5047 = vpack.c.b16 %v4539, %v4535
      %v5048 = vpack.c.b16 %v4540, %v4536
      %v5049 = vpack.c.b16 %v4545, %v4541
      %v5050 = vpack.c.b16 %v4546, %v4542
      %v5051 = vpack.c.b16 %v4547, %v4543
      %v5052 = vpack.c.b16 %v4548, %v4544
      %v5053 = vpack.c.b16 %v4553, %v4549
      %v5054 = vpack.c.b16 %v4554, %v4550
      %v5055 = vpack.c.b16 %v4555, %v4551
      %v5056 = vpack.c.b16 %v4556, %v4552
      %v5057 = vpack.c.b16 %v4561, %v4557
      %v5058 = vpack.c.b16 %v4562, %v4558
      %v5059 = vpack.c.b16 %v4563, %v4559
      %v5060 = vpack.c.b16 %v4564, %v4560
      %v5061 = vpack.c.b16 %v4569, %v4565
      %v5062 = vpack.c.b16 %v4570, %v4566
      %v5063 = vpack.c.b16 %v4571, %v4567
      %v5064 = vpack.c.b16 %v4572, %v4568
      %v5065 = vpack.c.b16 %v4577, %v4573
      %v5066 = vpack.c.b16 %v4578, %v4574
      %v5067 = vpack.c.b16 %v4579, %v4575
      %v5068 = vpack.c.b16 %v4580, %v4576
      %v5069 = vpack.c.b16 %v4585, %v4581
      %v5070 = vpack.c.b16 %v4586, %v4582
      %v5071 = vpack.c.b16 %v4587, %v4583
      %v5072 = vpack.c.b16 %v4588, %v4584
      %v5073 = vpack.c.b16 %v4593, %v4589
      %v5074 = vpack.c.b16 %v4594, %v4590
      %v5075 = vpack.c.b16 %v4595, %v4591
      %v5076 = vpack.c.b16 %v4596, %v4592
      %v5077 = vpack.c.b16 %v4601, %v4597
      %v5078 = vpack.c.b16 %v4602, %v4598
      %v5079 = vpack.c.b16 %v4603, %v4599
      %v5080 = vpack.c.b16 %v4604, %v4600
      %v5081 = vpack.c.b16 %v4609, %v4605
      %v5082 = vpack.c.b16 %v4610, %v4606
      %v5083 = vpack.c.b16 %v4611, %v4607
      %v5084 = vpack.c.b16 %v4612, %v4608
      %v5085 = vpack.c.b16 %v4617, %v4613
      %v5086 = vpack.c.b16 %v4618, %v4614
      %v5087 = vpack.c.b16 %v4619, %v4615
      %v5088 = vpack.c.b16 %v4620, %v4616
      %v5089 = vpack.c.b16 %v4625, %v4621
      %v5090 = vpack.c.b16 %v4626, %v4622
      %v5091 = vpack.c.b16 %v4627, %v4623
      %v5092 = vpack.c.b16 %v4628, %v4624
      %v5093 = vpack.c.b16 %v4633, %v4629
      %v5094 = vpack.c.b16 %v4634, %v4630
      %v5095 = vpack.c.b16 %v4635, %v4631
      %v5096 = vpack.c.b16 %v4636, %v4632
      %v5097 = vpack.c.b16 %v4641, %v4637
      %v5098 = vpack.c.b16 %v4642, %v4638
      %v5099 = vpack.c.b16 %v4643, %v4639
      %v5100 = vpack.c.b16 %v4644, %v4640
      %v5101 = vpack.c.b16 %v4649, %v4645
      %v5102 = vpack.c.b16 %v4650, %v4646
      %v5103 = vpack.c.b16 %v4651, %v4647
      %v5104 = vpack.c.b16 %v4652, %v4648
      %v5105 = vpack.c.b16 %v4657, %v4653
      %v5106 = vpack.c.b16 %v4658, %v4654
      %v5107 = vpack.c.b16 %v4659, %v4655
      %v5108 = vpack.c.b16 %v4660, %v4656
      %v5109 = vpack.c.b16 %v4665, %v4661
      %v5110 = vpack.c.b16 %v4666, %v4662
      %v5111 = vpack.c.b16 %v4667, %v4663
      %v5112 = vpack.c.b16 %v4668, %v4664
      %v5113 = vpack.c.b16 %v4673, %v4669
      %v5114 = vpack.c.b16 %v4674, %v4670
      %v5115 = vpack.c.b16 %v4675, %v4671
      %v5116 = vpack.c.b16 %v4676, %v4672
      %v5117 = vpack.c.b16 %v4681, %v4677
      %v5118 = vpack.c.b16 %v4682, %v4678
      %v5119 = vpack.c.b16 %v4683, %v4679
      %v5120 = vpack.c.b16 %v4684, %v4680
      %v5121 = vpack.c.b16 %v4689, %v4685
      %v5122 = vpack.c.b16 %v4690, %v4686
      %v5123 = vpack.c.b16 %v4691, %v4687
      %v5124 = vpack.c.b16 %v4692, %v4688
      %v5125 = vpack.c.b16 %v4697, %v4693
      %v5126 = vpack.c.b16 %v4698, %v4694
      %v5127 = vpack.c.b16 %v4699, %v4695
      %v5128 = vpack.c.b16 %v4700, %v4696
      %v5129 = vpack.c.b16 %v4705, %v4701
      %v5130 = vpack.c.b16 %v4706, %v4702
      %v5131 = vpack.c.b16 %v4707, %v4703
      %v5132 = vpack.c.b16 %v4708, %v4704
      %v5133 = vpack.c.b16 %v4713, %v4709
      %v5134 = vpack.c.b16 %v4714, %v4710
      %v5135 = vpack.c.b16 %v4715, %v4711
      %v5136 = vpack.c.b16 %v4716, %v4712
      %v5137 = vpack.c.b16 %v4721, %v4717
      %v5138 = vpack.c.b16 %v4722, %v4718
      %v5139 = vpack.c.b16 %v4723, %v4719
      %v5140 = vpack.c.b16 %v4724, %v4720
      %v5141 = vpack.c.b16 %v4729, %v4725
      %v5142 = vpack.c.b16 %v4730, %v4726
      %v5143 = vpack.c.b16 %v4731, %v4727
      %v5144 = vpack.c.b16 %v4732, %v4728
      %v5145 = vpack.c.b16 %v4737, %v4733
      %v5146 = vpack.c.b16 %v4738, %v4734
      %v5147 = vpack.c.b16 %v4739, %v4735
      %v5148 = vpack.c.b16 %v4740, %v4736
      %v5149 = vpack.c.b16 %v4745, %v4741
      %v5150 = vpack.c.b16 %v4746, %v4742
      %v5151 = vpack.c.b16 %v4747, %v4743
      %v5152 = vpack.c.b16 %v4748, %v4744
      %v5153 = vpack.c.b16 %v4753, %v4749
      %v5154 = vpack.c.b16 %v4754, %v4750
      %v5155 = vpack.c.b16 %v4755, %v4751
      %v5156 = vpack.c.b16 %v4756, %v4752
      %v5157 = vpack.c.b16 %v4761, %v4757
      %v5158 = vpack.c.b16 %v4762, %v4758
      %v5159 = vpack.c.b16 %v4763, %v4759
      %v5160 = vpack.c.b16 %v4764, %v4760
      %v5161 = vpack.c.b16 %v4769, %v4765
      %v5162 = vpack.c.b16 %v4770, %v4766
      %v5163 = vpack.c.b16 %v4771, %v4767
      %v5164 = vpack.c.b16 %v4772, %v4768
      %v5165 = vpack.c.b16 %v4777, %v4773
      %v5166 = vpack.c.b16 %v4778, %v4774
      %v5167 = vpack.c.b16 %v4779, %v4775
      %v5168 = vpack.c.b16 %v4780, %v4776
      %v5169 = vpack.c.b16 %v4785, %v4781
      %v5170 = vpack.c.b16 %v4786, %v4782
      %v5171 = vpack.c.b16 %v4787, %v4783
      %v5172 = vpack.c.b16 %v4788, %v4784
      %v5173 = vpack.c.b16 %v4793, %v4789
      %v5174 = vpack.c.b16 %v4794, %v4790
      %v5175 = vpack.c.b16 %v4795, %v4791
      %v5176 = vpack.c.b16 %v4796, %v4792
      %v5177 = vpack.c.b16 %v4801, %v4797
      %v5178 = vpack.c.b16 %v4802, %v4798
      %v5179 = vpack.c.b16 %v4803, %v4799
      %v5180 = vpack.c.b16 %v4804, %v4800
      %v5181 = vpack.c.b16 %v4809, %v4805
      %v5182 = vpack.c.b16 %v4810, %v4806
      %v5183 = vpack.c.b16 %v4811, %v4807
      %v5184 = vpack.c.b16 %v4812, %v4808
      %v5185 = vpack.c.b16 %v4817, %v4813
      %v5186 = vpack.c.b16 %v4818, %v4814
      %v5187 = vpack.c.b16 %v4819, %v4815
      %v5188 = vpack.c.b16 %v4820, %v4816
      %v5189 = vpack.c.b16 %v4825, %v4821
      %v5190 = vpack.c.b16 %v4826, %v4822
      %v5191 = vpack.c.b16 %v4827, %v4823
      %v5192 = vpack.c.b16 %v4828, %v4824
      %v5193 = vpack.c.b16 %v4833, %v4829
      %v5194 = vpack.c.b16 %v4834, %v4830
      %v5195 = vpack.c.b16 %v4835, %v4831
      %v5196 = vpack.c.b16 %v4836, %v4832
      %v5197 = vpack.c.b16 %v4841, %v4837
      %v5198 = vpack.c.b16 %v4842, %v4838
      %v5199 = vpack.c.b16 %v4843, %v4839
      %v5200 = vpack.c.b16 %v4844, %v4840
      %v5201 = vpack.c.b16 %v4849, %v4845
      %v5202 = vpack.c.b16 %v4850, %v4846
      %v5203 = vpack.c.b16 %v4851, %v4847
      %v5204 = vpack.c.b16 %v4852, %v4848
      %v5205 = vpack.c.b16 %v4857, %v4853
      %v5206 = vpack.c.b16 %v4858, %v4854
      %v5207 = vpack.c.b16 %v4859, %v4855
      %v5208 = vpack.c.b16 %v4860, %v4856
      %v5209 = vpack.c.b16 %v4865, %v4861
      %v5210 = vpack.c.b16 %v4866, %v4862
      %v5211 = vpack.c.b16 %v4867, %v4863
      %v5212 = vpack.c.b16 %v4868, %v4864
      %v5213 = vpack.c.b16 %v4873, %v4869
      %v5214 = vpack.c.b16 %v4874, %v4870
      %v5215 = vpack.c.b16 %v4875, %v4871
      %v5216 = vpack.c.b16 %v4876, %v4872
      %v5217 = vpack.c.b16 %v4881, %v4877
      %v5218 = vpack.c.b16 %v4882, %v4878
      %v5219 = vpack.c.b16 %v4883, %v4879
      %v5220 = vpack.c.b16 %v4884, %v4880
      %v5221 = vpack.c.b16 %v4889, %v4885
      %v5222 = vpack.c.b16 %v4890, %v4886
      %v5223 = vpack.c.b16 %v4891, %v4887
      %v5224 = vpack.c.b16 %v4892, %v4888
      %v5225 = vpack.c.b16 %v4897, %v4893
      %v5226 = vpack.c.b16 %v4898, %v4894
      %v5227 = vpack.c.b16 %v4899, %v4895
      %v5228 = vpack.c.b16 %v4900, %v4896
      %v5229 = vpack.c.b16 %v4905, %v4901
      %v5230 = vpack.c.b16 %v4906, %v4902
      %v5231 = vpack.c.b16 %v4907, %v4903
      %v5232 = vpack.c.b16 %v4908, %v4904
      %v5233 = vpack.c.b16 %v4913, %v4909
      %v5234 = vpack.c.b16 %v4914, %v4910
      %v5235 = vpack.c.b16 %v4915, %v4911
      %v5236 = vpack.c.b16 %v4916, %v4912
      %v5237 = vpack.c.b16 %v4921, %v4917
      %v5238 = vpack.c.b16 %v4922, %v4918
      %v5239 = vpack.c.b16 %v4923, %v4919
      %v5240 = vpack.c.b16 %v4924, %v4920
      %v5241 = vpack.c.b16 %v4929, %v4925
      %v5242 = vpack.c.b16 %v4930, %v4926
      %v5243 = vpack.c.b16 %v4931, %v4927
      %v5244 = vpack.c.b16 %v4932, %v4928
      %v5245 = vpack.c.b16 %v4937, %v4933
      %v5246 = vpack.c.b16 %v4938, %v4934
      %v5247 = vpack.c.b16 %v4939, %v4935
      %v5248 = vpack.c.b16 %v4940, %v4936
      %v5249 = vpack.c.b16 %v4945, %v4941
      %v5250 = vpack.c.b16 %v4946, %v4942
      %v5251 = vpack.c.b16 %v4947, %v4943
      %v5252 = vpack.c.b16 %v4948, %v4944
      %v5253 = vpack.c.b16 %v4953, %v4949
      %v5254 = vpack.c.b16 %v4954, %v4950
      %v5255 = vpack.c.b16 %v4955, %v4951
      %v5256 = vpack.c.b16 %v4956, %v4952
      %v5257 = vpack.c.b16 %v4961, %v4957
      %v5258 = vpack.c.b16 %v4962, %v4958
      %v5259 = vpack.c.b16 %v4963, %v4959
      %v5260 = vpack.c.b16 %v4964, %v4960
      %v5261 = vpack.c.b16 %v4969, %v4965
      %v5262 = vpack.c.b16 %v4970, %v4966
      %v5263 = vpack.c.b16 %v4971, %v4967
      %v5264 = vpack.c.b16 %v4972, %v4968
      %v5265 = vpack.c.b16 %v4977, %v4973
      %v5266 = vpack.c.b16 %v4978, %v4974
      %v5267 = vpack.c.b16 %v4979, %v4975
      %v5268 = vpack.c.b16 %v4980, %v4976
      %v5269 = vpack.c.b16 %v4985, %v4981
      %v5270 = vpack.c.b16 %v4986, %v4982
      %v5271 = vpack.c.b16 %v4987, %v4983
      %v5272 = vpack.c.b16 %v4988, %v4984
      %v5273 = vpack.c.b16 %v4993, %v4989
      %v5274 = vpack.c.b16 %v4994, %v4990
      %v5275 = vpack.c.b16 %v4995, %v4991
      %v5276 = vpack.c.b16 %v4996, %v4992
      %v5277 = vpack.c.b16 %v5001, %v4997
      %v5278 = vpack.c.b16 %v5002, %v4998
      %v5279 = vpack.c.b16 %v5003, %v4999
      %v5280 = vpack.c.b16 %v5004, %v5000
      %v5281 = vpack.c.b16 %v5009, %v5005
      %v5282 = vpack.c.b16 %v5010, %v5006
      %v5283 = vpack.c.b16 %v5011, %v5007
      %v5284 = vpack.c.b16 %v5012, %v5008
      %v5285 = vpack.c.b16 %v5017, %v5013
      %v5286 = vpack.c.b16 %v5018, %v5014
      %v5287 = vpack.c.b16 %v5019, %v5015
      %v5288 = vpack.c.b16 %v5020, %v5016
      %v5289 = vpack.c.b16 %v5025, %v5021
      %v5290 = vpack.c.b16 %v5026, %v5022
      %v5291 = vpack.c.b16 %v5027, %v5023
      %v5292 = vpack.c.b16 %v5028, %v5024
      %v5293 = vpack.c.b16 %v5033, %v5029
      %v5294 = vpack.c.b16 %v5034, %v5030
      %v5295 = vpack.c.b16 %v5035, %v5031
      %v5296 = vpack.c.b16 %v5036, %v5032
      %v5297 = vpack.c.b16 %v5041, %v5037
      %v5298 = vpack.c.b16 %v5042, %v5038
      %v5299 = vpack.c.b16 %v5043, %v5039
      %v5300 = vpack.c.b16 %v5044, %v5040
      %5557 = vmatprep.subr.bf16.mxu0 %v5046
      %5558 = vmatpush1.bf16.msra.mxu0 %v5045
      %5559 = vmatprep.subr.bf16.mxu0 %v5050
      %5560 = vmatpush1.bf16.msra.mxu0 %v5049
      %5561 = vmatprep.subr.bf16.mxu0 %v5054
      %5562 = vmatpush1.bf16.msra.mxu0 %v5053
      %5563 = vmatprep.subr.bf16.mxu0 %v5058
      %5564 = vmatpush1.bf16.msra.mxu0 %v5057
      %5565 = vmatprep.subr.bf16.mxu0 %v5062
      %5566 = vmatpush1.bf16.msra.mxu0 %v5061
      %5567 = vmatprep.subr.bf16.mxu0 %v5066
      %5568 = vmatpush1.bf16.msra.mxu0 %v5065
      %5569 = vmatprep.subr.bf16.mxu0 %v5070
      %5570 = vmatpush1.bf16.msra.mxu0 %v5069
      %5571 = vmatprep.subr.bf16.mxu0 %v5074
      %5572 = vmatpush1.bf16.msra.mxu0 %v5073
      %5573 = vmatprep.subr.bf16.mxu0 %v5078
      %5574 = vmatpush1.bf16.msra.mxu0 %v5077
      %5575 = vmatprep.subr.bf16.mxu0 %v5082
      %5576 = vmatpush1.bf16.msra.mxu0 %v5081
      %5577 = vmatprep.subr.bf16.mxu0 %v5086
      %5578 = vmatpush1.bf16.msra.mxu0 %v5085
      %5579 = vmatprep.subr.bf16.mxu0 %v5090
      %5580 = vmatpush1.bf16.msra.mxu0 %v5089
      %5581 = vmatprep.subr.bf16.mxu0 %v5094
      %5582 = vmatpush1.bf16.msra.mxu0 %v5093
      %5583 = vmatprep.subr.bf16.mxu0 %v5098
      %5584 = vmatpush1.bf16.msra.mxu0 %v5097
      %5585 = vmatprep.subr.bf16.mxu0 %v5102
      %5586 = vmatpush1.bf16.msra.mxu0 %v5101
      %5587 = vmatprep.subr.bf16.mxu0 %v5106
      %5588 = vmatpush1.bf16.msra.mxu0 %v5105
      %5589 = vmatprep.mubr.bf16.mxu0 %v3992
      %5590 = vmatmul.mubr.bf16.gmra.mrb[0].mxu0 %v3991
      %v5591 = vpop.f32.mrb[0].mxu0
      %v5592 = vadd.f32 %v4260, %v5591
      %v5593 = vpop.f32.mrb[0].mxu0
      %v5594 = vadd.f32 %v4264, %v5593
      %v5595 = vpop.f32.mrb[0].mxu0
      %v5596 = vpop.f32.mrb[0].mxu0
      %5597 = vdwg.mxu0
      %5598 = vmatprep.subr.bf16.mxu0 %v5110
      %5599 = vmatpush1.bf16.msra.mxu0 %v5109
      %5600 = vmatprep.subr.bf16.mxu0 %v5114
      %5601 = vmatpush1.bf16.msra.mxu0 %v5113
      %5602 = vmatprep.subr.bf16.mxu0 %v5118
      %5603 = vmatpush1.bf16.msra.mxu0 %v5117
      %5604 = vmatprep.subr.bf16.mxu0 %v5122
      %5605 = vmatpush1.bf16.msra.mxu0 %v5121
      %5606 = vmatprep.subr.bf16.mxu0 %v5126
      %5607 = vmatpush1.bf16.msra.mxu0 %v5125
      %5608 = vmatprep.subr.bf16.mxu0 %v5130
      %5609 = vmatpush1.bf16.msra.mxu0 %v5129
      %5610 = vmatprep.subr.bf16.mxu0 %v5134
      %5611 = vmatpush1.bf16.msra.mxu0 %v5133
      %5612 = vmatprep.subr.bf16.mxu0 %v5138
      %5613 = vmatpush1.bf16.msra.mxu0 %v5137
      %5614 = vmatprep.subr.bf16.mxu0 %v5142
      %5615 = vmatpush1.bf16.msra.mxu0 %v5141
      %5616 = vmatprep.subr.bf16.mxu0 %v5146
      %5617 = vmatpush1.bf16.msra.mxu0 %v5145
      %5618 = vmatprep.subr.bf16.mxu0 %v5150
      %5619 = vmatpush1.bf16.msra.mxu0 %v5149
      %5620 = vmatprep.subr.bf16.mxu0 %v5154
      %5621 = vmatpush1.bf16.msra.mxu0 %v5153
      %5622 = vmatprep.subr.bf16.mxu0 %v5158
      %5623 = vmatpush1.bf16.msra.mxu0 %v5157
      %5624 = vmatprep.subr.bf16.mxu0 %v5162
      %5625 = vmatpush1.bf16.msra.mxu0 %v5161
      %5626 = vmatprep.subr.bf16.mxu0 %v5166
      %5627 = vmatpush1.bf16.msra.mxu0 %v5165
      %5628 = vmatprep.subr.bf16.mxu0 %v5170
      %5629 = vmatpush1.bf16.msra.mxu0 %v5169
      %5630 = vmatprep.mubr.bf16.mxu0 %v3994
      %5631 = vmatmul.mubr.bf16.gmra.mrb[0].mxu0 %v3993
      %v5632 = vpop.f32.mrb[0].mxu0
      %v5633 = vadd.f32 %v5592, %v5632
      %v5634 = vpop.f32.mrb[0].mxu0
      %v5635 = vadd.f32 %v5594, %v5634
      %v5636 = vpop.f32.mrb[0].mxu0
      %v5637 = vpop.f32.mrb[0].mxu0
      %5638 = vdwg.mxu0
      %5639 = vmatprep.subr.bf16.mxu0 %v5174
      %5640 = vmatpush1.bf16.msra.mxu0 %v5173
      %5641 = vmatprep.subr.bf16.mxu0 %v5178
      %5642 = vmatpush1.bf16.msra.mxu0 %v5177
      %5643 = vmatprep.subr.bf16.mxu0 %v5182
      %5644 = vmatpush1.bf16.msra.mxu0 %v5181
      %5645 = vmatprep.subr.bf16.mxu0 %v5186
      %5646 = vmatpush1.bf16.msra.mxu0 %v5185
      %5647 = vmatprep.subr.bf16.mxu0 %v5190
      %5648 = vmatpush1.bf16.msra.mxu0 %v5189
      %5649 = vmatprep.subr.bf16.mxu0 %v5194
      %5650 = vmatpush1.bf16.msra.mxu0 %v5193
      %5651 = vmatprep.subr.bf16.mxu0 %v5198
      %5652 = vmatpush1.bf16.msra.mxu0 %v5197
      %5653 = vmatprep.subr.bf16.mxu0 %v5202
      %5654 = vmatpush1.bf16.msra.mxu0 %v5201
      %5655 = vmatprep.subr.bf16.mxu0 %v5206
      %5656 = vmatpush1.bf16.msra.mxu0 %v5205
      %5657 = vmatprep.subr.bf16.mxu0 %v5210
      %5658 = vmatpush1.bf16.msra.mxu0 %v5209
      %5659 = vmatprep.subr.bf16.mxu0 %v5214
      %5660 = vmatpush1.bf16.msra.mxu0 %v5213
      %5661 = vmatprep.subr.bf16.mxu0 %v5218
      %5662 = vmatpush1.bf16.msra.mxu0 %v5217
      %5663 = vmatprep.subr.bf16.mxu0 %v5222
      %5664 = vmatpush1.bf16.msra.mxu0 %v5221
      %5665 = vmatprep.subr.bf16.mxu0 %v5226
      %5666 = vmatpush1.bf16.msra.mxu0 %v5225
      %5667 = vmatprep.subr.bf16.mxu0 %v5230
      %5668 = vmatpush1.bf16.msra.mxu0 %v5229
      %5669 = vmatprep.subr.bf16.mxu0 %v5234
      %5670 = vmatpush1.bf16.msra.mxu0 %v5233
      %5671 = vmatprep.mubr.bf16.mxu0 %v3996
      %5672 = vmatmul.mubr.bf16.gmra.mrb[0].mxu0 %v3995
      %v5673 = vpop.f32.mrb[0].mxu0
      %v5674 = vadd.f32 %v5633, %v5673
      %v5675 = vpop.f32.mrb[0].mxu0
      %v5676 = vadd.f32 %v5635, %v5675
      %v5677 = vpop.f32.mrb[0].mxu0
      %v5678 = vpop.f32.mrb[0].mxu0
      %5679 = vdwg.mxu0
      %5680 = vmatprep.subr.bf16.mxu0 %v5238
      %5681 = vmatpush1.bf16.msra.mxu0 %v5237
      %5682 = vmatprep.subr.bf16.mxu0 %v5242
      %5683 = vmatpush1.bf16.msra.mxu0 %v5241
      %5684 = vmatprep.subr.bf16.mxu0 %v5246
      %5685 = vmatpush1.bf16.msra.mxu0 %v5245
      %5686 = vmatprep.subr.bf16.mxu0 %v5250
      %5687 = vmatpush1.bf16.msra.mxu0 %v5249
      %5688 = vmatprep.subr.bf16.mxu0 %v5254
      %5689 = vmatpush1.bf16.msra.mxu0 %v5253
      %5690 = vmatprep.subr.bf16.mxu0 %v5258
      %5691 = vmatpush1.bf16.msra.mxu0 %v5257
      %5692 = vmatprep.subr.bf16.mxu0 %v5262
      %5693 = vmatpush1.bf16.msra.mxu0 %v5261
      %5694 = vmatprep.subr.bf16.mxu0 %v5266
      %5695 = vmatpush1.bf16.msra.mxu0 %v5265
      %5696 = vmatprep.subr.bf16.mxu0 %v5270
      %5697 = vmatpush1.bf16.msra.mxu0 %v5269
      %5698 = vmatprep.subr.bf16.mxu0 %v5274
      %5699 = vmatpush1.bf16.msra.mxu0 %v5273
      %5700 = vmatprep.subr.bf16.mxu0 %v5278
      %5701 = vmatpush1.bf16.msra.mxu0 %v5277
      %5702 = vmatprep.subr.bf16.mxu0 %v5282
      %5703 = vmatpush1.bf16.msra.mxu0 %v5281
      %5704 = vmatprep.subr.bf16.mxu0 %v5286
      %5705 = vmatpush1.bf16.msra.mxu0 %v5285
      %5706 = vmatprep.subr.bf16.mxu0 %v5290
      %5707 = vmatpush1.bf16.msra.mxu0 %v5289
      %5708 = vmatprep.subr.bf16.mxu0 %v5294
      %5709 = vmatpush1.bf16.msra.mxu0 %v5293
      %5710 = vmatprep.subr.bf16.mxu0 %v5298
      %5711 = vmatpush1.bf16.msra.mxu0 %v5297
      %5712 = vmatprep.mubr.bf16.mxu0 %v3998
      %5713 = vmatmul.mubr.bf16.gmra.mrb[0].mxu0 %v3997
      %v5714 = vpop.f32.mrb[0].mxu0
      %v5715 = vadd.f32 %v5674, %v5714
      %v5716 = vpop.f32.mrb[0].mxu0
      %v5717 = vadd.f32 %v5676, %v5716
      %v5718 = vpop.f32.mrb[0].mxu0
      %v5719 = vpop.f32.mrb[0].mxu0
      %5720 = vdwg.mxu0
      %5721 = vmatprep.subr.bf16.mxu0 %v5048
      %5722 = vmatpush1.bf16.msra.mxu0 %v5047
      %5723 = vmatprep.subr.bf16.mxu0 %v5052
      %5724 = vmatpush1.bf16.msra.mxu0 %v5051
      %5725 = vmatprep.subr.bf16.mxu0 %v5056
      %5726 = vmatpush1.bf16.msra.mxu0 %v5055
      %5727 = vmatprep.subr.bf16.mxu0 %v5060
      %5728 = vmatpush1.bf16.msra.mxu0 %v5059
      %5729 = vmatprep.subr.bf16.mxu0 %v5064
      %5730 = vmatpush1.bf16.msra.mxu0 %v5063
      %5731 = vmatprep.subr.bf16.mxu0 %v5068
      %5732 = vmatpush1.bf16.msra.mxu0 %v5067
      %5733 = vmatprep.subr.bf16.mxu0 %v5072
      %5734 = vmatpush1.bf16.msra.mxu0 %v5071
      %5735 = vmatprep.subr.bf16.mxu0 %v5076
      %5736 = vmatpush1.bf16.msra.mxu0 %v5075
      %5737 = vmatprep.subr.bf16.mxu0 %v5080
      %5738 = vmatpush1.bf16.msra.mxu0 %v5079
      %5739 = vmatprep.subr.bf16.mxu0 %v5084
      %5740 = vmatpush1.bf16.msra.mxu0 %v5083
      %5741 = vmatprep.subr.bf16.mxu0 %v5088
      %5742 = vmatpush1.bf16.msra.mxu0 %v5087
      %5743 = vmatprep.subr.bf16.mxu0 %v5092
      %5744 = vmatpush1.bf16.msra.mxu0 %v5091
      %5745 = vmatprep.subr.bf16.mxu0 %v5096
      %5746 = vmatpush1.bf16.msra.mxu0 %v5095
      %5747 = vmatprep.subr.bf16.mxu0 %v5100
      %5748 = vmatpush1.bf16.msra.mxu0 %v5099
      %5749 = vmatprep.subr.bf16.mxu0 %v5104
      %5750 = vmatpush1.bf16.msra.mxu0 %v5103
      %5751 = vmatprep.subr.bf16.mxu0 %v5108
      %5752 = vmatpush1.bf16.msra.mxu0 %v5107
      %5753 = vmatprep.mubr.bf16.mxu0 %v3992
      %5754 = vmatmul.mubr.bf16.gmra.mrb[0].mxu0 %v3991
      %v5755 = vpop.f32.mrb[0].mxu0
      %v5756 = vadd.f32 %v4268, %v5755
      %v5757 = vpop.f32.mrb[0].mxu0
      %v5758 = vadd.f32 %v4272, %v5757
      %v5759 = vpop.f32.mrb[0].mxu0
      %v5760 = vpop.f32.mrb[0].mxu0
      %5761 = vdwg.mxu0
      %5762 = vmatprep.subr.bf16.mxu0 %v5112
      %5763 = vmatpush1.bf16.msra.mxu0 %v5111
      %5764 = vmatprep.subr.bf16.mxu0 %v5116
      %5765 = vmatpush1.bf16.msra.mxu0 %v5115
      %5766 = vmatprep.subr.bf16.mxu0 %v5120
      %5767 = vmatpush1.bf16.msra.mxu0 %v5119
      %5768 = vmatprep.subr.bf16.mxu0 %v5124
      %5769 = vmatpush1.bf16.msra.mxu0 %v5123
      %5770 = vmatprep.subr.bf16.mxu0 %v5128
      %5771 = vmatpush1.bf16.msra.mxu0 %v5127
      %5772 = vmatprep.subr.bf16.mxu0 %v5132
      %5773 = vmatpush1.bf16.msra.mxu0 %v5131
      %5774 = vmatprep.subr.bf16.mxu0 %v5136
      %5775 = vmatpush1.bf16.msra.mxu0 %v5135
      %5776 = vmatprep.subr.bf16.mxu0 %v5140
      %5777 = vmatpush1.bf16.msra.mxu0 %v5139
      %5778 = vmatprep.subr.bf16.mxu0 %v5144
      %5779 = vmatpush1.bf16.msra.mxu0 %v5143
      %5780 = vmatprep.subr.bf16.mxu0 %v5148
      %5781 = vmatpush1.bf16.msra.mxu0 %v5147
      %5782 = vmatprep.subr.bf16.mxu0 %v5152
      %5783 = vmatpush1.bf16.msra.mxu0 %v5151
      %5784 = vmatprep.subr.bf16.mxu0 %v5156
      %5785 = vmatpush1.bf16.msra.mxu0 %v5155
      %5786 = vmatprep.subr.bf16.mxu0 %v5160
      %5787 = vmatpush1.bf16.msra.mxu0 %v5159
      %5788 = vmatprep.subr.bf16.mxu0 %v5164
      %5789 = vmatpush1.bf16.msra.mxu0 %v5163
      %5790 = vmatprep.subr.bf16.mxu0 %v5168
      %5791 = vmatpush1.bf16.msra.mxu0 %v5167
      %5792 = vmatprep.subr.bf16.mxu0 %v5172
      %5793 = vmatpush1.bf16.msra.mxu0 %v5171
      %5794 = vmatprep.mubr.bf16.mxu0 %v3994
      %5795 = vmatmul.mubr.bf16.gmra.mrb[0].mxu0 %v3993
      %v5796 = vpop.f32.mrb[0].mxu0
      %v5797 = vadd.f32 %v5756, %v5796
      %v5798 = vpop.f32.mrb[0].mxu0
      %v5799 = vadd.f32 %v5758, %v5798
      %v5800 = vpop.f32.mrb[0].mxu0
      %v5801 = vpop.f32.mrb[0].mxu0
      %5802 = vdwg.mxu0
      %5803 = vmatprep.subr.bf16.mxu0 %v5176
      %5804 = vmatpush1.bf16.msra.mxu0 %v5175
      %5805 = vmatprep.subr.bf16.mxu0 %v5180
      %5806 = vmatpush1.bf16.msra.mxu0 %v5179
      %5807 = vmatprep.subr.bf16.mxu0 %v5184
      %5808 = vmatpush1.bf16.msra.mxu0 %v5183
      %5809 = vmatprep.subr.bf16.mxu0 %v5188
      %5810 = vmatpush1.bf16.msra.mxu0 %v5187
      %5811 = vmatprep.subr.bf16.mxu0 %v5192
      %5812 = vmatpush1.bf16.msra.mxu0 %v5191
      %5813 = vmatprep.subr.bf16.mxu0 %v5196
      %5814 = vmatpush1.bf16.msra.mxu0 %v5195
      %5815 = vmatprep.subr.bf16.mxu0 %v5200
      %5816 = vmatpush1.bf16.msra.mxu0 %v5199
      %5817 = vmatprep.subr.bf16.mxu0 %v5204
      %5818 = vmatpush1.bf16.msra.mxu0 %v5203
      %5819 = vmatprep.subr.bf16.mxu0 %v5208
      %5820 = vmatpush1.bf16.msra.mxu0 %v5207
      %5821 = vmatprep.subr.bf16.mxu0 %v5212
      %5822 = vmatpush1.bf16.msra.mxu0 %v5211
      %5823 = vmatprep.subr.bf16.mxu0 %v5216
      %5824 = vmatpush1.bf16.msra.mxu0 %v5215
      %5825 = vmatprep.subr.bf16.mxu0 %v5220
      %5826 = vmatpush1.bf16.msra.mxu0 %v5219
      %5827 = vmatprep.subr.bf16.mxu0 %v5224
      %5828 = vmatpush1.bf16.msra.mxu0 %v5223
      %5829 = vmatprep.subr.bf16.mxu0 %v5228
      %5830 = vmatpush1.bf16.msra.mxu0 %v5227
      %5831 = vmatprep.subr.bf16.mxu0 %v5232
      %5832 = vmatpush1.bf16.msra.mxu0 %v5231
      %5833 = vmatprep.subr.bf16.mxu0 %v5236
      %5834 = vmatpush1.bf16.msra.mxu0 %v5235
      %5835 = vmatprep.mubr.bf16.mxu0 %v3996
      %5836 = vmatmul.mubr.bf16.gmra.mrb[0].mxu0 %v3995
      %v5837 = vpop.f32.mrb[0].mxu0
      %v5838 = vadd.f32 %v5797, %v5837
      %v5839 = vpop.f32.mrb[0].mxu0
      %v5840 = vadd.f32 %v5799, %v5839
      %v5841 = vpop.f32.mrb[0].mxu0
      %v5842 = vpop.f32.mrb[0].mxu0
      %5843 = vdwg.mxu0
      %5844 = vmatprep.subr.bf16.mxu0 %v5240
      %5845 = vmatpush1.bf16.msra.mxu0 %v5239
      %5846 = vmatprep.subr.bf16.mxu0 %v5244
      %5847 = vmatpush1.bf16.msra.mxu0 %v5243
      %5848 = vmatprep.subr.bf16.mxu0 %v5248
      %5849 = vmatpush1.bf16.msra.mxu0 %v5247
      %5850 = vmatprep.subr.bf16.mxu0 %v5252
      %5851 = vmatpush1.bf16.msra.mxu0 %v5251
      %5852 = vmatprep.subr.bf16.mxu0 %v5256
      %5853 = vmatpush1.bf16.msra.mxu0 %v5255
      %5854 = vmatprep.subr.bf16.mxu0 %v5260
      %5855 = vmatpush1.bf16.msra.mxu0 %v5259
      %5856 = vmatprep.subr.bf16.mxu0 %v5264
      %5857 = vmatpush1.bf16.msra.mxu0 %v5263
      %5858 = vmatprep.subr.bf16.mxu0 %v5268
      %5859 = vmatpush1.bf16.msra.mxu0 %v5267
      %5860 = vmatprep.subr.bf16.mxu0 %v5272
      %5861 = vmatpush1.bf16.msra.mxu0 %v5271
      %5862 = vmatprep.subr.bf16.mxu0 %v5276
      %5863 = vmatpush1.bf16.msra.mxu0 %v5275
      %5864 = vmatprep.subr.bf16.mxu0 %v5280
      %5865 = vmatpush1.bf16.msra.mxu0 %v5279
      %5866 = vmatprep.subr.bf16.mxu0 %v5284
      %5867 = vmatpush1.bf16.msra.mxu0 %v5283
      %5868 = vmatprep.subr.bf16.mxu0 %v5288
      %5869 = vmatpush1.bf16.msra.mxu0 %v5287
      %5870 = vmatprep.subr.bf16.mxu0 %v5292
      %5871 = vmatpush1.bf16.msra.mxu0 %v5291
      %5872 = vmatprep.subr.bf16.mxu0 %v5296
      %5873 = vmatpush1.bf16.msra.mxu0 %v5295
      %5874 = vmatprep.subr.bf16.mxu0 %v5300
      %5875 = vmatpush1.bf16.msra.mxu0 %v5299
      %5876 = vmatprep.mubr.bf16.mxu0 %v3998
      %5877 = vmatmul.mubr.bf16.gmra.mrb[0].mxu0 %v3997
      %v5878 = vpop.f32.mrb[0].mxu0
      %v5879 = vadd.f32 %v5838, %v5878
      %v5880 = vpop.f32.mrb[0].mxu0
      %v5881 = vadd.f32 %v5840, %v5880
      %v5882 = vpop.f32.mrb[0].mxu0
      %v5883 = vpop.f32.mrb[0].mxu0
      %5884 = vdwg.mxu0
      %v5885 = vmax.f32 %v5715, 0.0
      %v5886 = vmax.f32 %v5717, 0.0
      %v5887 = vmax.f32 %v5879, 0.0
      %v5888 = vmax.f32 %v5881, 0.0
      %v5889 = vpack.c.bf16 %v5885, %v5885
      %v5890 = vpack.c.bf16 %v5886, %v5886
      %v5891 = vpack.c.bf16 %v5887, %v5887
      %v5892 = vpack.c.bf16 %v5888, %v5888
      %v5893 = vld [vmem:[#allocation10] sm:$0xf]
      %v5894 = vld [vmem:[#allocation10 + $0x4] sm:$0xf]
      %v5895 = vld [vmem:[#allocation10 + $0x8] sm:$0xf]
      %v5896 = vld [vmem:[#allocation10 + $0xc] sm:$0xf]
      %v5897 = vld [vmem:[#allocation10 + $0x10] sm:$0xf]
      %v5898 = vld [vmem:[#allocation10 + $0x14] sm:$0xf]
      %v5899 = vld [vmem:[#allocation10 + $0x18] sm:$0xf]
      %v5900 = vld [vmem:[#allocation10 + $0x1c] sm:$0xf]
      %v5901 = vld [vmem:[#allocation10 + $0x20] sm:$0xf]
      %v5902 = vld [vmem:[#allocation10 + $0x24] sm:$0xf]
      %v5903 = vld [vmem:[#allocation10 + $0x28] sm:$0xf]
      %v5904 = vld [vmem:[#allocation10 + $0x2c] sm:$0xf]
      %v5905 = vld [vmem:[#allocation10 + $0x30] sm:$0xf]
      %v5906 = vld [vmem:[#allocation10 + $0x34] sm:$0xf]
      %v5907 = vld [vmem:[#allocation10 + $0x38] sm:$0xf]
      %v5908 = vld [vmem:[#allocation10 + $0x3c] sm:$0xf]
      %v5909 = vld [vmem:[#allocation10 + $0x40] sm:$0xf]
      %v5910 = vld [vmem:[#allocation10 + $0x44] sm:$0xf]
      %v5911 = vld [vmem:[#allocation10 + $0x48] sm:$0xf]
      %v5912 = vld [vmem:[#allocation10 + $0x4c] sm:$0xf]
      %v5913 = vld [vmem:[#allocation10 + $0x50] sm:$0xf]
      %v5914 = vld [vmem:[#allocation10 + $0x54] sm:$0xf]
      %v5915 = vld [vmem:[#allocation10 + $0x58] sm:$0xf]
      %v5916 = vld [vmem:[#allocation10 + $0x5c] sm:$0xf]
      %v5917 = vld [vmem:[#allocation10 + $0x60] sm:$0xf]
      %v5918 = vld [vmem:[#allocation10 + $0x64] sm:$0xf]
      %v5919 = vld [vmem:[#allocation10 + $0x68] sm:$0xf]
      %v5920 = vld [vmem:[#allocation10 + $0x6c] sm:$0xf]
      %v5921 = vld [vmem:[#allocation10 + $0x70] sm:$0xf]
      %v5922 = vld [vmem:[#allocation10 + $0x74] sm:$0xf]
      %v5923 = vld [vmem:[#allocation10 + $0x78] sm:$0xf]
      %v5924 = vld [vmem:[#allocation10 + $0x7c] sm:$0xf]
      %v5925 = vld [vmem:[#allocation10 + $0x80] sm:$0xf]
      %v5926 = vld [vmem:[#allocation10 + $0x84] sm:$0xf]
      %v5927 = vld [vmem:[#allocation10 + $0x88] sm:$0xf]
      %v5928 = vld [vmem:[#allocation10 + $0x8c] sm:$0xf]
      %v5929 = vld [vmem:[#allocation10 + $0x90] sm:$0xf]
      %v5930 = vld [vmem:[#allocation10 + $0x94] sm:$0xf]
      %v5931 = vld [vmem:[#allocation10 + $0x98] sm:$0xf]
      %v5932 = vld [vmem:[#allocation10 + $0x9c] sm:$0xf]
      %v5933 = vld [vmem:[#allocation10 + $0xa0] sm:$0xf]
      %v5934 = vld [vmem:[#allocation10 + $0xa4] sm:$0xf]
      %v5935 = vld [vmem:[#allocation10 + $0xa8] sm:$0xf]
      %v5936 = vld [vmem:[#allocation10 + $0xac] sm:$0xf]
      %v5937 = vld [vmem:[#allocation10 + $0xb0] sm:$0xf]
      %v5938 = vld [vmem:[#allocation10 + $0xb4] sm:$0xf]
      %v5939 = vld [vmem:[#allocation10 + $0xb8] sm:$0xf]
      %v5940 = vld [vmem:[#allocation10 + $0xbc] sm:$0xf]
      %v5941 = vld [vmem:[#allocation10 + $0xc0] sm:$0xf]
      %v5942 = vld [vmem:[#allocation10 + $0xc4] sm:$0xf]
      %v5943 = vld [vmem:[#allocation10 + $0xc8] sm:$0xf]
      %v5944 = vld [vmem:[#allocation10 + $0xcc] sm:$0xf]
      %v5945 = vld [vmem:[#allocation10 + $0xd0] sm:$0xf]
      %v5946 = vld [vmem:[#allocation10 + $0xd4] sm:$0xf]
      %v5947 = vld [vmem:[#allocation10 + $0xd8] sm:$0xf]
      %v5948 = vld [vmem:[#allocation10 + $0xdc] sm:$0xf]
      %v5949 = vld [vmem:[#allocation10 + $0xe0] sm:$0xf]
      %v5950 = vld [vmem:[#allocation10 + $0xe4] sm:$0xf]
      %v5951 = vld [vmem:[#allocation10 + $0xe8] sm:$0xf]
      %v5952 = vld [vmem:[#allocation10 + $0xec] sm:$0xf]
      %v5953 = vld [vmem:[#allocation10 + $0xf0] sm:$0xf]
      %v5954 = vld [vmem:[#allocation10 + $0xf4] sm:$0xf]
      %v5955 = vld [vmem:[#allocation10 + $0xf8] sm:$0xf]
      %v5956 = vld [vmem:[#allocation10 + $0xfc] sm:$0xf]
      %v5957 = vld [vmem:[#allocation11] sm:$0x1]
      %v5959 = vlaneseq
      %v5960 = vshrl.u32 %v5959, 7
      %v5961 = vsub.s32 0, %v5960
      %v5962 = vrot.slane %v5957, %v5961
      %v6028 = vunpack.c.l.b16 %v5893
      %v6029 = vunpack.c.l.b16 %v5894
      %v6030 = vunpack.c.l.b16 %v5895
      %v6031 = vunpack.c.l.b16 %v5896
      %v6032 = vunpack.c.l.b16 %v5897
      %v6033 = vunpack.c.l.b16 %v5898
      %v6034 = vunpack.c.l.b16 %v5899
      %v6035 = vunpack.c.l.b16 %v5900
      %v6036 = vunpack.c.l.b16 %v5901
      %v6037 = vunpack.c.l.b16 %v5902
      %v6038 = vunpack.c.l.b16 %v5903
      %v6039 = vunpack.c.l.b16 %v5904
      %v6040 = vunpack.c.l.b16 %v5905
      %v6041 = vunpack.c.l.b16 %v5906
      %v6042 = vunpack.c.l.b16 %v5907
      %v6043 = vunpack.c.l.b16 %v5908
      %v6044 = vunpack.c.l.b16 %v5909
      %v6045 = vunpack.c.l.b16 %v5910
      %v6046 = vunpack.c.l.b16 %v5911
      %v6047 = vunpack.c.l.b16 %v5912
      %v6048 = vunpack.c.l.b16 %v5913
      %v6049 = vunpack.c.l.b16 %v5914
      %v6050 = vunpack.c.l.b16 %v5915
      %v6051 = vunpack.c.l.b16 %v5916
      %v6052 = vunpack.c.l.b16 %v5917
      %v6053 = vunpack.c.l.b16 %v5918
      %v6054 = vunpack.c.l.b16 %v5919
      %v6055 = vunpack.c.l.b16 %v5920
      %v6056 = vunpack.c.l.b16 %v5921
      %v6057 = vunpack.c.l.b16 %v5922
      %v6058 = vunpack.c.l.b16 %v5923
      %v6059 = vunpack.c.l.b16 %v5924
      %v6060 = vunpack.c.l.b16 %v5925
      %v6061 = vunpack.c.l.b16 %v5926
      %v6062 = vunpack.c.l.b16 %v5927
      %v6063 = vunpack.c.l.b16 %v5928
      %v6064 = vunpack.c.l.b16 %v5929
      %v6065 = vunpack.c.l.b16 %v5930
      %v6066 = vunpack.c.l.b16 %v5931
      %v6067 = vunpack.c.l.b16 %v5932
      %v6068 = vunpack.c.l.b16 %v5933
      %v6069 = vunpack.c.l.b16 %v5934
      %v6070 = vunpack.c.l.b16 %v5935
      %v6071 = vunpack.c.l.b16 %v5936
      %v6072 = vunpack.c.l.b16 %v5937
      %v6073 = vunpack.c.l.b16 %v5938
      %v6074 = vunpack.c.l.b16 %v5939
      %v6075 = vunpack.c.l.b16 %v5940
      %v6076 = vunpack.c.l.b16 %v5941
      %v6077 = vunpack.c.l.b16 %v5942
      %v6078 = vunpack.c.l.b16 %v5943
      %v6079 = vunpack.c.l.b16 %v5944
      %v6080 = vunpack.c.l.b16 %v5945
      %v6081 = vunpack.c.l.b16 %v5946
      %v6082 = vunpack.c.l.b16 %v5947
      %v6083 = vunpack.c.l.b16 %v5948
      %v6084 = vunpack.c.l.b16 %v5949
      %v6085 = vunpack.c.l.b16 %v5950
      %v6086 = vunpack.c.l.b16 %v5951
      %v6087 = vunpack.c.l.b16 %v5952
      %v6088 = vunpack.c.l.b16 %v5953
      %v6089 = vunpack.c.l.b16 %v5954
      %v6090 = vunpack.c.l.b16 %v5955
      %v6091 = vunpack.c.l.b16 %v5956
      %v6092 = vpack.c.b16 %v6029, %v6028
      %v6093 = vpack.c.b16 %v6031, %v6030
      %v6094 = vpack.c.b16 %v6033, %v6032
      %v6095 = vpack.c.b16 %v6035, %v6034
      %v6096 = vpack.c.b16 %v6037, %v6036
      %v6097 = vpack.c.b16 %v6039, %v6038
      %v6098 = vpack.c.b16 %v6041, %v6040
      %v6099 = vpack.c.b16 %v6043, %v6042
      %v6100 = vpack.c.b16 %v6045, %v6044
      %v6101 = vpack.c.b16 %v6047, %v6046
      %v6102 = vpack.c.b16 %v6049, %v6048
      %v6103 = vpack.c.b16 %v6051, %v6050
      %v6104 = vpack.c.b16 %v6053, %v6052
      %v6105 = vpack.c.b16 %v6055, %v6054
      %v6106 = vpack.c.b16 %v6057, %v6056
      %v6107 = vpack.c.b16 %v6059, %v6058
      %v6108 = vpack.c.b16 %v6061, %v6060
      %v6109 = vpack.c.b16 %v6063, %v6062
      %v6110 = vpack.c.b16 %v6065, %v6064
      %v6111 = vpack.c.b16 %v6067, %v6066
      %v6112 = vpack.c.b16 %v6069, %v6068
      %v6113 = vpack.c.b16 %v6071, %v6070
      %v6114 = vpack.c.b16 %v6073, %v6072
      %v6115 = vpack.c.b16 %v6075, %v6074
      %v6116 = vpack.c.b16 %v6077, %v6076
      %v6117 = vpack.c.b16 %v6079, %v6078
      %v6118 = vpack.c.b16 %v6081, %v6080
      %v6119 = vpack.c.b16 %v6083, %v6082
      %v6120 = vpack.c.b16 %v6085, %v6084
      %v6121 = vpack.c.b16 %v6087, %v6086
      %v6122 = vpack.c.b16 %v6089, %v6088
      %v6123 = vpack.c.b16 %v6091, %v6090
      %6156 = vmatprep.subr.bf16.mxu0 0
      %6157 = vmatpush1.bf16.msra.mxu0 %v6092
      %6158 = vmatprep.subr.bf16.mxu0 0
      %6159 = vmatpush1.bf16.msra.mxu0 %v6093
      %6160 = vmatprep.subr.bf16.mxu0 0
      %6161 = vmatpush1.bf16.msra.mxu0 %v6094
      %6162 = vmatprep.subr.bf16.mxu0 0
      %6163 = vmatpush1.bf16.msra.mxu0 %v6095
      %6164 = vmatprep.subr.bf16.mxu0 0
      %6165 = vmatpush1.bf16.msra.mxu0 %v6096
      %6166 = vmatprep.subr.bf16.mxu0 0
      %6167 = vmatpush1.bf16.msra.mxu0 %v6097
      %6168 = vmatprep.subr.bf16.mxu0 0
      %6169 = vmatpush1.bf16.msra.mxu0 %v6098
      %6170 = vmatprep.subr.bf16.mxu0 0
      %6171 = vmatpush1.bf16.msra.mxu0 %v6099
      %6172 = vmatprep.subr.bf16.mxu0 0
      %6173 = vmatpush1.bf16.msra.mxu0 %v6100
      %6174 = vmatprep.subr.bf16.mxu0 0
      %6175 = vmatpush1.bf16.msra.mxu0 %v6101
      %6176 = vmatprep.subr.bf16.mxu0 0
      %6177 = vmatpush1.bf16.msra.mxu0 %v6102
      %6178 = vmatprep.subr.bf16.mxu0 0
      %6179 = vmatpush1.bf16.msra.mxu0 %v6103
      %6180 = vmatprep.subr.bf16.mxu0 0
      %6181 = vmatpush1.bf16.msra.mxu0 %v6104
      %6182 = vmatprep.subr.bf16.mxu0 0
      %6183 = vmatpush1.bf16.msra.mxu0 %v6105
      %6184 = vmatprep.subr.bf16.mxu0 0
      %6185 = vmatpush1.bf16.msra.mxu0 %v6106
      %6186 = vmatprep.subr.bf16.mxu0 0
      %6187 = vmatpush1.bf16.msra.mxu0 %v6107
      %6188 = vmatprep.mubr.bf16.mxu0 %v5890
      %6189 = vmatmul.mubr.bf16.gmra.mrb[0].mxu0 %v5889
      %v6190 = vpop.f32.mrb[0].mxu0
      %v6191 = vadd.f32 %v5962, %v6190
      %v6192 = vpop.f32.mrb[0].mxu0
      %v6193 = vpop.f32.mrb[0].mxu0
      %v6194 = vpop.f32.mrb[0].mxu0
      %6195 = vdwg.mxu0
      %6196 = vmatprep.subr.bf16.mxu0 0
      %6197 = vmatpush1.bf16.msra.mxu0 %v6108
      %6198 = vmatprep.subr.bf16.mxu0 0
      %6199 = vmatpush1.bf16.msra.mxu0 %v6109
      %6200 = vmatprep.subr.bf16.mxu0 0
      %6201 = vmatpush1.bf16.msra.mxu0 %v6110
      %6202 = vmatprep.subr.bf16.mxu0 0
      %6203 = vmatpush1.bf16.msra.mxu0 %v6111
      %6204 = vmatprep.subr.bf16.mxu0 0
      %6205 = vmatpush1.bf16.msra.mxu0 %v6112
      %6206 = vmatprep.subr.bf16.mxu0 0
      %6207 = vmatpush1.bf16.msra.mxu0 %v6113
      %6208 = vmatprep.subr.bf16.mxu0 0
      %6209 = vmatpush1.bf16.msra.mxu0 %v6114
      %6210 = vmatprep.subr.bf16.mxu0 0
      %6211 = vmatpush1.bf16.msra.mxu0 %v6115
      %6212 = vmatprep.subr.bf16.mxu0 0
      %6213 = vmatpush1.bf16.msra.mxu0 %v6116
      %6214 = vmatprep.subr.bf16.mxu0 0
      %6215 = vmatpush1.bf16.msra.mxu0 %v6117
      %6216 = vmatprep.subr.bf16.mxu0 0
      %6217 = vmatpush1.bf16.msra.mxu0 %v6118
      %6218 = vmatprep.subr.bf16.mxu0 0
      %6219 = vmatpush1.bf16.msra.mxu0 %v6119
      %6220 = vmatprep.subr.bf16.mxu0 0
      %6221 = vmatpush1.bf16.msra.mxu0 %v6120
      %6222 = vmatprep.subr.bf16.mxu0 0
      %6223 = vmatpush1.bf16.msra.mxu0 %v6121
      %6224 = vmatprep.subr.bf16.mxu0 0
      %6225 = vmatpush1.bf16.msra.mxu0 %v6122
      %6226 = vmatprep.subr.bf16.mxu0 0
      %6227 = vmatpush1.bf16.msra.mxu0 %v6123
      %6228 = vmatprep.mubr.bf16.mxu0 %v5892
      %6229 = vmatmul.mubr.bf16.gmra.mrb[0].mxu0 %v5891
      %v6230 = vpop.f32.mrb[0].mxu0
      %v6231 = vadd.f32 %v6191, %v6230
      %v6232 = vpop.f32.mrb[0].mxu0
      %v6233 = vpop.f32.mrb[0].mxu0
      %v6234 = vpop.f32.mrb[0].mxu0
      %6235 = vdwg.mxu0
      %v6236 = vmax.f32 %v6231, 0.0
      %v6237 = vpack.c.bf16 %v6236, %v6236
      %v6238 = vld [vmem:[#allocation13] sm:$0xf]
      %v6239 = vld [vmem:[#allocation13 + $0x4] sm:$0xf]
      %v6240 = vld [vmem:[#allocation13 + $0x8] sm:$0xf]
      %v6241 = vld [vmem:[#allocation13 + $0xc] sm:$0xf]
      %v6242 = vld [vmem:[#allocation13 + $0x10] sm:$0xf]
      %v6243 = vld [vmem:[#allocation13 + $0x14] sm:$0xf]
      %v6244 = vld [vmem:[#allocation13 + $0x18] sm:$0xf]
      %v6245 = vld [vmem:[#allocation13 + $0x1c] sm:$0xf]
      %v6246 = vld [vmem:[#allocation13 + $0x20] sm:$0xf]
      %v6247 = vld [vmem:[#allocation13 + $0x24] sm:$0xf]
      %v6248 = vld [vmem:[#allocation13 + $0x28] sm:$0xf]
      %v6249 = vld [vmem:[#allocation13 + $0x2c] sm:$0xf]
      %v6250 = vld [vmem:[#allocation13 + $0x30] sm:$0xf]
      %v6251 = vld [vmem:[#allocation13 + $0x34] sm:$0xf]
      %v6252 = vld [vmem:[#allocation13 + $0x38] sm:$0xf]
      %v6253 = vld [vmem:[#allocation13 + $0x3c] sm:$0xf]
      %v6254 = vld [vmem:[#allocation14] sm:$0x1]
      %v6256 = vlaneseq
      %v6257 = vshrl.u32 %v6256, 7
      %v6258 = vsub.s32 0, %v6257
      %v6259 = vrot.slane %v6254, %v6258
      %v6277 = vunpack.c.l.b16 %v6238
      %v6278 = vunpack.c.l.b16 %v6239
      %v6279 = vunpack.c.l.b16 %v6240
      %v6280 = vunpack.c.l.b16 %v6241
      %v6281 = vunpack.c.l.b16 %v6242
      %v6282 = vunpack.c.l.b16 %v6243
      %v6283 = vunpack.c.l.b16 %v6244
      %v6284 = vunpack.c.l.b16 %v6245
      %v6285 = vunpack.c.l.b16 %v6246
      %v6286 = vunpack.c.l.b16 %v6247
      %v6287 = vunpack.c.l.b16 %v6248
      %v6288 = vunpack.c.l.b16 %v6249
      %v6289 = vunpack.c.l.b16 %v6250
      %v6290 = vunpack.c.l.b16 %v6251
      %v6291 = vunpack.c.l.b16 %v6252
      %v6292 = vunpack.c.l.b16 %v6253
      %v6293 = vpack.c.b16 %v6278, %v6277
      %v6294 = vpack.c.b16 %v6280, %v6279
      %v6295 = vpack.c.b16 %v6282, %v6281
      %v6296 = vpack.c.b16 %v6284, %v6283
      %v6297 = vpack.c.b16 %v6286, %v6285
      %v6298 = vpack.c.b16 %v6288, %v6287
      %v6299 = vpack.c.b16 %v6290, %v6289
      %v6300 = vpack.c.b16 %v6292, %v6291
      %6309 = vmatprep.subr.bf16.mxu0 0
      %6310 = vmatpush1.bf16.msra.mxu0 %v6293
      %6311 = vmatprep.subr.bf16.mxu0 0
      %6312 = vmatpush1.bf16.msra.mxu0 %v6294
      %6313 = vmatprep.subr.bf16.mxu0 0
      %6314 = vmatpush1.bf16.msra.mxu0 %v6295
      %6315 = vmatprep.subr.bf16.mxu0 0
      %6316 = vmatpush1.bf16.msra.mxu0 %v6296
      %6317 = vmatprep.subr.bf16.mxu0 0
      %6318 = vmatpush1.bf16.msra.mxu0 %v6297
      %6319 = vmatprep.subr.bf16.mxu0 0
      %6320 = vmatpush1.bf16.msra.mxu0 %v6298
      %6321 = vmatprep.subr.bf16.mxu0 0
      %6322 = vmatpush1.bf16.msra.mxu0 %v6299
      %6323 = vmatprep.subr.bf16.mxu0 0
      %6324 = vmatpush1.bf16.msra.mxu0 %v6300
      %6325 = vmatprep.subr.bf16.mxu0 0
      %6326 = vmatpush1.bf16.msra.mxu0 0
      %6327 = vmatprep.subr.bf16.mxu0 0
      %6328 = vmatpush1.bf16.msra.mxu0 0
      %6329 = vmatprep.subr.bf16.mxu0 0
      %6330 = vmatpush1.bf16.msra.mxu0 0
      %6331 = vmatprep.subr.bf16.mxu0 0
      %6332 = vmatpush1.bf16.msra.mxu0 0
      %6333 = vmatprep.subr.bf16.mxu0 0
      %6334 = vmatpush1.bf16.msra.mxu0 0
      %6335 = vmatprep.subr.bf16.mxu0 0
      %6336 = vmatpush1.bf16.msra.mxu0 0
      %6337 = vmatprep.subr.bf16.mxu0 0
      %6338 = vmatpush1.bf16.msra.mxu0 0
      %6339 = vmatprep.subr.bf16.mxu0 0
      %6340 = vmatpush1.bf16.msra.mxu0 0
      %6341 = vmatprep.mubr.bf16.mxu0 0
      %6342 = vmatmul.mubr.bf16.gmra.mrb[0].mxu0 %v6237
      %v6343 = vpop.f32.mrb[0].mxu0
      %v6344 = vadd.f32 %v6259, %v6343
      %v6345 = vpop.f32.mrb[0].mxu0
      %v6346 = vpop.f32.mrb[0].mxu0
      %v6347 = vpop.f32.mrb[0].mxu0
      %6348 = vdwg.mxu0
      %6349 = vst [vmem:[%s9] sm:$0xff] %v6344
    $region77: #{model1_forward.1} parent=1 // pred_fallthru
      _
    // Predicated region
    $region78: #{model1_forward.1} parent=1 // pred_check
      _
    $region79: #{model1_forward.1} parent=1 // pred_check_branch
      %6351 = sbr.rel (0) target = $region81
    $region80: #{model1_forward.1} parent=1 // pred_region
      _
    $region81: #{model1_forward.1} parent=1 // pred_fallthru
      _
    // Predicated region
    $region82: #{model1_forward.1} parent=1 // pred_check
      _
    $region83: #{model1_forward.1} parent=1 // pred_check_branch
      %6353 = sbr.rel (0) target = $region85
    $region84: #{model1_forward.1} parent=1 // pred_region
      _
    $region85: #{model1_forward.1} parent=1 // pred_fallthru
      _
    %6354 = vsyncpa [#allocation4], 1
    %6355 = vsyncpa [#allocation6], 1
    %6356 = vsyncpa [#allocation9], 1
    %6357 = vsyncpa [#allocation12], 1
    %6358 = vsyncpa [#allocation15], 1

</llo_original>
